<compile_context>
chip_gen: v7x
topology: tpu7x:2x2x1
jax: 0.10.0
libtpu: 0.0.40
codegen_flags: <defaults>
</compile_context>

<pallas_src>
import functools

import jax
import jax.numpy as jnp
from jax.experimental import pallas as pl
from jax.experimental.pallas import tpu as pltpu


# ----------------------------------------------------------------------------
# Kernel
# ----------------------------------------------------------------------------
def _repvgg_plux_kernel(*refs, H, W, has_proj, use_im2col, act_dtype):
    if has_proj:
        (x_ref, w3_ref, b3_ref, wse1_ref, bse1_ref, wse2_ref, bse2_ref,
         wid_ref, bid_ref, out_ref) = refs
    else:
        (x_ref, w3_ref, b3_ref, wse1_ref, bse1_ref, wse2_ref, bse2_ref,
         out_ref) = refs
        wid_ref = bid_ref = None

    Nb = x_ref.shape[0]
    Cin = x_ref.shape[-1]
    Cout = b3_ref.shape[-1]
    M = Nb * H * W

    # bf16 block straight from VMEM -- no f32 round-trip of the padded block.
    x = x_ref[...]                                          # (Nb, H+2, W+2, Cin)
    taps = [x[:, dy:dy + H, dx:dx + W, :] for dy in range(3) for dx in range(3)]
    center = taps[4]                                        # reused by skip path

    # ---- fused conv: 3x3 grouped + alpha*1x1 grouped + both BNs (all folded
    # offline into w3 / b3); f32 MXU accumulation -----------------------------
    if use_im2col:
        # Deep contraction (K = 9*Cin) for moderate Cin.
        patches = jnp.concatenate(taps, axis=-1).reshape(M, 9 * Cin)
        acc = jnp.dot(patches, w3_ref[...], preferred_element_type=jnp.float32)
    else:
        # 9 accumulating matmuls: no 9x patch materialisation (large Cin) and
        # no low-lane-utilisation concat copies (tiny Cin).
        acc = jnp.dot(taps[0].reshape(M, Cin), w3_ref[0],
                      preferred_element_type=jnp.float32)
        for t in range(1, 9):
            acc = acc + jnp.dot(taps[t].reshape(M, Cin), w3_ref[t],
                                preferred_element_type=jnp.float32)

    # ---- folded bias + ReLU (bf16 on parts with a bf16 VALU, f32 on v5e) -----
    y3 = jnp.maximum(acc.astype(act_dtype) + b3_ref[...].astype(act_dtype),
                     0.0).reshape(Nb, H * W, Cout)

    # ---- squeeze-and-excitation: pool / FCs / sigmoid kept in f32 ------------
    pooled = jnp.mean(y3, axis=1, dtype=jnp.float32)        # (Nb, Cout)
    h1 = jnp.maximum(
        jnp.dot(pooled, wse1_ref[...], preferred_element_type=jnp.float32)
        + bse1_ref[...], 0.0)
    gate = jax.nn.sigmoid(
        jnp.dot(h1, wse2_ref[...], preferred_element_type=jnp.float32)
        + bse2_ref[...])
    y3 = y3 * gate.astype(act_dtype)[:, None, :]

    # ---- skip path ------------------------------------------------------------
    if has_proj:
        idn = jnp.dot(center.reshape(M, Cin), wid_ref[...],
                      preferred_element_type=jnp.float32) + bid_ref[...]
        idn = idn.reshape(Nb, H * W, Cout).astype(act_dtype)
    else:
        # Cin == Cout: plain residual add of the already-loaded centre tap.
        idn = center.reshape(Nb, H * W, Cin).astype(act_dtype)

    out = y3 + idn
    out_ref[...] = out.reshape(Nb, H, W, Cout).astype(out_ref.dtype)


# ----------------------------------------------------------------------------
# Static device capabilities / block planning
# ----------------------------------------------------------------------------
@functools.lru_cache(maxsize=1)
def _tpu_caps():
    """(vmem_capacity_bytes, has_bf16_valu, mxu_contraction_depth)."""
    kind = ""
    try:
        kind = jax.devices()[0].device_kind.lower()
    except Exception:
        pass
    old_gen = any(t in kind for t in ("v2", "v3", "v4", "v5"))    # pre-v6: no bf16 VALU
    vmem = (64 << 20) if ("v7" in kind or "tpu7" in kind) else (128 << 20)
    try:
        vmem = int(pltpu.get_tpu_info().vmem_capacity_bytes)
    except Exception:
        pass
    return vmem, (not old_gen), (128 if old_gen else 256)


def _vmem_estimate(nb, H, W, Cin, Cout, use_im2col):
    """Rough per-grid-step VMEM working set (bytes)."""
    M = nb * H * W
    x_blk = nb * (H + 2) * (W + 2) * Cin * 2                 # bf16 input block
    out_blk = M * Cout * 2                                   # bf16 output block
    pipeline = 2 * (x_blk + out_blk)                         # double-buffered
    inter = M * (4 * Cout + 2 * Cout + 2 * Cout + 2 * Cin)   # acc f32, y/idn bf16
    if use_im2col:
        inter += 2 * M * 9 * Cin * 2                         # patches + staging
    return pipeline + inter


def _pick_batch_block(N, H, W, Cin, Cout, use_im2col, vmem_bytes):
    """Images per grid step: amortise the ~0.35us/step overhead, fit VMEM,
    keep >=2 grid steps when possible so both v7x TensorCores get work."""
    target_rows = 1024 if vmem_bytes <= (64 << 20) else 4096   # v7x vs v5e/v6e
    budget = int(vmem_bytes * 0.4)
    best = 1
    for nb in range(1, N + 1):
        if N % nb:
            continue
        if nb > 1 and (nb * H * W > target_rows
                       or _vmem_estimate(nb, H, W, Cin, Cout, use_im2col) > budget):
            break
        best = nb
    if best == N and N > 1:
        for nb in range(N // 2, 0, -1):
            if N % nb == 0:
                best = nb
                break
    # TODO(synk): when even nb=1 does not fit (large H*W on v7x's 64 MiB), add
    # H-tiling with a 2-row halo and a two-phase SE (pooled sums accumulated
    # across H tiles on an 'arbitrary' grid axis, gate+skip in a finalize step).
    return best


# ----------------------------------------------------------------------------
# Wrappers
# ----------------------------------------------------------------------------
def repvgg_plux_block_nhwc(x_nhwc, params):
    """Native fast path: NHWC activations in, NHWC bf16 out (no layout passes)."""
    N, H, W, Cin = x_nhwc.shape
    Cout = params["b3"].shape[-1]
    has_proj = "wid" in params

    vmem_bytes, has_bf16_valu, mxu_k = _tpu_caps()
    # Static conv-strategy choice: deep-K im2col only where it pays.
    # TODO(synk): for Cin < 32 the ideal path is a lane-merged (W*Cin) view with
    # pltpu.roll dx-shifts (XLU) instead of channel-minor tap slices.
    use_im2col = 32 <= Cin < mxu_k
    act_dtype = jnp.bfloat16 if has_bf16_valu else jnp.float32

    # Halo pad (fused by XLA with the caller's cast/transpose when present).
    # TODO(synk): fold the pad into the kernel (manual DMA of the unpadded
    # block into a zero-initialised VMEM scratch) to remove this pass over x.
    xpad = jnp.pad(x_nhwc.astype(jnp.bfloat16), ((0, 0), (1, 1), (1, 1), (0, 0)))

    nb = _pick_batch_block(N, H, W, Cin, Cout, use_im2col, vmem_bytes)
    grid = (N // nb,)

    w3 = params["w3"]                                       # (9, Cin, Cout) bf16
    if use_im2col:
        w3 = w3.reshape(9 * Cin, Cout)                      # free reshape in XLA
    weights = [w3, params["b3"], params["wse1"], params["bse1"],
               params["wse2"], params["bse2"]]
    if has_proj:
        weights += [params["wid"], params["bid"]]

    def full_spec(a):
        nd = a.ndim
        return pl.BlockSpec(a.shape, lambda n, _nd=nd: (0,) * _nd)

    in_specs = [pl.BlockSpec((nb, H + 2, W + 2, Cin), lambda n: (n, 0, 0, 0))]
    in_specs += [full_spec(w) for w in weights]
    out_spec = pl.BlockSpec((nb, H, W, Cout), lambda n: (n, 0, 0, 0))

    # VMEM limit sized from the actual working set (with headroom), capped well
    # below the device's physical capacity (64 MiB on v7x, 128 MiB v5e/v6e).
    est = _vmem_estimate(nb, H, W, Cin, Cout, use_im2col)
    wbytes = sum(int(w.size) * w.dtype.itemsize for w in weights)
    vmem_limit = int(min(0.9 * vmem_bytes, max(32 << 20, 2 * (est + wbytes))))

    kern = functools.partial(_repvgg_plux_kernel, H=H, W=W, has_proj=has_proj,
                             use_im2col=use_im2col, act_dtype=act_dtype)
    return pl.pallas_call(
        kern,
        out_shape=jax.ShapeDtypeStruct((N, H, W, Cout), jnp.bfloat16),
        grid=grid,
        in_specs=in_specs,
        out_specs=out_spec,
        compiler_params=pltpu.CompilerParams(
            dimension_semantics=("parallel",),
            vmem_limit_bytes=vmem_limit,
        ),
    )(xpad, *weights)


def repvgg_plux_block(x_nchw, params):
    """Drop-in NCHW wrapper matching the PyTorch module interface.

    Prefer repvgg_plux_block_nhwc inside an NHWC network: the NCHW<->NHWC
    transposes here are full extra HBM passes that the kernel itself avoids.
    """
    y = repvgg_plux_block_nhwc(jnp.transpose(x_nchw, (0, 2, 3, 1)), params)
    return jnp.transpose(y, (0, 3, 1, 2)).astype(x_nchw.dtype)


# ----------------------------------------------------------------------------
# Deterministic parameter construction (synthetic weights, BN + 1x1 folded).
# ----------------------------------------------------------------------------
def make_params(key, in_channels, out_channels, groups=4, se_ratio=4, alpha=1.0):
    cin_g = in_channels // groups
    cout_g = out_channels // groups
    eps = 1e-5
    ks = jax.random.split(key, 16)

    # conv1 (3x3 grouped, bias=False) + BN1
    w3_pt = 0.1 * jax.random.normal(ks[0], (out_channels, cin_g, 3, 3), jnp.float32)
    g1 = 1.0 + 0.1 * jax.random.normal(ks[1], (out_channels,), jnp.float32)
    beta1 = 0.1 * jax.random.normal(ks[2], (out_channels,), jnp.float32)
    m1 = 0.1 * jax.random.normal(ks[3], (out_channels,), jnp.float32)
    v1 = jnp.abs(jax.random.normal(ks[4], (out_channels,), jnp.float32)) + 0.5

    # conv2 (1x1 grouped, bias=False) + BN2
    w1_pt = 0.1 * jax.random.normal(ks[5], (out_channels, cin_g, 1, 1), jnp.float32)
    g2 = 1.0 + 0.1 * jax.random.normal(ks[6], (out_channels,), jnp.float32)
    beta2 = 0.1 * jax.random.normal(ks[7], (out_channels,), jnp.float32)
    m2 = 0.1 * jax.random.normal(ks[8], (out_channels,), jnp.float32)
    v2 = jnp.abs(jax.random.normal(ks[9], (out_channels,), jnp.float32)) + 0.5

    # Fold eval-mode BN into the conv weights / bias.
    s1 = g1 / jnp.sqrt(v1 + eps)
    w3_f = w3_pt * s1[:, None, None, None]
    b3_f = beta1 - m1 * s1
    s2 = g2 / jnp.sqrt(v2 + eps)
    w1_f = w1_pt * s2[:, None, None, None]
    b1_f = beta2 - m2 * s2

    def grouped_to_dense(w, kh, kw):
        # (Cout, Cin_g, kh, kw) -> (kh*kw, Cin, Cout), block-diagonal over groups.
        # TODO(synk): for Cin_g/Cout_g >= 128 switch to per-group matmuls
        # (weights (G, 9*Cin_g, Cout_g)); the block-diagonal trick wastes
        # (groups-1)/groups of the MXU MACs and inflates weight VMEM there.
        full = jnp.zeros((kh, kw, in_channels, out_channels), jnp.float32)
        wg = w.reshape(groups, cout_g, cin_g, kh, kw)
        for g in range(groups):
            blk = jnp.transpose(wg[g], (2, 3, 1, 0))   # (kh, kw, cin_g, cout_g)
            full = full.at[:, :, g * cin_g:(g + 1) * cin_g,
                           g * cout_g:(g + 1) * cout_g].set(blk)
        return full.reshape(kh * kw, in_channels, out_channels)

    w3_dense = grouped_to_dense(w3_f, 3, 3)            # (9, Cin, Cout)
    w1_dense = grouped_to_dense(w1_f, 1, 1)[0]         # (Cin, Cout)

    # Offline re-parameterization (exact: both branches are pre-ReLU and BN /
    # alpha are fixed at inference): fold alpha*conv1x1 into the centre tap.
    w3_dense = w3_dense.at[4].add(alpha * w1_dense)
    b_fused = b3_f + alpha * b1_f

    # Squeeze-and-Excitation.
    # TODO(synk): SE reduction ratio is not given in the reference snippet;
    # standard SE (pool -> fc -> ReLU -> fc -> sigmoid, r=se_ratio) is assumed.
    csq = max(out_channels // se_ratio, 1)
    wse1 = 0.2 * jax.random.normal(ks[12], (out_channels, csq), jnp.float32)
    bse1 = 0.1 * jax.random.normal(ks[13], (csq,), jnp.float32)
    wse2 = 0.2 * jax.random.normal(ks[14], (csq, out_channels), jnp.float32)
    bse2 = 0.1 * jax.random.normal(ks[15], (out_channels,), jnp.float32)

    kernel_params = {
        "w3": w3_dense.astype(jnp.bfloat16),           # bf16 MXU operand
        "b3": b_fused.reshape(1, -1),                  # f32 folded bias
        "wse1": wse1, "bse1": bse1.reshape(1, -1),     # SE kept f32 (tiny)
        "wse2": wse2, "bse2": bse2.reshape(1, -1),
    }
    ref_params = {
        "w3_oihw": w3_f, "b3": b3_f,
        "w1_oihw": w1_f, "b1": b1_f,
        "wse1": wse1, "bse1": bse1, "wse2": wse2, "bse2": bse2,
        "groups": groups, "alpha": alpha,
        "wid_oihw": None, "bid": None,
    }

    if in_channels != out_channels:
        wid_oihw = 0.1 * jax.random.normal(
            ks[10], (out_channels, in_channels, 1, 1), jnp.float32)
        bid = 0.1 * jax.random.normal(ks[11], (out_channels,), jnp.float32)
        kernel_params["wid"] = jnp.transpose(
            wid_oihw[:, :, 0, 0], (1, 0)).astype(jnp.bfloat16)
        kernel_params["bid"] = bid.reshape(1, -1)
        ref_params["wid_oihw"] = wid_oihw
        ref_params["bid"] = bid

    return kernel_params, ref_params


# ----------------------------------------------------------------------------
# Pure-JAX reference (lax.conv, unfolded weights).
# ----------------------------------------------------------------------------
def reference_nchw(x_nchw, rp):
    groups, alpha = rp["groups"], rp["alpha"]
    x = jnp.transpose(x_nchw, (0, 2, 3, 1)).astype(jnp.float32)    # NHWC
    dn = ("NHWC", "HWIO", "NHWC")

    w3 = jnp.transpose(rp["w3_oihw"], (2, 3, 1, 0))
    y1 = jax.lax.conv_general_dilated(x, w3, (1, 1), ((1, 1), (1, 1)),
                                      dimension_numbers=dn,
                                      feature_group_count=groups) + rp["b3"]
    w1 = jnp.transpose(rp["w1_oihw"], (2, 3, 1, 0))
    y2 = jax.lax.conv_general_dilated(x, w1, (1, 1), ((0, 0), (0, 0)),
                                      dimension_numbers=dn,
                                      feature_group_count=groups) + rp["b1"]
    y = jax.nn.relu(y1 + alpha * y2)

    pooled = jnp.mean(y, axis=(1, 2))                               # (N, Cout)
    h = jax.nn.relu(pooled @ rp["wse1"] + rp["bse1"])
    gate = jax.nn.sigmoid(h @ rp["wse2"] + rp["bse2"])
    y = y * gate[:, None, None, :]

    if rp["wid_oihw"] is None:
        idn = x
    else:
        wid = jnp.transpose(rp["wid_oihw"], (2, 3, 1, 0))
        idn = jax.lax.conv_general_dilated(x, wid, (1, 1), ((0, 0), (0, 0)),
                                           dimension_numbers=dn) + rp["bid"]
    return jnp.transpose(y + idn, (0, 3, 1, 2))                     # NCHW


# ----------------------------------------------------------------------------
if __name__ == "__main__":
    key = jax.random.PRNGKey(0)
    kx, kp1, kp2 = jax.random.split(key, 3)

    N, C, H, W = 2, 8, 16, 16
    x = jax.random.normal(kx, (N, C, H, W), jnp.float32)

    fwd = jax.jit(repvgg_plux_block)   # static, jit-able wrapper (no fallback probing)

    # Case 1: Cin == Cout -> identity (residual) skip, groups=4.
    kparams, rparams = make_params(kp1, C, C, groups=4, se_ratio=4, alpha=1.0)
    out = jax.block_until_ready(fwd(x, kparams))
    ref = reference_nchw(x, rparams)
    assert out.shape == ref.shape == (N, C, H, W)
    max_err = float(jnp.max(jnp.abs(out - ref)))
    mean_err = float(jnp.mean(jnp.abs(out - ref)))
    # bf16 activations / weights / output (f32 MXU accumulation) -> ~1e-2-scale
    # worst-case absolute error at these value magnitudes.
    assert max_err < 1e-1 and mean_err < 1e-2, (max_err, mean_err)

    # Case 2: Cin != Cout -> 1x1-conv projection skip.
    Cout2 = 16
    kparams2, rparams2 = make_params(kp2, C, Cout2, groups=4, se_ratio=4, alpha=1.0)
    out2 = jax.block_until_ready(fwd(x, kparams2))
    ref2 = reference_nchw(x, rparams2)
    assert out2.shape == ref2.shape == (N, Cout2, H, W)
    max_err2 = float(jnp.max(jnp.abs(out2 - ref2)))
    assert max_err2 < 1e-1, max_err2

    print("KERNEL_OK")
</pallas_src>

<mosaic_0001>
module attributes {stable_mosaic.version = 11 : i64} {
  func.func @_repvgg_plux_kernel(%arg0: i32, %arg1: memref<1x18x18x8xbf16, #tpu.memory_space<vmem>>, %arg2: memref<9x8x8xbf16, #tpu.memory_space<vmem>>, %arg3: memref<1x8xf32, #tpu.memory_space<vmem>>, %arg4: memref<8x2xf32, #tpu.memory_space<vmem>>, %arg5: memref<1x2xf32, #tpu.memory_space<vmem>>, %arg6: memref<2x8xf32, #tpu.memory_space<vmem>>, %arg7: memref<1x8xf32, #tpu.memory_space<vmem>>, %arg8: memref<1x16x16x8xbf16, #tpu.memory_space<vmem>>) attributes {dimension_semantics = [#tpu.dimension_semantics<parallel>], iteration_bounds = array<i64: 2>, scalar_prefetch = 0 : i64, scratch_operands = 0 : i64, tpu.core_type = #tpu.core_type<tc>, window_params = [{transform_indices = @transform_0, window_bounds = array<i64: 1, 18, 18, 8>}, {pipeline_mode = #tpu.pipeline_mode<synchronous>, transform_indices = @transform_1, window_bounds = array<i64: 9, 8, 8>}, {pipeline_mode = #tpu.pipeline_mode<synchronous>, transform_indices = @transform_2, window_bounds = array<i64: 1, 8>}, {pipeline_mode = #tpu.pipeline_mode<synchronous>, transform_indices = @transform_3, window_bounds = array<i64: 8, 2>}, {pipeline_mode = #tpu.pipeline_mode<synchronous>, transform_indices = @transform_4, window_bounds = array<i64: 1, 2>}, {pipeline_mode = #tpu.pipeline_mode<synchronous>, transform_indices = @transform_5, window_bounds = array<i64: 2, 8>}, {pipeline_mode = #tpu.pipeline_mode<synchronous>, transform_indices = @transform_6, window_bounds = array<i64: 1, 8>}, {transform_indices = @transform_7, window_bounds = array<i64: 1, 16, 16, 8>}]} {
    %c0 = arith.constant 0 : index
    %c0_0 = arith.constant 0 : index
    %c0_1 = arith.constant 0 : index
    %c0_2 = arith.constant 0 : index
    %0 = vector.load %arg1[%c0, %c0_0, %c0_1, %c0_2] : memref<1x18x18x8xbf16, #tpu.memory_space<vmem>>, vector<1x18x18x8xbf16>
    %1 = vector.extract_strided_slice %0 {offsets = [0, 0, 0, 0], sizes = [1, 16, 16, 8], strides = [1, 1, 1, 1]} : vector<1x18x18x8xbf16> to vector<1x16x16x8xbf16>
    %2 = vector.extract_strided_slice %0 {offsets = [0, 0, 1, 0], sizes = [1, 16, 16, 8], strides = [1, 1, 1, 1]} : vector<1x18x18x8xbf16> to vector<1x16x16x8xbf16>
    %3 = vector.extract_strided_slice %0 {offsets = [0, 0, 2, 0], sizes = [1, 16, 16, 8], strides = [1, 1, 1, 1]} : vector<1x18x18x8xbf16> to vector<1x16x16x8xbf16>
    %4 = vector.extract_strided_slice %0 {offsets = [0, 1, 0, 0], sizes = [1, 16, 16, 8], strides = [1, 1, 1, 1]} : vector<1x18x18x8xbf16> to vector<1x16x16x8xbf16>
    %5 = vector.extract_strided_slice %0 {offsets = [0, 1, 1, 0], sizes = [1, 16, 16, 8], strides = [1, 1, 1, 1]} : vector<1x18x18x8xbf16> to vector<1x16x16x8xbf16>
    %6 = vector.extract_strided_slice %0 {offsets = [0, 1, 2, 0], sizes = [1, 16, 16, 8], strides = [1, 1, 1, 1]} : vector<1x18x18x8xbf16> to vector<1x16x16x8xbf16>
    %7 = vector.extract_strided_slice %0 {offsets = [0, 2, 0, 0], sizes = [1, 16, 16, 8], strides = [1, 1, 1, 1]} : vector<1x18x18x8xbf16> to vector<1x16x16x8xbf16>
    %8 = vector.extract_strided_slice %0 {offsets = [0, 2, 1, 0], sizes = [1, 16, 16, 8], strides = [1, 1, 1, 1]} : vector<1x18x18x8xbf16> to vector<1x16x16x8xbf16>
    %9 = vector.extract_strided_slice %0 {offsets = [0, 2, 2, 0], sizes = [1, 16, 16, 8], strides = [1, 1, 1, 1]} : vector<1x18x18x8xbf16> to vector<1x16x16x8xbf16>
    %10 = vector.shape_cast %1 : vector<1x16x16x8xbf16> to vector<256x8xbf16>
    %c0_3 = arith.constant 0 : index
    %c0_4 = arith.constant 0 : index
    %c0_5 = arith.constant 0 : index
    %11 = vector.load %arg2[%c0_3, %c0_4, %c0_5] : memref<9x8x8xbf16, #tpu.memory_space<vmem>>, vector<1x8x8xbf16>
    %12 = vector.shape_cast %11 : vector<1x8x8xbf16> to vector<8x8xbf16>
    %cst = arith.constant dense<0.000000e+00> : vector<256x8xf32>
    %13 = tpu.matmul %10, %12, %cst {dimension_numbers = #tpu.dot_dimension_numbers<[1], [0], [0], [1], [0, 0, 1, 1], [], []>} : vector<256x8xbf16>, vector<8x8xbf16>, vector<256x8xf32> -> vector<256x8xf32>
    %14 = vector.shape_cast %2 : vector<1x16x16x8xbf16> to vector<256x8xbf16>
    %c1 = arith.constant 1 : index
    %c0_6 = arith.constant 0 : index
    %c0_7 = arith.constant 0 : index
    %15 = vector.load %arg2[%c1, %c0_6, %c0_7] : memref<9x8x8xbf16, #tpu.memory_space<vmem>>, vector<1x8x8xbf16>
    %16 = vector.shape_cast %15 : vector<1x8x8xbf16> to vector<8x8xbf16>
    %cst_8 = arith.constant dense<0.000000e+00> : vector<256x8xf32>
    %17 = tpu.matmul %14, %16, %cst_8 {dimension_numbers = #tpu.dot_dimension_numbers<[1], [0], [0], [1], [0, 0, 1, 1], [], []>} : vector<256x8xbf16>, vector<8x8xbf16>, vector<256x8xf32> -> vector<256x8xf32>
    %18 = arith.addf %13, %17 : vector<256x8xf32>
    %19 = vector.shape_cast %3 : vector<1x16x16x8xbf16> to vector<256x8xbf16>
    %c2 = arith.constant 2 : index
    %c0_9 = arith.constant 0 : index
    %c0_10 = arith.constant 0 : index
    %20 = vector.load %arg2[%c2, %c0_9, %c0_10] : memref<9x8x8xbf16, #tpu.memory_space<vmem>>, vector<1x8x8xbf16>
    %21 = vector.shape_cast %20 : vector<1x8x8xbf16> to vector<8x8xbf16>
    %cst_11 = arith.constant dense<0.000000e+00> : vector<256x8xf32>
    %22 = tpu.matmul %19, %21, %cst_11 {dimension_numbers = #tpu.dot_dimension_numbers<[1], [0], [0], [1], [0, 0, 1, 1], [], []>} : vector<256x8xbf16>, vector<8x8xbf16>, vector<256x8xf32> -> vector<256x8xf32>
    %23 = arith.addf %18, %22 : vector<256x8xf32>
    %24 = vector.shape_cast %4 : vector<1x16x16x8xbf16> to vector<256x8xbf16>
    %c3 = arith.constant 3 : index
    %c0_12 = arith.constant 0 : index
    %c0_13 = arith.constant 0 : index
    %25 = vector.load %arg2[%c3, %c0_12, %c0_13] : memref<9x8x8xbf16, #tpu.memory_space<vmem>>, vector<1x8x8xbf16>
    %26 = vector.shape_cast %25 : vector<1x8x8xbf16> to vector<8x8xbf16>
    %cst_14 = arith.constant dense<0.000000e+00> : vector<256x8xf32>
    %27 = tpu.matmul %24, %26, %cst_14 {dimension_numbers = #tpu.dot_dimension_numbers<[1], [0], [0], [1], [0, 0, 1, 1], [], []>} : vector<256x8xbf16>, vector<8x8xbf16>, vector<256x8xf32> -> vector<256x8xf32>
    %28 = arith.addf %23, %27 : vector<256x8xf32>
    %29 = vector.shape_cast %5 : vector<1x16x16x8xbf16> to vector<256x8xbf16>
    %c4 = arith.constant 4 : index
    %c0_15 = arith.constant 0 : index
    %c0_16 = arith.constant 0 : index
    %30 = vector.load %arg2[%c4, %c0_15, %c0_16] : memref<9x8x8xbf16, #tpu.memory_space<vmem>>, vector<1x8x8xbf16>
    %31 = vector.shape_cast %30 : vector<1x8x8xbf16> to vector<8x8xbf16>
    %cst_17 = arith.constant dense<0.000000e+00> : vector<256x8xf32>
    %32 = tpu.matmul %29, %31, %cst_17 {dimension_numbers = #tpu.dot_dimension_numbers<[1], [0], [0], [1], [0, 0, 1, 1], [], []>} : vector<256x8xbf16>, vector<8x8xbf16>, vector<256x8xf32> -> vector<256x8xf32>
    %33 = arith.addf %28, %32 : vector<256x8xf32>
    %34 = vector.shape_cast %6 : vector<1x16x16x8xbf16> to vector<256x8xbf16>
    %c5 = arith.constant 5 : index
    %c0_18 = arith.constant 0 : index
    %c0_19 = arith.constant 0 : index
    %35 = vector.load %arg2[%c5, %c0_18, %c0_19] : memref<9x8x8xbf16, #tpu.memory_space<vmem>>, vector<1x8x8xbf16>
    %36 = vector.shape_cast %35 : vector<1x8x8xbf16> to vector<8x8xbf16>
    %cst_20 = arith.constant dense<0.000000e+00> : vector<256x8xf32>
    %37 = tpu.matmul %34, %36, %cst_20 {dimension_numbers = #tpu.dot_dimension_numbers<[1], [0], [0], [1], [0, 0, 1, 1], [], []>} : vector<256x8xbf16>, vector<8x8xbf16>, vector<256x8xf32> -> vector<256x8xf32>
    %38 = arith.addf %33, %37 : vector<256x8xf32>
    %39 = vector.shape_cast %7 : vector<1x16x16x8xbf16> to vector<256x8xbf16>
    %c6 = arith.constant 6 : index
    %c0_21 = arith.constant 0 : index
    %c0_22 = arith.constant 0 : index
    %40 = vector.load %arg2[%c6, %c0_21, %c0_22] : memref<9x8x8xbf16, #tpu.memory_space<vmem>>, vector<1x8x8xbf16>
    %41 = vector.shape_cast %40 : vector<1x8x8xbf16> to vector<8x8xbf16>
    %cst_23 = arith.constant dense<0.000000e+00> : vector<256x8xf32>
    %42 = tpu.matmul %39, %41, %cst_23 {dimension_numbers = #tpu.dot_dimension_numbers<[1], [0], [0], [1], [0, 0, 1, 1], [], []>} : vector<256x8xbf16>, vector<8x8xbf16>, vector<256x8xf32> -> vector<256x8xf32>
    %43 = arith.addf %38, %42 : vector<256x8xf32>
    %44 = vector.shape_cast %8 : vector<1x16x16x8xbf16> to vector<256x8xbf16>
    %c7 = arith.constant 7 : index
    %c0_24 = arith.constant 0 : index
    %c0_25 = arith.constant 0 : index
    %45 = vector.load %arg2[%c7, %c0_24, %c0_25] : memref<9x8x8xbf16, #tpu.memory_space<vmem>>, vector<1x8x8xbf16>
    %46 = vector.shape_cast %45 : vector<1x8x8xbf16> to vector<8x8xbf16>
    %cst_26 = arith.constant dense<0.000000e+00> : vector<256x8xf32>
    %47 = tpu.matmul %44, %46, %cst_26 {dimension_numbers = #tpu.dot_dimension_numbers<[1], [0], [0], [1], [0, 0, 1, 1], [], []>} : vector<256x8xbf16>, vector<8x8xbf16>, vector<256x8xf32> -> vector<256x8xf32>
    %48 = arith.addf %43, %47 : vector<256x8xf32>
    %49 = vector.shape_cast %9 : vector<1x16x16x8xbf16> to vector<256x8xbf16>
    %c8 = arith.constant 8 : index
    %c0_27 = arith.constant 0 : index
    %c0_28 = arith.constant 0 : index
    %50 = vector.load %arg2[%c8, %c0_27, %c0_28] : memref<9x8x8xbf16, #tpu.memory_space<vmem>>, vector<1x8x8xbf16>
    %51 = vector.shape_cast %50 : vector<1x8x8xbf16> to vector<8x8xbf16>
    %cst_29 = arith.constant dense<0.000000e+00> : vector<256x8xf32>
    %52 = tpu.matmul %49, %51, %cst_29 {dimension_numbers = #tpu.dot_dimension_numbers<[1], [0], [0], [1], [0, 0, 1, 1], [], []>} : vector<256x8xbf16>, vector<8x8xbf16>, vector<256x8xf32> -> vector<256x8xf32>
    %53 = arith.addf %48, %52 : vector<256x8xf32>
    %54 = arith.truncf %53 : vector<256x8xf32> to vector<256x8xbf16>
    %c0_30 = arith.constant 0 : index
    %c0_31 = arith.constant 0 : index
    %55 = vector.load %arg3[%c0_30, %c0_31] : memref<1x8xf32, #tpu.memory_space<vmem>>, vector<1x8xf32>
    %56 = arith.truncf %55 : vector<1x8xf32> to vector<1x8xbf16>
    %57 = vector.broadcast %56 : vector<1x8xbf16> to vector<256x8xbf16>
    %58 = arith.addf %54, %57 : vector<256x8xbf16>
    %cst_32 = arith.constant 0.000000e+00 : bf16
    %59 = vector.broadcast %cst_32 : bf16 to vector<256x8xbf16>
    %60 = arith.maximumf %58, %59 : vector<256x8xbf16>
    %61 = vector.shape_cast %60 : vector<256x8xbf16> to vector<1x256x8xbf16>
    %62 = arith.extf %61 : vector<1x256x8xbf16> to vector<1x256x8xf32>
    %cst_33 = arith.constant dense<0.000000e+00> : vector<1x8xf32>
    %63 = vector.multi_reduction <add>, %62, %cst_33 [1] : vector<1x256x8xf32> to vector<1x8xf32>
    %cst_34 = arith.constant 2.560000e+02 : f32
    %64 = vector.broadcast %cst_34 : f32 to vector<1x8xf32>
    %65 = arith.divf %63, %64 : vector<1x8xf32>
    %c0_35 = arith.constant 0 : index
    %c0_36 = arith.constant 0 : index
    %66 = vector.load %arg4[%c0_35, %c0_36] : memref<8x2xf32, #tpu.memory_space<vmem>>, vector<8x2xf32>
    %cst_37 = arith.constant dense<0.000000e+00> : vector<1x2xf32>
    %67 = tpu.matmul %65, %66, %cst_37 {dimension_numbers = #tpu.dot_dimension_numbers<[1], [0], [0], [1], [0, 0, 1, 1], [], []>} : vector<1x8xf32>, vector<8x2xf32>, vector<1x2xf32> -> vector<1x2xf32>
    %c0_38 = arith.constant 0 : index
    %c0_39 = arith.constant 0 : index
    %68 = vector.load %arg5[%c0_38, %c0_39] : memref<1x2xf32, #tpu.memory_space<vmem>>, vector<1x2xf32>
    %69 = arith.addf %67, %68 : vector<1x2xf32>
    %cst_40 = arith.constant 0.000000e+00 : f32
    %70 = vector.broadcast %cst_40 : f32 to vector<1x2xf32>
    %71 = arith.maximumf %69, %70 : vector<1x2xf32>
    %c0_41 = arith.constant 0 : index
    %c0_42 = arith.constant 0 : index
    %72 = vector.load %arg6[%c0_41, %c0_42] : memref<2x8xf32, #tpu.memory_space<vmem>>, vector<2x8xf32>
    %cst_43 = arith.constant dense<0.000000e+00> : vector<1x8xf32>
    %73 = tpu.matmul %71, %72, %cst_43 {dimension_numbers = #tpu.dot_dimension_numbers<[1], [0], [0], [1], [0, 0, 1, 1], [], []>} : vector<1x2xf32>, vector<2x8xf32>, vector<1x8xf32> -> vector<1x8xf32>
    %c0_44 = arith.constant 0 : index
    %c0_45 = arith.constant 0 : index
    %74 = vector.load %arg7[%c0_44, %c0_45] : memref<1x8xf32, #tpu.memory_space<vmem>>, vector<1x8xf32>
    %75 = arith.addf %73, %74 : vector<1x8xf32>
    %76 = arith.negf %75 : vector<1x8xf32>
    %77 = math.exp %76 : vector<1x8xf32>
    %cst_46 = arith.constant 1.000000e+00 : f32
    %78 = vector.broadcast %cst_46 : f32 to vector<1x8xf32>
    %79 = arith.addf %78, %77 : vector<1x8xf32>
    %80 = arith.divf %78, %79 : vector<1x8xf32>
    %81 = arith.truncf %80 : vector<1x8xf32> to vector<1x8xbf16>
    %82 = vector.shape_cast %81 : vector<1x8xbf16> to vector<1x1x8xbf16>
    %83 = vector.broadcast %82 : vector<1x1x8xbf16> to vector<1x256x8xbf16>
    %84 = arith.mulf %61, %83 : vector<1x256x8xbf16>
    %85 = vector.shape_cast %5 : vector<1x16x16x8xbf16> to vector<1x256x8xbf16>
    %86 = arith.addf %84, %85 : vector<1x256x8xbf16>
    %87 = vector.shape_cast %86 : vector<1x256x8xbf16> to vector<1x16x16x8xbf16>
    %c0_47 = arith.constant 0 : index
    %c0_48 = arith.constant 0 : index
    %c0_49 = arith.constant 0 : index
    %c0_50 = arith.constant 0 : index
    %88 = vector.load %arg8[%c0_47, %c0_48, %c0_49, %c0_50] : memref<1x16x16x8xbf16, #tpu.memory_space<vmem>>, vector<1x16x16x8xbf16>
    tpu.vector_store %arg8[%c0_47, %c0_48, %c0_49, %c0_50], %87 {strides = array<i32>} : memref<1x16x16x8xbf16, #tpu.memory_space<vmem>>, vector<1x16x16x8xbf16>,
    return
  }
  func.func @transform_0(%arg0: i32) -> (i32, i32, i32, i32) {
    %c0_i32 = arith.constant 0 : i32
    %c0_i32_0 = arith.constant 0 : i32
    %c0_i32_1 = arith.constant 0 : i32
    %c0_i32_2 = arith.constant 0 : i32
    return %arg0, %c0_i32, %c0_i32_0, %c0_i32_1 : i32, i32, i32, i32
  }
  func.func @transform_1(%arg0: i32) -> (i32, i32, i32) {
    %c0_i32 = arith.constant 0 : i32
    %c0_i32_0 = arith.constant 0 : i32
    %c0_i32_1 = arith.constant 0 : i32
    %c0_i32_2 = arith.constant 0 : i32
    return %c0_i32, %c0_i32_0, %c0_i32_1 : i32, i32, i32
  }
  func.func @transform_2(%arg0: i32) -> (i32, i32) {
    %c0_i32 = arith.constant 0 : i32
    %c0_i32_0 = arith.constant 0 : i32
    %c0_i32_1 = arith.constant 0 : i32
    return %c0_i32, %c0_i32_0 : i32, i32
  }
  func.func @transform_3(%arg0: i32) -> (i32, i32) {
    %c0_i32 = arith.constant 0 : i32
    %c0_i32_0 = arith.constant 0 : i32
    %c0_i32_1 = arith.constant 0 : i32
    return %c0_i32, %c0_i32_0 : i32, i32
  }
  func.func @transform_4(%arg0: i32) -> (i32, i32) {
    %c0_i32 = arith.constant 0 : i32
    %c0_i32_0 = arith.constant 0 : i32
    %c0_i32_1 = arith.constant 0 : i32
    return %c0_i32, %c0_i32_0 : i32, i32
  }
  func.func @transform_5(%arg0: i32) -> (i32, i32) {
    %c0_i32 = arith.constant 0 : i32
    %c0_i32_0 = arith.constant 0 : i32
    %c0_i32_1 = arith.constant 0 : i32
    return %c0_i32, %c0_i32_0 : i32, i32
  }
  func.func @transform_6(%arg0: i32) -> (i32, i32) {
    %c0_i32 = arith.constant 0 : i32
    %c0_i32_0 = arith.constant 0 : i32
    %c0_i32_1 = arith.constant 0 : i32
    return %c0_i32, %c0_i32_0 : i32, i32
  }
  func.func @transform_7(%arg0: i32) -> (i32, i32, i32, i32) {
    %c0_i32 = arith.constant 0 : i32
    %c0_i32_0 = arith.constant 0 : i32
    %c0_i32_1 = arith.constant 0 : i32
    %c0_i32_2 = arith.constant 0 : i32
    return %arg0, %c0_i32, %c0_i32_0, %c0_i32_1 : i32, i32, i32, i32
  }
}

</mosaic_0001>

<llo_original>
// kernel: repvgg_plux_block.1
$region0: #{repvgg_plux_block.1}
  #allocation0 [shape = 'u32[]', space=smem, size = 0x4, offset = 0x4, fixed_abs, tag = 'smem constant byte address 0x4 - core index']
  #allocation1 [shape = 'u32[144,128]{1,0:T(1,128)}', space=vmem, size = 0x12000, scoped, tag = 'internal scratch']
  %s0 = inlined_call_operand.vmem [shape: bf16[2,18,18,8], index: 0, kind: input, shape index: {}]
  %s1 = inlined_call_operand.vmem [shape: bf16[9,8,8], index: 1, kind: input, shape index: {}]
  %s2 = inlined_call_operand.vmem [shape: f32[1,8], index: 2, kind: input, shape index: {}]
  %s3 = inlined_call_operand.vmem [shape: f32[8,2], index: 3, kind: input, shape index: {}]
  %s4 = inlined_call_operand.vmem [shape: f32[1,2], index: 4, kind: input, shape index: {}]
  %s5 = inlined_call_operand.vmem [shape: f32[2,8], index: 5, kind: input, shape index: {}]
  %s6 = inlined_call_operand.vmem [shape: f32[1,8], index: 6, kind: input, shape index: {}]
  %s7 = inlined_call_operand.vmem [shape: bf16[2,16,16,8], index: 7, kind: output, shape index: {}]
  %s8 = sld [smem:[#allocation0]]
  $region61: #{repvgg_plux_block.1} parent=0
    _
  %s10 = ssub.s32 1, %s8
  %s11 = scalar_select 0, %s10, %s8
  loop: start=0, step=1, limit=4
  $region2: #{repvgg_plux_block.1} parent=0 // loop_pre_header
    _
  $region3: #{repvgg_plux_block.1} parent=0 // loop_header
    %s13 = sphi 0, %s17
    %p14 = scmp.ge.s32.totalorder %s13, 4
    %s23 = sphi 0, %s25
    %s26 = sphi 0, %s23
    %s27 = sphi 0, %s26
    %s43 = sphi 0, %s27
    %s47 = sphi 0, %s47
    %s49 = sphi 0, %s47
    %s50 = sphi 0, %s49
    %s64 = sphi 0, %s50
    %s68 = sphi 0, %s68
    %s70 = sphi 0, %s68
    %s71 = sphi 0, %s70
    %s85 = sphi 0, %s71
    %s89 = sphi 0, %s89
    %s91 = sphi 0, %s89
    %s92 = sphi 0, %s91
    %s106 = sphi 0, %s92
    %s110 = sphi 0, %s110
    %s112 = sphi 0, %s110
    %s113 = sphi 0, %s112
    %s127 = sphi 0, %s113
    %s131 = sphi 0, %s131
    %s133 = sphi 0, %s131
    %s134 = sphi 0, %s133
    %s148 = sphi 0, %s134
    %s152 = sphi 0, %s152
    %s154 = sphi 0, %s152
    %s155 = sphi 0, %s154
    %s169 = sphi 0, %s155
    %s175 = sphi 0, %s177
    %s178 = sphi 0, %s175
    %s179 = sphi 0, %s178
    %s195 = sphi 0, %s179
  $region4: #{repvgg_plux_block.1} parent=0 // loop_header_branch
    %16 = sbr.rel (%p14) target = $region8
  $region5: #{repvgg_plux_block.1} parent=0 // loop_body
    %s18 = ssub.s32 %s13, 1
    %s19 = ssub.s32 %s13, 2
    %s20 = sadd.s32 %s13, 1
    %s21 = ssub.s32 %s13, %s20
    %p22 = scmp.eq.s32.totalorder %s21, 0
    %s24 = sadd.s32 %s23, 1
    %s25 = scalar_select %p22, %s23, %s24
    %p28 = pneg %p22
    %p29 = scmp.eq.s32.totalorder %s13, 1
    %p30 = por %p28, %p29
    %p31 = scmp.ne.s32.totalorder %s23, %s26
    %p32 = scmp.eq.s32.totalorder %s13, 0
    %p33 = por %p31, %p32
    %p34 = scmp.ne.s32.totalorder %s23, %s26
    %p35 = scmp.eq.s32.totalorder %s18, 1
    %p36 = por %p34, %p35
    %p37 = scmp.ne.s32.totalorder %s26, %s27
    %p38 = scmp.eq.s32.totalorder %s18, 0
    %p39 = por %p37, %p38
    %p40 = scmp.ne.s32.totalorder %s26, %s27
    %p41 = scmp.eq.s32.totalorder %s19, 1
    %p42 = por %p40, %p41
    %p44 = scmp.ne.s32.totalorder %s27, %s43
    %p45 = scmp.eq.s32.totalorder %s19, 0
    %p46 = por %p44, %p45
    %s48 = sadd.s32 %s47, 1
    %p51 = scmp.eq.s32.totalorder %s13, 1
    %p52 = scmp.ne.s32.totalorder %s47, %s49
    %p53 = scmp.eq.s32.totalorder %s13, 0
    %p54 = por %p52, %p53
    %p55 = scmp.ne.s32.totalorder %s47, %s49
    %p56 = scmp.eq.s32.totalorder %s18, 1
    %p57 = por %p55, %p56
    %p58 = scmp.ne.s32.totalorder %s49, %s50
    %p59 = scmp.eq.s32.totalorder %s18, 0
    %p60 = por %p58, %p59
    %p61 = scmp.ne.s32.totalorder %s49, %s50
    %p62 = scmp.eq.s32.totalorder %s19, 1
    %p63 = por %p61, %p62
    %p65 = scmp.ne.s32.totalorder %s50, %s64
    %p66 = scmp.eq.s32.totalorder %s19, 0
    %p67 = por %p65, %p66
    %s69 = sadd.s32 %s68, 1
    %p72 = scmp.eq.s32.totalorder %s13, 1
    %p73 = scmp.ne.s32.totalorder %s68, %s70
    %p74 = scmp.eq.s32.totalorder %s13, 0
    %p75 = por %p73, %p74
    %p76 = scmp.ne.s32.totalorder %s68, %s70
    %p77 = scmp.eq.s32.totalorder %s18, 1
    %p78 = por %p76, %p77
    %p79 = scmp.ne.s32.totalorder %s70, %s71
    %p80 = scmp.eq.s32.totalorder %s18, 0
    %p81 = por %p79, %p80
    %p82 = scmp.ne.s32.totalorder %s70, %s71
    %p83 = scmp.eq.s32.totalorder %s19, 1
    %p84 = por %p82, %p83
    %p86 = scmp.ne.s32.totalorder %s71, %s85
    %p87 = scmp.eq.s32.totalorder %s19, 0
    %p88 = por %p86, %p87
    %s90 = sadd.s32 %s89, 1
    %p93 = scmp.eq.s32.totalorder %s13, 1
    %p94 = scmp.ne.s32.totalorder %s89, %s91
    %p95 = scmp.eq.s32.totalorder %s13, 0
    %p96 = por %p94, %p95
    %p97 = scmp.ne.s32.totalorder %s89, %s91
    %p98 = scmp.eq.s32.totalorder %s18, 1
    %p99 = por %p97, %p98
    %p100 = scmp.ne.s32.totalorder %s91, %s92
    %p101 = scmp.eq.s32.totalorder %s18, 0
    %p102 = por %p100, %p101
    %p103 = scmp.ne.s32.totalorder %s91, %s92
    %p104 = scmp.eq.s32.totalorder %s19, 1
    %p105 = por %p103, %p104
    %p107 = scmp.ne.s32.totalorder %s92, %s106
    %p108 = scmp.eq.s32.totalorder %s19, 0
    %p109 = por %p107, %p108
    %s111 = sadd.s32 %s110, 1
    %p114 = scmp.eq.s32.totalorder %s13, 1
    %p115 = scmp.ne.s32.totalorder %s110, %s112
    %p116 = scmp.eq.s32.totalorder %s13, 0
    %p117 = por %p115, %p116
    %p118 = scmp.ne.s32.totalorder %s110, %s112
    %p119 = scmp.eq.s32.totalorder %s18, 1
    %p120 = por %p118, %p119
    %p121 = scmp.ne.s32.totalorder %s112, %s113
    %p122 = scmp.eq.s32.totalorder %s18, 0
    %p123 = por %p121, %p122
    %p124 = scmp.ne.s32.totalorder %s112, %s113
    %p125 = scmp.eq.s32.totalorder %s19, 1
    %p126 = por %p124, %p125
    %p128 = scmp.ne.s32.totalorder %s113, %s127
    %p129 = scmp.eq.s32.totalorder %s19, 0
    %p130 = por %p128, %p129
    %s132 = sadd.s32 %s131, 1
    %p135 = scmp.eq.s32.totalorder %s13, 1
    %p136 = scmp.ne.s32.totalorder %s131, %s133
    %p137 = scmp.eq.s32.totalorder %s13, 0
    %p138 = por %p136, %p137
    %p139 = scmp.ne.s32.totalorder %s131, %s133
    %p140 = scmp.eq.s32.totalorder %s18, 1
    %p141 = por %p139, %p140
    %p142 = scmp.ne.s32.totalorder %s133, %s134
    %p143 = scmp.eq.s32.totalorder %s18, 0
    %p144 = por %p142, %p143
    %p145 = scmp.ne.s32.totalorder %s133, %s134
    %p146 = scmp.eq.s32.totalorder %s19, 1
    %p147 = por %p145, %p146
    %p149 = scmp.ne.s32.totalorder %s134, %s148
    %p150 = scmp.eq.s32.totalorder %s19, 0
    %p151 = por %p149, %p150
    %s153 = sadd.s32 %s152, 1
    %p156 = scmp.eq.s32.totalorder %s13, 1
    %p157 = scmp.ne.s32.totalorder %s152, %s154
    %p158 = scmp.eq.s32.totalorder %s13, 0
    %p159 = por %p157, %p158
    %p160 = scmp.ne.s32.totalorder %s152, %s154
    %p161 = scmp.eq.s32.totalorder %s18, 1
    %p162 = por %p160, %p161
    %p163 = scmp.ne.s32.totalorder %s154, %s155
    %p164 = scmp.eq.s32.totalorder %s18, 0
    %p165 = por %p163, %p164
    %p166 = scmp.ne.s32.totalorder %s154, %s155
    %p167 = scmp.eq.s32.totalorder %s19, 1
    %p168 = por %p166, %p167
    %p170 = scmp.ne.s32.totalorder %s155, %s169
    %p171 = scmp.eq.s32.totalorder %s19, 0
    %p172 = por %p170, %p171
    %s173 = ssub.s32 %s13, %s20
    %p174 = scmp.eq.s32.totalorder %s173, 0
    %s176 = sadd.s32 %s175, 1
    %s177 = scalar_select %p174, %s175, %s176
    %p180 = pneg %p174
    %p181 = scmp.eq.s32.totalorder %s13, 1
    %p182 = por %p180, %p181
    %p183 = scmp.ne.s32.totalorder %s175, %s178
    %p184 = scmp.eq.s32.totalorder %s13, 0
    %p185 = por %p183, %p184
    %p186 = scmp.ne.s32.totalorder %s175, %s178
    %p187 = scmp.eq.s32.totalorder %s18, 1
    %p188 = por %p186, %p187
    %p189 = scmp.ne.s32.totalorder %s178, %s179
    %p190 = scmp.eq.s32.totalorder %s18, 0
    %p191 = por %p189, %p190
    %p192 = scmp.ne.s32.totalorder %s178, %s179
    %p193 = scmp.eq.s32.totalorder %s19, 1
    %p194 = por %p192, %p193
    %p196 = scmp.ne.s32.totalorder %s179, %s195
    %p197 = scmp.eq.s32.totalorder %s19, 0
    %p198 = por %p196, %p197
    %p199 = scmp.le.s32.totalorder 1, %s13
    %p200 = scmp.lt.s32.totalorder %s13, 3
    %p201 = pnand %p199, %p200
    %p202 = pneg %p201
    // Predicated region
    $region9: #{repvgg_plux_block.1} parent=5 // pred_check
      _
    $region10: #{repvgg_plux_block.1} parent=5 // pred_check_branch
      %204 = sbr.rel (%p201) target = $region12
    $region11: #{repvgg_plux_block.1} parent=5 // pred_region
      %s205 = ssub.s32 %s13, 1
      // Predicated region
      $region13: #{repvgg_plux_block.1} parent=11 // pred_check
        %p206 = pneg %p60
      $region14: #{repvgg_plux_block.1} parent=11 // pred_check_branch
        %208 = sbr.rel (%p206) target = $region16
      $region15: #{repvgg_plux_block.1} parent=11 // pred_region
        _
      $region16: #{repvgg_plux_block.1} parent=11 // pred_fallthru
        _
      // Predicated region
      $region17: #{repvgg_plux_block.1} parent=11 // pred_check
        %p209 = pneg %p81
      $region18: #{repvgg_plux_block.1} parent=11 // pred_check_branch
        %211 = sbr.rel (%p209) target = $region20
      $region19: #{repvgg_plux_block.1} parent=11 // pred_region
        _
      $region20: #{repvgg_plux_block.1} parent=11 // pred_fallthru
        _
      // Predicated region
      $region21: #{repvgg_plux_block.1} parent=11 // pred_check
        %p212 = pneg %p102
      $region22: #{repvgg_plux_block.1} parent=11 // pred_check_branch
        %214 = sbr.rel (%p212) target = $region24
      $region23: #{repvgg_plux_block.1} parent=11 // pred_region
        _
      $region24: #{repvgg_plux_block.1} parent=11 // pred_fallthru
        _
      // Predicated region
      $region25: #{repvgg_plux_block.1} parent=11 // pred_check
        %p215 = pneg %p123
      $region26: #{repvgg_plux_block.1} parent=11 // pred_check_branch
        %217 = sbr.rel (%p215) target = $region28
      $region27: #{repvgg_plux_block.1} parent=11 // pred_region
        _
      $region28: #{repvgg_plux_block.1} parent=11 // pred_fallthru
        _
      // Predicated region
      $region29: #{repvgg_plux_block.1} parent=11 // pred_check
        %p218 = pneg %p144
      $region30: #{repvgg_plux_block.1} parent=11 // pred_check_branch
        %220 = sbr.rel (%p218) target = $region32
      $region31: #{repvgg_plux_block.1} parent=11 // pred_region
        _
      $region32: #{repvgg_plux_block.1} parent=11 // pred_fallthru
        _
      // Predicated region
      $region33: #{repvgg_plux_block.1} parent=11 // pred_check
        %p221 = pneg %p165
      $region34: #{repvgg_plux_block.1} parent=11 // pred_check_branch
        %223 = sbr.rel (%p221) target = $region36
      $region35: #{repvgg_plux_block.1} parent=11 // pred_region
        _
      $region36: #{repvgg_plux_block.1} parent=11 // pred_fallthru
        _
    $region12: #{repvgg_plux_block.1} parent=5 // pred_fallthru
      _
    %p224 = scmp.lt.s32.totalorder %s13, 2
    // Predicated region
    $region37: #{repvgg_plux_block.1} parent=5 // pred_check
      %p225 = pneg %p224
    $region38: #{repvgg_plux_block.1} parent=5 // pred_check_branch
      %227 = sbr.rel (%p225) target = $region40
    $region39: #{repvgg_plux_block.1} parent=5 // pred_region
      // Predicated region
      $region41: #{repvgg_plux_block.1} parent=39 // pred_check
        %p228 = pneg %p33
      $region42: #{repvgg_plux_block.1} parent=39 // pred_check_branch
        %230 = sbr.rel (%p228) target = $region44
      $region43: #{repvgg_plux_block.1} parent=39 // pred_region
        %p231 = scmp.lt.s32.totalorder %s13, 1
        %s232 = scalar_select %p231, %s13, 1
        %s233 = smul.addr %s232, 54
        %s234 = smul.addr %s233, 4
        %s235 = scalar_lea.vmem %s0, %s234
      $region44: #{repvgg_plux_block.1} parent=39 // pred_fallthru
        _
    $region40: #{repvgg_plux_block.1} parent=5 // pred_fallthru
      _
    %p236 = scmp.le.s32.totalorder 1, %s13
    %p237 = scmp.lt.s32.totalorder %s13, 3
    %p238 = pnand %p236, %p237
    %p239 = pneg %p238
    // Predicated region
    $region45: #{repvgg_plux_block.1} parent=5 // pred_check
      _
    $region46: #{repvgg_plux_block.1} parent=5 // pred_check_branch
      %241 = sbr.rel (%p238) target = $region48
    $region47: #{repvgg_plux_block.1} parent=5 // pred_region
      %s242 = ssub.s32 %s13, 1
      %p243 = scmp.lt.s32.totalorder %s18, 1
      %s244 = scalar_select %p243, %s18, 1
      %s245 = smul.addr %s244, 54
      %s246 = smul.addr %s245, 4
      %s247 = scalar_lea.vmem %s0, %s246
      %p248 = pneg %p39
      %p249 = pneg %p36
      %p250 = pneg %p60
      %p251 = pneg %p57
      %p252 = pneg %p81
      %p253 = pneg %p78
      %p254 = pneg %p102
      %p255 = pneg %p99
      %p256 = pneg %p123
      %p257 = pneg %p120
      %p258 = pneg %p144
      %p259 = pneg %p141
      %p260 = pneg %p165
      %p261 = pneg %p162
      %p262 = pneg %p191
      %p263 = pneg %p188
      %p264 = scmp.lt.s32.totalorder %s18, 1
      %s265 = scalar_select %p264, %s18, 1
      %s266 = smul.addr %s265, 32
      %s267 = smul.addr %s266, 4
      %s268 = scalar_lea.vmem %s7, %s267
      %p269 = scmp.lt.s32.totalorder %s18, 1
      %s270 = scalar_select %p269, %s18, 1
      %s271 = smul.addr %s270, 54
      %s272 = smul.addr %s271, 4
      %s273 = scalar_lea.vmem %s0, %s272
      %p274 = scmp.lt.s32.totalorder %s18, 1
      %s275 = scalar_select %p274, %s18, 1
      %s276 = smul.addr %s275, 32
      %s277 = smul.addr %s276, 4
      %s278 = scalar_lea.vmem %s7, %s277
      %v280 = vld [vmem:[%s273] sm:$0xf]
      %v281 = vld [vmem:[%s273 + $0x4] sm:$0xf]
      %v282 = vld [vmem:[%s273 + $0x8] sm:$0x1]
      %v283 = vld [vmem:[%s273 + $0xc] sm:$0xf]
      %v284 = vld [vmem:[%s273 + $0x10] sm:$0xf]
      %v285 = vld [vmem:[%s273 + $0x14] sm:$0x1]
      %v286 = vld [vmem:[%s273 + $0x18] sm:$0xf]
      %v287 = vld [vmem:[%s273 + $0x1c] sm:$0xf]
      %v288 = vld [vmem:[%s273 + $0x20] sm:$0x1]
      %v289 = vld [vmem:[%s273 + $0x24] sm:$0xf]
      %v290 = vld [vmem:[%s273 + $0x28] sm:$0xf]
      %v291 = vld [vmem:[%s273 + $0x2c] sm:$0x1]
      %v292 = vld [vmem:[%s273 + $0x30] sm:$0xf]
      %v293 = vld [vmem:[%s273 + $0x34] sm:$0xf]
      %v294 = vld [vmem:[%s273 + $0x38] sm:$0x1]
      %v295 = vld [vmem:[%s273 + $0x3c] sm:$0xf]
      %v296 = vld [vmem:[%s273 + $0x40] sm:$0xf]
      %v297 = vld [vmem:[%s273 + $0x44] sm:$0x1]
      %v298 = vld [vmem:[%s273 + $0x48] sm:$0xf]
      %v299 = vld [vmem:[%s273 + $0x4c] sm:$0xf]
      %v300 = vld [vmem:[%s273 + $0x50] sm:$0x1]
      %v301 = vld [vmem:[%s273 + $0x54] sm:$0xf]
      %v302 = vld [vmem:[%s273 + $0x58] sm:$0xf]
      %v303 = vld [vmem:[%s273 + $0x5c] sm:$0x1]
      %v304 = vld [vmem:[%s273 + $0x60] sm:$0xf]
      %v305 = vld [vmem:[%s273 + $0x64] sm:$0xf]
      %v306 = vld [vmem:[%s273 + $0x68] sm:$0x1]
      %v307 = vld [vmem:[%s273 + $0x6c] sm:$0xf]
      %v308 = vld [vmem:[%s273 + $0x70] sm:$0xf]
      %v309 = vld [vmem:[%s273 + $0x74] sm:$0x1]
      %v310 = vld [vmem:[%s273 + $0x78] sm:$0xf]
      %v311 = vld [vmem:[%s273 + $0x7c] sm:$0xf]
      %v312 = vld [vmem:[%s273 + $0x80] sm:$0x1]
      %v313 = vld [vmem:[%s273 + $0x84] sm:$0xf]
      %v314 = vld [vmem:[%s273 + $0x88] sm:$0xf]
      %v315 = vld [vmem:[%s273 + $0x8c] sm:$0x1]
      %v316 = vld [vmem:[%s273 + $0x90] sm:$0xf]
      %v317 = vld [vmem:[%s273 + $0x94] sm:$0xf]
      %v318 = vld [vmem:[%s273 + $0x98] sm:$0x1]
      %v319 = vld [vmem:[%s273 + $0x9c] sm:$0xf]
      %v320 = vld [vmem:[%s273 + $0xa0] sm:$0xf]
      %v321 = vld [vmem:[%s273 + $0xa4] sm:$0x1]
      %v322 = vld [vmem:[%s273 + $0xa8] sm:$0xf]
      %v323 = vld [vmem:[%s273 + $0xac] sm:$0xf]
      %v324 = vld [vmem:[%s273 + $0xb0] sm:$0x1]
      %v325 = vld [vmem:[%s273 + $0xb4] sm:$0xf]
      %v326 = vld [vmem:[%s273 + $0xb8] sm:$0xf]
      %v327 = vld [vmem:[%s273 + $0xbc] sm:$0x1]
      %v328 = vld [vmem:[%s273 + $0xc0] sm:$0xf]
      %v329 = vld [vmem:[%s273 + $0xc4] sm:$0xf]
      %v330 = vld [vmem:[%s273 + $0xc8] sm:$0x1]
      %v331 = vld [vmem:[%s273 + $0xcc] sm:$0xf]
      %v332 = vld [vmem:[%s273 + $0xd0] sm:$0xf]
      %v333 = vld [vmem:[%s273 + $0xd4] sm:$0x1]
      %v334 = vld [vmem:[%s1] sm:$0xf]
      %vm335 = vsmask.f32 3328
      %vm336 = vsmask.f32 7440
      %vm337 = vmor %vm335, %vm336
      %v339 = vshrl.u32 %v280, 16
      %v341 = vrot.slane %v339, 4
      %v342 = vshll.u32 %v280, 16
      %v344 = vrot.slane %v342, 5
      %v345 = vor.u32 %v341, %v344
      %v346 = vrot.slane %v345, 4
      %v348 = vshll.u32 %v281, 16
      %v350 = vrot.slane %v348, 5
      %v351 = vsel %vm337, %v346, %v350
      %v352 = vshrl.u32 %v281, 16
      %v354 = vrot.slane %v352, 4
      %v355 = vor.u32 %v354, %v350
      %v356 = vrot.slane %v355, 4
      %v358 = vshll.u32 %v282, 16
      %v360 = vrot.slane %v358, 5
      %v361 = vsel %vm337, %v356, %v360
      %v363 = vshrl.u32 %v283, 16
      %v365 = vrot.slane %v363, 4
      %v366 = vshll.u32 %v283, 16
      %v368 = vrot.slane %v366, 5
      %v369 = vor.u32 %v365, %v368
      %v370 = vrot.slane %v369, 4
      %v372 = vshll.u32 %v284, 16
      %v374 = vrot.slane %v372, 5
      %v375 = vsel %vm337, %v370, %v374
      %v376 = vshrl.u32 %v284, 16
      %v378 = vrot.slane %v376, 4
      %v379 = vor.u32 %v378, %v374
      %v380 = vrot.slane %v379, 4
      %v382 = vshll.u32 %v285, 16
      %v384 = vrot.slane %v382, 5
      %v385 = vsel %vm337, %v380, %v384
      %v387 = vshrl.u32 %v286, 16
      %v389 = vrot.slane %v387, 4
      %v390 = vshll.u32 %v286, 16
      %v392 = vrot.slane %v390, 5
      %v393 = vor.u32 %v389, %v392
      %v394 = vrot.slane %v393, 4
      %v396 = vshll.u32 %v287, 16
      %v398 = vrot.slane %v396, 5
      %v399 = vsel %vm337, %v394, %v398
      %v400 = vshrl.u32 %v287, 16
      %v402 = vrot.slane %v400, 4
      %v403 = vor.u32 %v402, %v398
      %v404 = vrot.slane %v403, 4
      %v406 = vshll.u32 %v288, 16
      %v408 = vrot.slane %v406, 5
      %v409 = vsel %vm337, %v404, %v408
      %v411 = vshrl.u32 %v289, 16
      %v413 = vrot.slane %v411, 4
      %v414 = vshll.u32 %v289, 16
      %v416 = vrot.slane %v414, 5
      %v417 = vor.u32 %v413, %v416
      %v418 = vrot.slane %v417, 4
      %v420 = vshll.u32 %v290, 16
      %v422 = vrot.slane %v420, 5
      %v423 = vsel %vm337, %v418, %v422
      %v424 = vshrl.u32 %v290, 16
      %v426 = vrot.slane %v424, 4
      %v427 = vor.u32 %v426, %v422
      %v428 = vrot.slane %v427, 4
      %v430 = vshll.u32 %v291, 16
      %v432 = vrot.slane %v430, 5
      %v433 = vsel %vm337, %v428, %v432
      %v435 = vshrl.u32 %v292, 16
      %v437 = vrot.slane %v435, 4
      %v438 = vshll.u32 %v292, 16
      %v440 = vrot.slane %v438, 5
      %v441 = vor.u32 %v437, %v440
      %v442 = vrot.slane %v441, 4
      %v444 = vshll.u32 %v293, 16
      %v446 = vrot.slane %v444, 5
      %v447 = vsel %vm337, %v442, %v446
      %v448 = vshrl.u32 %v293, 16
      %v450 = vrot.slane %v448, 4
      %v451 = vor.u32 %v450, %v446
      %v452 = vrot.slane %v451, 4
      %v454 = vshll.u32 %v294, 16
      %v456 = vrot.slane %v454, 5
      %v457 = vsel %vm337, %v452, %v456
      %v459 = vshrl.u32 %v295, 16
      %v461 = vrot.slane %v459, 4
      %v462 = vshll.u32 %v295, 16
      %v464 = vrot.slane %v462, 5
      %v465 = vor.u32 %v461, %v464
      %v466 = vrot.slane %v465, 4
      %v468 = vshll.u32 %v296, 16
      %v470 = vrot.slane %v468, 5
      %v471 = vsel %vm337, %v466, %v470
      %v472 = vshrl.u32 %v296, 16
      %v474 = vrot.slane %v472, 4
      %v475 = vor.u32 %v474, %v470
      %v476 = vrot.slane %v475, 4
      %v478 = vshll.u32 %v297, 16
      %v480 = vrot.slane %v478, 5
      %v481 = vsel %vm337, %v476, %v480
      %v483 = vshrl.u32 %v298, 16
      %v485 = vrot.slane %v483, 4
      %v486 = vshll.u32 %v298, 16
      %v488 = vrot.slane %v486, 5
      %v489 = vor.u32 %v485, %v488
      %v490 = vrot.slane %v489, 4
      %v492 = vshll.u32 %v299, 16
      %v494 = vrot.slane %v492, 5
      %v495 = vsel %vm337, %v490, %v494
      %v496 = vshrl.u32 %v299, 16
      %v498 = vrot.slane %v496, 4
      %v499 = vor.u32 %v498, %v494
      %v500 = vrot.slane %v499, 4
      %v502 = vshll.u32 %v300, 16
      %v504 = vrot.slane %v502, 5
      %v505 = vsel %vm337, %v500, %v504
      %v507 = vshrl.u32 %v301, 16
      %v509 = vrot.slane %v507, 4
      %v510 = vshll.u32 %v301, 16
      %v512 = vrot.slane %v510, 5
      %v513 = vor.u32 %v509, %v512
      %v514 = vrot.slane %v513, 4
      %v516 = vshll.u32 %v302, 16
      %v518 = vrot.slane %v516, 5
      %v519 = vsel %vm337, %v514, %v518
      %v520 = vshrl.u32 %v302, 16
      %v522 = vrot.slane %v520, 4
      %v523 = vor.u32 %v522, %v518
      %v524 = vrot.slane %v523, 4
      %v526 = vshll.u32 %v303, 16
      %v528 = vrot.slane %v526, 5
      %v529 = vsel %vm337, %v524, %v528
      %v531 = vshrl.u32 %v304, 16
      %v533 = vrot.slane %v531, 4
      %v534 = vshll.u32 %v304, 16
      %v536 = vrot.slane %v534, 5
      %v537 = vor.u32 %v533, %v536
      %v538 = vrot.slane %v537, 4
      %v540 = vshll.u32 %v305, 16
      %v542 = vrot.slane %v540, 5
      %v543 = vsel %vm337, %v538, %v542
      %v544 = vshrl.u32 %v305, 16
      %v546 = vrot.slane %v544, 4
      %v547 = vor.u32 %v546, %v542
      %v548 = vrot.slane %v547, 4
      %v550 = vshll.u32 %v306, 16
      %v552 = vrot.slane %v550, 5
      %v553 = vsel %vm337, %v548, %v552
      %v555 = vshrl.u32 %v307, 16
      %v557 = vrot.slane %v555, 4
      %v558 = vshll.u32 %v307, 16
      %v560 = vrot.slane %v558, 5
      %v561 = vor.u32 %v557, %v560
      %v562 = vrot.slane %v561, 4
      %v564 = vshll.u32 %v308, 16
      %v566 = vrot.slane %v564, 5
      %v567 = vsel %vm337, %v562, %v566
      %v568 = vshrl.u32 %v308, 16
      %v570 = vrot.slane %v568, 4
      %v571 = vor.u32 %v570, %v566
      %v572 = vrot.slane %v571, 4
      %v574 = vshll.u32 %v309, 16
      %v576 = vrot.slane %v574, 5
      %v577 = vsel %vm337, %v572, %v576
      %v579 = vshrl.u32 %v310, 16
      %v581 = vrot.slane %v579, 4
      %v582 = vshll.u32 %v310, 16
      %v584 = vrot.slane %v582, 5
      %v585 = vor.u32 %v581, %v584
      %v586 = vrot.slane %v585, 4
      %v588 = vshll.u32 %v311, 16
      %v590 = vrot.slane %v588, 5
      %v591 = vsel %vm337, %v586, %v590
      %v592 = vshrl.u32 %v311, 16
      %v594 = vrot.slane %v592, 4
      %v595 = vor.u32 %v594, %v590
      %v596 = vrot.slane %v595, 4
      %v598 = vshll.u32 %v312, 16
      %v600 = vrot.slane %v598, 5
      %v601 = vsel %vm337, %v596, %v600
      %v603 = vshrl.u32 %v313, 16
      %v605 = vrot.slane %v603, 4
      %v606 = vshll.u32 %v313, 16
      %v608 = vrot.slane %v606, 5
      %v609 = vor.u32 %v605, %v608
      %v610 = vrot.slane %v609, 4
      %v612 = vshll.u32 %v314, 16
      %v614 = vrot.slane %v612, 5
      %v615 = vsel %vm337, %v610, %v614
      %v616 = vshrl.u32 %v314, 16
      %v618 = vrot.slane %v616, 4
      %v619 = vor.u32 %v618, %v614
      %v620 = vrot.slane %v619, 4
      %v622 = vshll.u32 %v315, 16
      %v624 = vrot.slane %v622, 5
      %v625 = vsel %vm337, %v620, %v624
      %v627 = vshrl.u32 %v316, 16
      %v629 = vrot.slane %v627, 4
      %v630 = vshll.u32 %v316, 16
      %v632 = vrot.slane %v630, 5
      %v633 = vor.u32 %v629, %v632
      %v634 = vrot.slane %v633, 4
      %v636 = vshll.u32 %v317, 16
      %v638 = vrot.slane %v636, 5
      %v639 = vsel %vm337, %v634, %v638
      %v640 = vshrl.u32 %v317, 16
      %v642 = vrot.slane %v640, 4
      %v643 = vor.u32 %v642, %v638
      %v644 = vrot.slane %v643, 4
      %v646 = vshll.u32 %v318, 16
      %v648 = vrot.slane %v646, 5
      %v649 = vsel %vm337, %v644, %v648
      %v651 = vshrl.u32 %v319, 16
      %v653 = vrot.slane %v651, 4
      %v654 = vshll.u32 %v319, 16
      %v656 = vrot.slane %v654, 5
      %v657 = vor.u32 %v653, %v656
      %v658 = vrot.slane %v657, 4
      %v660 = vshll.u32 %v320, 16
      %v662 = vrot.slane %v660, 5
      %v663 = vsel %vm337, %v658, %v662
      %v664 = vshrl.u32 %v320, 16
      %v666 = vrot.slane %v664, 4
      %v667 = vor.u32 %v666, %v662
      %v668 = vrot.slane %v667, 4
      %v670 = vshll.u32 %v321, 16
      %v672 = vrot.slane %v670, 5
      %v673 = vsel %vm337, %v668, %v672
      %v675 = vshrl.u32 %v322, 16
      %v677 = vrot.slane %v675, 4
      %v678 = vshll.u32 %v322, 16
      %v680 = vrot.slane %v678, 5
      %v681 = vor.u32 %v677, %v680
      %v682 = vrot.slane %v681, 4
      %v684 = vshll.u32 %v323, 16
      %v686 = vrot.slane %v684, 5
      %v687 = vsel %vm337, %v682, %v686
      %v688 = vshrl.u32 %v323, 16
      %v690 = vrot.slane %v688, 4
      %v691 = vor.u32 %v690, %v686
      %v692 = vrot.slane %v691, 4
      %v694 = vshll.u32 %v324, 16
      %v696 = vrot.slane %v694, 5
      %v697 = vsel %vm337, %v692, %v696
      %v699 = vshrl.u32 %v325, 16
      %v701 = vrot.slane %v699, 4
      %v702 = vshll.u32 %v325, 16
      %v704 = vrot.slane %v702, 5
      %v705 = vor.u32 %v701, %v704
      %v706 = vrot.slane %v705, 4
      %v708 = vshll.u32 %v326, 16
      %v710 = vrot.slane %v708, 5
      %v711 = vsel %vm337, %v706, %v710
      %v712 = vshrl.u32 %v326, 16
      %v714 = vrot.slane %v712, 4
      %v715 = vor.u32 %v714, %v710
      %v716 = vrot.slane %v715, 4
      %v718 = vshll.u32 %v327, 16
      %v720 = vrot.slane %v718, 5
      %v721 = vsel %vm337, %v716, %v720
      %s722 = scalar_lea.vmem %s1, 4
      %v723 = vld [vmem:[%s722] sm:$0xf]
      %v724 = vunpack.c.l.b16 %v351
      %v725 = vunpack.c.l.b16 %v361
      %v726 = vunpack.c.l.b16 %v375
      %v727 = vunpack.c.l.b16 %v385
      %v728 = vunpack.c.l.b16 %v399
      %v729 = vunpack.c.l.b16 %v409
      %v730 = vunpack.c.l.b16 %v423
      %v731 = vunpack.c.l.b16 %v433
      %v732 = vunpack.c.l.b16 %v447
      %v733 = vunpack.c.l.b16 %v457
      %v734 = vunpack.c.l.b16 %v471
      %v735 = vunpack.c.l.b16 %v481
      %v736 = vunpack.c.l.b16 %v495
      %v737 = vunpack.c.l.b16 %v505
      %v738 = vunpack.c.l.b16 %v519
      %v739 = vunpack.c.l.b16 %v529
      %v740 = vunpack.c.l.b16 %v543
      %v741 = vunpack.c.l.b16 %v553
      %v742 = vunpack.c.l.b16 %v567
      %v743 = vunpack.c.l.b16 %v577
      %v744 = vunpack.c.l.b16 %v591
      %v745 = vunpack.c.l.b16 %v601
      %v746 = vunpack.c.l.b16 %v615
      %v747 = vunpack.c.l.b16 %v625
      %v748 = vunpack.c.l.b16 %v639
      %v749 = vunpack.c.l.b16 %v649
      %v750 = vunpack.c.l.b16 %v663
      %v751 = vunpack.c.l.b16 %v673
      %v752 = vunpack.c.l.b16 %v687
      %v753 = vunpack.c.l.b16 %v697
      %v754 = vunpack.c.l.b16 %v711
      %v755 = vunpack.c.l.b16 %v721
      %v756 = vpack.c.b16 %v725, %v724
      %v757 = vpack.c.b16 %v727, %v726
      %v758 = vpack.c.b16 %v729, %v728
      %v759 = vpack.c.b16 %v731, %v730
      %v760 = vpack.c.b16 %v733, %v732
      %v761 = vpack.c.b16 %v735, %v734
      %v762 = vpack.c.b16 %v737, %v736
      %v763 = vpack.c.b16 %v739, %v738
      %v764 = vpack.c.b16 %v741, %v740
      %v765 = vpack.c.b16 %v743, %v742
      %v766 = vpack.c.b16 %v745, %v744
      %v767 = vpack.c.b16 %v747, %v746
      %v768 = vpack.c.b16 %v749, %v748
      %v769 = vpack.c.b16 %v751, %v750
      %v770 = vpack.c.b16 %v753, %v752
      %v771 = vpack.c.b16 %v755, %v754
      %vm772 = vcmask 64512
      %v774 = vsel %vm772, %v756, 0
      %v777 = vsel %vm772, %v757, 0
      %v780 = vsel %vm772, %v758, 0
      %v783 = vsel %vm772, %v759, 0
      %v786 = vsel %vm772, %v760, 0
      %v789 = vsel %vm772, %v761, 0
      %v792 = vsel %vm772, %v762, 0
      %v795 = vsel %vm772, %v763, 0
      %v798 = vsel %vm772, %v764, 0
      %v801 = vsel %vm772, %v765, 0
      %v804 = vsel %vm772, %v766, 0
      %v807 = vsel %vm772, %v767, 0
      %v810 = vsel %vm772, %v768, 0
      %v813 = vsel %vm772, %v769, 0
      %v816 = vsel %vm772, %v770, 0
      %v819 = vsel %vm772, %v771, 0
      %vm821 = vcmask 1043456
      %v823 = vsel %vm821, %v723, 0
      %825 = vmatprep.subr.bf16.mxu0 0
      %826 = vmatpush1.bf16.msra.mxu0 %v823
      %827 = vmatprep.subr.bf16.mxu0 0
      %828 = vmatpush1.bf16.msra.mxu0 0
      %829 = vmatprep.subr.bf16.mxu0 0
      %830 = vmatpush1.bf16.msra.mxu0 0
      %831 = vmatprep.subr.bf16.mxu0 0
      %832 = vmatpush1.bf16.msra.mxu0 0
      %833 = vmatprep.subr.bf16.mxu0 0
      %834 = vmatpush1.bf16.msra.mxu0 0
      %835 = vmatprep.subr.bf16.mxu0 0
      %836 = vmatpush1.bf16.msra.mxu0 0
      %837 = vmatprep.subr.bf16.mxu0 0
      %838 = vmatpush1.bf16.msra.mxu0 0
      %839 = vmatprep.subr.bf16.mxu0 0
      %840 = vmatpush1.bf16.msra.mxu0 0
      %841 = vmatprep.subr.bf16.mxu0 0
      %842 = vmatpush1.bf16.msra.mxu0 0
      %843 = vmatprep.subr.bf16.mxu0 0
      %844 = vmatpush1.bf16.msra.mxu0 0
      %845 = vmatprep.subr.bf16.mxu0 0
      %846 = vmatpush1.bf16.msra.mxu0 0
      %847 = vmatprep.subr.bf16.mxu0 0
      %848 = vmatpush1.bf16.msra.mxu0 0
      %849 = vmatprep.subr.bf16.mxu0 0
      %850 = vmatpush1.bf16.msra.mxu0 0
      %851 = vmatprep.subr.bf16.mxu0 0
      %852 = vmatpush1.bf16.msra.mxu0 0
      %853 = vmatprep.subr.bf16.mxu0 0
      %854 = vmatpush1.bf16.msra.mxu0 0
      %855 = vmatprep.subr.bf16.mxu0 0
      %856 = vmatpush1.bf16.msra.mxu0 0
      %857 = vmatprep.mubr.bf16.mxu0 0
      %858 = vmatmul.mubr.bf16.gmra.mrb[0].mxu0 %v774
      %v859 = vpop.f32.mrb[0].mxu0
      %v860 = vadd.f32 0.0, %v859
      %v861 = vpop.f32.mrb[0].mxu0
      %v862 = vpop.f32.mrb[0].mxu0
      %v863 = vadd.f32 0.0, %v862
      %v864 = vpop.f32.mrb[0].mxu0
      %865 = vmatprep.mubr.bf16.mxu0 0
      %866 = vmatmul.mubr.bf16.gmra.mrb[0].mxu0 %v777
      %v867 = vpop.f32.mrb[0].mxu0
      %v868 = vadd.f32 0.0, %v867
      %v869 = vpop.f32.mrb[0].mxu0
      %v870 = vpop.f32.mrb[0].mxu0
      %v871 = vadd.f32 0.0, %v870
      %v872 = vpop.f32.mrb[0].mxu0
      %873 = vmatprep.mubr.bf16.mxu0 0
      %874 = vmatmul.mubr.bf16.gmra.mrb[0].mxu0 %v780
      %v875 = vpop.f32.mrb[0].mxu0
      %v876 = vadd.f32 0.0, %v875
      %v877 = vpop.f32.mrb[0].mxu0
      %v878 = vpop.f32.mrb[0].mxu0
      %v879 = vadd.f32 0.0, %v878
      %v880 = vpop.f32.mrb[0].mxu0
      %881 = vmatprep.mubr.bf16.mxu0 0
      %882 = vmatmul.mubr.bf16.gmra.mrb[0].mxu0 %v783
      %v883 = vpop.f32.mrb[0].mxu0
      %v884 = vadd.f32 0.0, %v883
      %v885 = vpop.f32.mrb[0].mxu0
      %v886 = vpop.f32.mrb[0].mxu0
      %v887 = vadd.f32 0.0, %v886
      %v888 = vpop.f32.mrb[0].mxu0
      %889 = vmatprep.mubr.bf16.mxu0 0
      %890 = vmatmul.mubr.bf16.gmra.mrb[0].mxu0 %v786
      %v891 = vpop.f32.mrb[0].mxu0
      %v892 = vadd.f32 0.0, %v891
      %v893 = vpop.f32.mrb[0].mxu0
      %v894 = vpop.f32.mrb[0].mxu0
      %v895 = vadd.f32 0.0, %v894
      %v896 = vpop.f32.mrb[0].mxu0
      %897 = vmatprep.mubr.bf16.mxu0 0
      %898 = vmatmul.mubr.bf16.gmra.mrb[0].mxu0 %v789
      %v899 = vpop.f32.mrb[0].mxu0
      %v900 = vadd.f32 0.0, %v899
      %v901 = vpop.f32.mrb[0].mxu0
      %v902 = vpop.f32.mrb[0].mxu0
      %v903 = vadd.f32 0.0, %v902
      %v904 = vpop.f32.mrb[0].mxu0
      %905 = vmatprep.mubr.bf16.mxu0 0
      %906 = vmatmul.mubr.bf16.gmra.mrb[0].mxu0 %v792
      %v907 = vpop.f32.mrb[0].mxu0
      %v908 = vadd.f32 0.0, %v907
      %v909 = vpop.f32.mrb[0].mxu0
      %v910 = vpop.f32.mrb[0].mxu0
      %v911 = vadd.f32 0.0, %v910
      %v912 = vpop.f32.mrb[0].mxu0
      %913 = vmatprep.mubr.bf16.mxu0 0
      %914 = vmatmul.mubr.bf16.gmra.mrb[0].mxu0 %v795
      %v915 = vpop.f32.mrb[0].mxu0
      %v916 = vadd.f32 0.0, %v915
      %v917 = vpop.f32.mrb[0].mxu0
      %v918 = vpop.f32.mrb[0].mxu0
      %v919 = vadd.f32 0.0, %v918
      %v920 = vpop.f32.mrb[0].mxu0
      %921 = vmatprep.mubr.bf16.mxu0 0
      %922 = vmatmul.mubr.bf16.gmra.mrb[0].mxu0 %v798
      %v923 = vpop.f32.mrb[0].mxu0
      %v924 = vadd.f32 0.0, %v923
      %v925 = vpop.f32.mrb[0].mxu0
      %v926 = vpop.f32.mrb[0].mxu0
      %v927 = vadd.f32 0.0, %v926
      %v928 = vpop.f32.mrb[0].mxu0
      %929 = vmatprep.mubr.bf16.mxu0 0
      %930 = vmatmul.mubr.bf16.gmra.mrb[0].mxu0 %v801
      %v931 = vpop.f32.mrb[0].mxu0
      %v932 = vadd.f32 0.0, %v931
      %v933 = vpop.f32.mrb[0].mxu0
      %v934 = vpop.f32.mrb[0].mxu0
      %v935 = vadd.f32 0.0, %v934
      %v936 = vpop.f32.mrb[0].mxu0
      %937 = vmatprep.mubr.bf16.mxu0 0
      %938 = vmatmul.mubr.bf16.gmra.mrb[0].mxu0 %v804
      %v939 = vpop.f32.mrb[0].mxu0
      %v940 = vadd.f32 0.0, %v939
      %v941 = vpop.f32.mrb[0].mxu0
      %v942 = vpop.f32.mrb[0].mxu0
      %v943 = vadd.f32 0.0, %v942
      %v944 = vpop.f32.mrb[0].mxu0
      %945 = vmatprep.mubr.bf16.mxu0 0
      %946 = vmatmul.mubr.bf16.gmra.mrb[0].mxu0 %v807
      %v947 = vpop.f32.mrb[0].mxu0
      %v948 = vadd.f32 0.0, %v947
      %v949 = vpop.f32.mrb[0].mxu0
      %v950 = vpop.f32.mrb[0].mxu0
      %v951 = vadd.f32 0.0, %v950
      %v952 = vpop.f32.mrb[0].mxu0
      %953 = vmatprep.mubr.bf16.mxu0 0
      %954 = vmatmul.mubr.bf16.gmra.mrb[0].mxu0 %v810
      %v955 = vpop.f32.mrb[0].mxu0
      %v956 = vadd.f32 0.0, %v955
      %v957 = vpop.f32.mrb[0].mxu0
      %v958 = vpop.f32.mrb[0].mxu0
      %v959 = vadd.f32 0.0, %v958
      %v960 = vpop.f32.mrb[0].mxu0
      %961 = vmatprep.mubr.bf16.mxu0 0
      %962 = vmatmul.mubr.bf16.gmra.mrb[0].mxu0 %v813
      %v963 = vpop.f32.mrb[0].mxu0
      %v964 = vadd.f32 0.0, %v963
      %v965 = vpop.f32.mrb[0].mxu0
      %v966 = vpop.f32.mrb[0].mxu0
      %v967 = vadd.f32 0.0, %v966
      %v968 = vpop.f32.mrb[0].mxu0
      %969 = vmatprep.mubr.bf16.mxu0 0
      %970 = vmatmul.mubr.bf16.gmra.mrb[0].mxu0 %v816
      %v971 = vpop.f32.mrb[0].mxu0
      %v972 = vadd.f32 0.0, %v971
      %v973 = vpop.f32.mrb[0].mxu0
      %v974 = vpop.f32.mrb[0].mxu0
      %v975 = vadd.f32 0.0, %v974
      %v976 = vpop.f32.mrb[0].mxu0
      %977 = vmatprep.mubr.bf16.mxu0 0
      %978 = vmatmul.mubr.bf16.gmra.mrb[0].mxu0 %v819
      %v979 = vpop.f32.mrb[0].mxu0
      %v980 = vadd.f32 0.0, %v979
      %v981 = vpop.f32.mrb[0].mxu0
      %v982 = vpop.f32.mrb[0].mxu0
      %v983 = vadd.f32 0.0, %v982
      %v984 = vpop.f32.mrb[0].mxu0
      %985 = vdwg.mxu0
      %v1018 = vunpack.c.l.b16 %v280
      %v1019 = vunpack.c.l.b16 %v281
      %v1020 = vunpack.c.l.b16 %v283
      %v1021 = vunpack.c.l.b16 %v284
      %v1022 = vunpack.c.l.b16 %v286
      %v1023 = vunpack.c.l.b16 %v287
      %v1024 = vunpack.c.l.b16 %v289
      %v1025 = vunpack.c.l.b16 %v290
      %v1026 = vunpack.c.l.b16 %v292
      %v1027 = vunpack.c.l.b16 %v293
      %v1028 = vunpack.c.l.b16 %v295
      %v1029 = vunpack.c.l.b16 %v296
      %v1030 = vunpack.c.l.b16 %v298
      %v1031 = vunpack.c.l.b16 %v299
      %v1032 = vunpack.c.l.b16 %v301
      %v1033 = vunpack.c.l.b16 %v302
      %v1034 = vunpack.c.l.b16 %v304
      %v1035 = vunpack.c.l.b16 %v305
      %v1036 = vunpack.c.l.b16 %v307
      %v1037 = vunpack.c.l.b16 %v308
      %v1038 = vunpack.c.l.b16 %v310
      %v1039 = vunpack.c.l.b16 %v311
      %v1040 = vunpack.c.l.b16 %v313
      %v1041 = vunpack.c.l.b16 %v314
      %v1042 = vunpack.c.l.b16 %v316
      %v1043 = vunpack.c.l.b16 %v317
      %v1044 = vunpack.c.l.b16 %v319
      %v1045 = vunpack.c.l.b16 %v320
      %v1046 = vunpack.c.l.b16 %v322
      %v1047 = vunpack.c.l.b16 %v323
      %v1048 = vunpack.c.l.b16 %v325
      %v1049 = vunpack.c.l.b16 %v326
      %v1050 = vpack.c.b16 %v1019, %v1018
      %v1051 = vpack.c.b16 %v1021, %v1020
      %v1052 = vpack.c.b16 %v1023, %v1022
      %v1053 = vpack.c.b16 %v1025, %v1024
      %v1054 = vpack.c.b16 %v1027, %v1026
      %v1055 = vpack.c.b16 %v1029, %v1028
      %v1056 = vpack.c.b16 %v1031, %v1030
      %v1057 = vpack.c.b16 %v1033, %v1032
      %v1058 = vpack.c.b16 %v1035, %v1034
      %v1059 = vpack.c.b16 %v1037, %v1036
      %v1060 = vpack.c.b16 %v1039, %v1038
      %v1061 = vpack.c.b16 %v1041, %v1040
      %v1062 = vpack.c.b16 %v1043, %v1042
      %v1063 = vpack.c.b16 %v1045, %v1044
      %v1064 = vpack.c.b16 %v1047, %v1046
      %v1065 = vpack.c.b16 %v1049, %v1048
      %v1067 = vsel %vm772, %v1050, 0
      %v1070 = vsel %vm772, %v1051, 0
      %v1073 = vsel %vm772, %v1052, 0
      %v1076 = vsel %vm772, %v1053, 0
      %v1079 = vsel %vm772, %v1054, 0
      %v1082 = vsel %vm772, %v1055, 0
      %v1085 = vsel %vm772, %v1056, 0
      %v1088 = vsel %vm772, %v1057, 0
      %v1091 = vsel %vm772, %v1058, 0
      %v1094 = vsel %vm772, %v1059, 0
      %v1097 = vsel %vm772, %v1060, 0
      %v1100 = vsel %vm772, %v1061, 0
      %v1103 = vsel %vm772, %v1062, 0
      %v1106 = vsel %vm772, %v1063, 0
      %v1109 = vsel %vm772, %v1064, 0
      %v1112 = vsel %vm772, %v1065, 0
      %v1115 = vsel %vm821, %v334, 0
      %1117 = vmatprep.subr.bf16.mxu0 0
      %1118 = vmatpush1.bf16.msra.mxu0 %v1115
      %1119 = vmatprep.subr.bf16.mxu0 0
      %1120 = vmatpush1.bf16.msra.mxu0 0
      %1121 = vmatprep.subr.bf16.mxu0 0
      %1122 = vmatpush1.bf16.msra.mxu0 0
      %1123 = vmatprep.subr.bf16.mxu0 0
      %1124 = vmatpush1.bf16.msra.mxu0 0
      %1125 = vmatprep.subr.bf16.mxu0 0
      %1126 = vmatpush1.bf16.msra.mxu0 0
      %1127 = vmatprep.subr.bf16.mxu0 0
      %1128 = vmatpush1.bf16.msra.mxu0 0
      %1129 = vmatprep.subr.bf16.mxu0 0
      %1130 = vmatpush1.bf16.msra.mxu0 0
      %1131 = vmatprep.subr.bf16.mxu0 0
      %1132 = vmatpush1.bf16.msra.mxu0 0
      %1133 = vmatprep.subr.bf16.mxu0 0
      %1134 = vmatpush1.bf16.msra.mxu0 0
      %1135 = vmatprep.subr.bf16.mxu0 0
      %1136 = vmatpush1.bf16.msra.mxu0 0
      %1137 = vmatprep.subr.bf16.mxu0 0
      %1138 = vmatpush1.bf16.msra.mxu0 0
      %1139 = vmatprep.subr.bf16.mxu0 0
      %1140 = vmatpush1.bf16.msra.mxu0 0
      %1141 = vmatprep.subr.bf16.mxu0 0
      %1142 = vmatpush1.bf16.msra.mxu0 0
      %1143 = vmatprep.subr.bf16.mxu0 0
      %1144 = vmatpush1.bf16.msra.mxu0 0
      %1145 = vmatprep.subr.bf16.mxu0 0
      %1146 = vmatpush1.bf16.msra.mxu0 0
      %1147 = vmatprep.subr.bf16.mxu0 0
      %1148 = vmatpush1.bf16.msra.mxu0 0
      %1149 = vmatprep.mubr.bf16.mxu0 0
      %1150 = vmatmul.mubr.bf16.gmra.mrb[0].mxu0 %v1067
      %v1151 = vpop.f32.mrb[0].mxu0
      %v1152 = vadd.f32 %v860, %v1151
      %v1153 = vpop.f32.mrb[0].mxu0
      %v1154 = vpop.f32.mrb[0].mxu0
      %v1155 = vadd.f32 %v863, %v1154
      %v1156 = vpop.f32.mrb[0].mxu0
      %1157 = vmatprep.mubr.bf16.mxu0 0
      %1158 = vmatmul.mubr.bf16.gmra.mrb[0].mxu0 %v1070
      %v1159 = vpop.f32.mrb[0].mxu0
      %v1160 = vadd.f32 %v868, %v1159
      %v1161 = vpop.f32.mrb[0].mxu0
      %v1162 = vpop.f32.mrb[0].mxu0
      %v1163 = vadd.f32 %v871, %v1162
      %v1164 = vpop.f32.mrb[0].mxu0
      %1165 = vmatprep.mubr.bf16.mxu0 0
      %1166 = vmatmul.mubr.bf16.gmra.mrb[0].mxu0 %v1073
      %v1167 = vpop.f32.mrb[0].mxu0
      %v1168 = vadd.f32 %v876, %v1167
      %v1169 = vpop.f32.mrb[0].mxu0
      %v1170 = vpop.f32.mrb[0].mxu0
      %v1171 = vadd.f32 %v879, %v1170
      %v1172 = vpop.f32.mrb[0].mxu0
      %1173 = vmatprep.mubr.bf16.mxu0 0
      %1174 = vmatmul.mubr.bf16.gmra.mrb[0].mxu0 %v1076
      %v1175 = vpop.f32.mrb[0].mxu0
      %v1176 = vadd.f32 %v884, %v1175
      %v1177 = vpop.f32.mrb[0].mxu0
      %v1178 = vpop.f32.mrb[0].mxu0
      %v1179 = vadd.f32 %v887, %v1178
      %v1180 = vpop.f32.mrb[0].mxu0
      %1181 = vmatprep.mubr.bf16.mxu0 0
      %1182 = vmatmul.mubr.bf16.gmra.mrb[0].mxu0 %v1079
      %v1183 = vpop.f32.mrb[0].mxu0
      %v1184 = vadd.f32 %v892, %v1183
      %v1185 = vpop.f32.mrb[0].mxu0
      %v1186 = vpop.f32.mrb[0].mxu0
      %v1187 = vadd.f32 %v895, %v1186
      %v1188 = vpop.f32.mrb[0].mxu0
      %1189 = vmatprep.mubr.bf16.mxu0 0
      %1190 = vmatmul.mubr.bf16.gmra.mrb[0].mxu0 %v1082
      %v1191 = vpop.f32.mrb[0].mxu0
      %v1192 = vadd.f32 %v900, %v1191
      %v1193 = vpop.f32.mrb[0].mxu0
      %v1194 = vpop.f32.mrb[0].mxu0
      %v1195 = vadd.f32 %v903, %v1194
      %v1196 = vpop.f32.mrb[0].mxu0
      %1197 = vmatprep.mubr.bf16.mxu0 0
      %1198 = vmatmul.mubr.bf16.gmra.mrb[0].mxu0 %v1085
      %v1199 = vpop.f32.mrb[0].mxu0
      %v1200 = vadd.f32 %v908, %v1199
      %v1201 = vpop.f32.mrb[0].mxu0
      %v1202 = vpop.f32.mrb[0].mxu0
      %v1203 = vadd.f32 %v911, %v1202
      %v1204 = vpop.f32.mrb[0].mxu0
      %1205 = vmatprep.mubr.bf16.mxu0 0
      %1206 = vmatmul.mubr.bf16.gmra.mrb[0].mxu0 %v1088
      %v1207 = vpop.f32.mrb[0].mxu0
      %v1208 = vadd.f32 %v916, %v1207
      %v1209 = vpop.f32.mrb[0].mxu0
      %v1210 = vpop.f32.mrb[0].mxu0
      %v1211 = vadd.f32 %v919, %v1210
      %v1212 = vpop.f32.mrb[0].mxu0
      %1213 = vmatprep.mubr.bf16.mxu0 0
      %1214 = vmatmul.mubr.bf16.gmra.mrb[0].mxu0 %v1091
      %v1215 = vpop.f32.mrb[0].mxu0
      %v1216 = vadd.f32 %v924, %v1215
      %v1217 = vpop.f32.mrb[0].mxu0
      %v1218 = vpop.f32.mrb[0].mxu0
      %v1219 = vadd.f32 %v927, %v1218
      %v1220 = vpop.f32.mrb[0].mxu0
      %1221 = vmatprep.mubr.bf16.mxu0 0
      %1222 = vmatmul.mubr.bf16.gmra.mrb[0].mxu0 %v1094
      %v1223 = vpop.f32.mrb[0].mxu0
      %v1224 = vadd.f32 %v932, %v1223
      %v1225 = vpop.f32.mrb[0].mxu0
      %v1226 = vpop.f32.mrb[0].mxu0
      %v1227 = vadd.f32 %v935, %v1226
      %v1228 = vpop.f32.mrb[0].mxu0
      %1229 = vmatprep.mubr.bf16.mxu0 0
      %1230 = vmatmul.mubr.bf16.gmra.mrb[0].mxu0 %v1097
      %v1231 = vpop.f32.mrb[0].mxu0
      %v1232 = vadd.f32 %v940, %v1231
      %v1233 = vpop.f32.mrb[0].mxu0
      %v1234 = vpop.f32.mrb[0].mxu0
      %v1235 = vadd.f32 %v943, %v1234
      %v1236 = vpop.f32.mrb[0].mxu0
      %1237 = vmatprep.mubr.bf16.mxu0 0
      %1238 = vmatmul.mubr.bf16.gmra.mrb[0].mxu0 %v1100
      %v1239 = vpop.f32.mrb[0].mxu0
      %v1240 = vadd.f32 %v948, %v1239
      %v1241 = vpop.f32.mrb[0].mxu0
      %v1242 = vpop.f32.mrb[0].mxu0
      %v1243 = vadd.f32 %v951, %v1242
      %v1244 = vpop.f32.mrb[0].mxu0
      %1245 = vmatprep.mubr.bf16.mxu0 0
      %1246 = vmatmul.mubr.bf16.gmra.mrb[0].mxu0 %v1103
      %v1247 = vpop.f32.mrb[0].mxu0
      %v1248 = vadd.f32 %v956, %v1247
      %v1249 = vpop.f32.mrb[0].mxu0
      %v1250 = vpop.f32.mrb[0].mxu0
      %v1251 = vadd.f32 %v959, %v1250
      %v1252 = vpop.f32.mrb[0].mxu0
      %1253 = vmatprep.mubr.bf16.mxu0 0
      %1254 = vmatmul.mubr.bf16.gmra.mrb[0].mxu0 %v1106
      %v1255 = vpop.f32.mrb[0].mxu0
      %v1256 = vadd.f32 %v964, %v1255
      %v1257 = vpop.f32.mrb[0].mxu0
      %v1258 = vpop.f32.mrb[0].mxu0
      %v1259 = vadd.f32 %v967, %v1258
      %v1260 = vpop.f32.mrb[0].mxu0
      %1261 = vmatprep.mubr.bf16.mxu0 0
      %1262 = vmatmul.mubr.bf16.gmra.mrb[0].mxu0 %v1109
      %v1263 = vpop.f32.mrb[0].mxu0
      %v1264 = vadd.f32 %v972, %v1263
      %v1265 = vpop.f32.mrb[0].mxu0
      %v1266 = vpop.f32.mrb[0].mxu0
      %v1267 = vadd.f32 %v975, %v1266
      %v1268 = vpop.f32.mrb[0].mxu0
      %1269 = vmatprep.mubr.bf16.mxu0 0
      %1270 = vmatmul.mubr.bf16.gmra.mrb[0].mxu0 %v1112
      %v1271 = vpop.f32.mrb[0].mxu0
      %v1272 = vadd.f32 %v980, %v1271
      %v1273 = vpop.f32.mrb[0].mxu0
      %v1274 = vpop.f32.mrb[0].mxu0
      %v1275 = vadd.f32 %v983, %v1274
      %v1276 = vpop.f32.mrb[0].mxu0
      %1277 = vdwg.mxu0
      %vm1294 = vcmask 1042432
      %vm1295 = vcmask 1046532
      %vm1296 = vmor %vm1294, %vm1295
      %v1297 = vrot.slane %v280, 5
      %v1298 = vrot.slane %v1297, 4
      %v1299 = vrot.slane %v281, 5
      %v1300 = vsel %vm1296, %v1298, %v1299
      %v1301 = vrot.slane %v1299, 4
      %v1302 = vrot.slane %v282, 5
      %v1303 = vsel %vm1296, %v1301, %v1302
      %v1304 = vrot.slane %v283, 5
      %v1305 = vrot.slane %v1304, 4
      %v1306 = vrot.slane %v284, 5
      %v1307 = vsel %vm1296, %v1305, %v1306
      %v1308 = vrot.slane %v1306, 4
      %v1309 = vrot.slane %v285, 5
      %v1310 = vsel %vm1296, %v1308, %v1309
      %v1311 = vrot.slane %v286, 5
      %v1312 = vrot.slane %v1311, 4
      %v1313 = vrot.slane %v287, 5
      %v1314 = vsel %vm1296, %v1312, %v1313
      %v1315 = vrot.slane %v1313, 4
      %v1316 = vrot.slane %v288, 5
      %v1317 = vsel %vm1296, %v1315, %v1316
      %v1318 = vrot.slane %v289, 5
      %v1319 = vrot.slane %v1318, 4
      %v1320 = vrot.slane %v290, 5
      %v1321 = vsel %vm1296, %v1319, %v1320
      %v1322 = vrot.slane %v1320, 4
      %v1323 = vrot.slane %v291, 5
      %v1324 = vsel %vm1296, %v1322, %v1323
      %v1325 = vrot.slane %v292, 5
      %v1326 = vrot.slane %v1325, 4
      %v1327 = vrot.slane %v293, 5
      %v1328 = vsel %vm1296, %v1326, %v1327
      %v1329 = vrot.slane %v1327, 4
      %v1330 = vrot.slane %v294, 5
      %v1331 = vsel %vm1296, %v1329, %v1330
      %v1332 = vrot.slane %v295, 5
      %v1333 = vrot.slane %v1332, 4
      %v1334 = vrot.slane %v296, 5
      %v1335 = vsel %vm1296, %v1333, %v1334
      %v1336 = vrot.slane %v1334, 4
      %v1337 = vrot.slane %v297, 5
      %v1338 = vsel %vm1296, %v1336, %v1337
      %v1339 = vrot.slane %v298, 5
      %v1340 = vrot.slane %v1339, 4
      %v1341 = vrot.slane %v299, 5
      %v1342 = vsel %vm1296, %v1340, %v1341
      %v1343 = vrot.slane %v1341, 4
      %v1344 = vrot.slane %v300, 5
      %v1345 = vsel %vm1296, %v1343, %v1344
      %v1346 = vrot.slane %v301, 5
      %v1347 = vrot.slane %v1346, 4
      %v1348 = vrot.slane %v302, 5
      %v1349 = vsel %vm1296, %v1347, %v1348
      %v1350 = vrot.slane %v1348, 4
      %v1351 = vrot.slane %v303, 5
      %v1352 = vsel %vm1296, %v1350, %v1351
      %v1353 = vrot.slane %v304, 5
      %v1354 = vrot.slane %v1353, 4
      %v1355 = vrot.slane %v305, 5
      %v1356 = vsel %vm1296, %v1354, %v1355
      %v1357 = vrot.slane %v1355, 4
      %v1358 = vrot.slane %v306, 5
      %v1359 = vsel %vm1296, %v1357, %v1358
      %v1360 = vrot.slane %v307, 5
      %v1361 = vrot.slane %v1360, 4
      %v1362 = vrot.slane %v308, 5
      %v1363 = vsel %vm1296, %v1361, %v1362
      %v1364 = vrot.slane %v1362, 4
      %v1365 = vrot.slane %v309, 5
      %v1366 = vsel %vm1296, %v1364, %v1365
      %v1367 = vrot.slane %v310, 5
      %v1368 = vrot.slane %v1367, 4
      %v1369 = vrot.slane %v311, 5
      %v1370 = vsel %vm1296, %v1368, %v1369
      %v1371 = vrot.slane %v1369, 4
      %v1372 = vrot.slane %v312, 5
      %v1373 = vsel %vm1296, %v1371, %v1372
      %v1374 = vrot.slane %v313, 5
      %v1375 = vrot.slane %v1374, 4
      %v1376 = vrot.slane %v314, 5
      %v1377 = vsel %vm1296, %v1375, %v1376
      %v1378 = vrot.slane %v1376, 4
      %v1379 = vrot.slane %v315, 5
      %v1380 = vsel %vm1296, %v1378, %v1379
      %v1381 = vrot.slane %v316, 5
      %v1382 = vrot.slane %v1381, 4
      %v1383 = vrot.slane %v317, 5
      %v1384 = vsel %vm1296, %v1382, %v1383
      %v1385 = vrot.slane %v1383, 4
      %v1386 = vrot.slane %v318, 5
      %v1387 = vsel %vm1296, %v1385, %v1386
      %v1388 = vrot.slane %v319, 5
      %v1389 = vrot.slane %v1388, 4
      %v1390 = vrot.slane %v320, 5
      %v1391 = vsel %vm1296, %v1389, %v1390
      %v1392 = vrot.slane %v1390, 4
      %v1393 = vrot.slane %v321, 5
      %v1394 = vsel %vm1296, %v1392, %v1393
      %v1395 = vrot.slane %v322, 5
      %v1396 = vrot.slane %v1395, 4
      %v1397 = vrot.slane %v323, 5
      %v1398 = vsel %vm1296, %v1396, %v1397
      %v1399 = vrot.slane %v1397, 4
      %v1400 = vrot.slane %v324, 5
      %v1401 = vsel %vm1296, %v1399, %v1400
      %v1402 = vrot.slane %v325, 5
      %v1403 = vrot.slane %v1402, 4
      %v1404 = vrot.slane %v326, 5
      %v1405 = vsel %vm1296, %v1403, %v1404
      %v1406 = vrot.slane %v1404, 4
      %v1407 = vrot.slane %v327, 5
      %v1408 = vsel %vm1296, %v1406, %v1407
      %s1409 = scalar_lea.vmem %s1, 8
      %v1410 = vld [vmem:[%s1409] sm:$0xf]
      %v1411 = vunpack.c.l.b16 %v1300
      %v1412 = vunpack.c.l.b16 %v1303
      %v1413 = vunpack.c.l.b16 %v1307
      %v1414 = vunpack.c.l.b16 %v1310
      %v1415 = vunpack.c.l.b16 %v1314
      %v1416 = vunpack.c.l.b16 %v1317
      %v1417 = vunpack.c.l.b16 %v1321
      %v1418 = vunpack.c.l.b16 %v1324
      %v1419 = vunpack.c.l.b16 %v1328
      %v1420 = vunpack.c.l.b16 %v1331
      %v1421 = vunpack.c.l.b16 %v1335
      %v1422 = vunpack.c.l.b16 %v1338
      %v1423 = vunpack.c.l.b16 %v1342
      %v1424 = vunpack.c.l.b16 %v1345
      %v1425 = vunpack.c.l.b16 %v1349
      %v1426 = vunpack.c.l.b16 %v1352
      %v1427 = vunpack.c.l.b16 %v1356
      %v1428 = vunpack.c.l.b16 %v1359
      %v1429 = vunpack.c.l.b16 %v1363
      %v1430 = vunpack.c.l.b16 %v1366
      %v1431 = vunpack.c.l.b16 %v1370
      %v1432 = vunpack.c.l.b16 %v1373
      %v1433 = vunpack.c.l.b16 %v1377
      %v1434 = vunpack.c.l.b16 %v1380
      %v1435 = vunpack.c.l.b16 %v1384
      %v1436 = vunpack.c.l.b16 %v1387
      %v1437 = vunpack.c.l.b16 %v1391
      %v1438 = vunpack.c.l.b16 %v1394
      %v1439 = vunpack.c.l.b16 %v1398
      %v1440 = vunpack.c.l.b16 %v1401
      %v1441 = vunpack.c.l.b16 %v1405
      %v1442 = vunpack.c.l.b16 %v1408
      %v1443 = vpack.c.b16 %v1412, %v1411
      %v1444 = vpack.c.b16 %v1414, %v1413
      %v1445 = vpack.c.b16 %v1416, %v1415
      %v1446 = vpack.c.b16 %v1418, %v1417
      %v1447 = vpack.c.b16 %v1420, %v1419
      %v1448 = vpack.c.b16 %v1422, %v1421
      %v1449 = vpack.c.b16 %v1424, %v1423
      %v1450 = vpack.c.b16 %v1426, %v1425
      %v1451 = vpack.c.b16 %v1428, %v1427
      %v1452 = vpack.c.b16 %v1430, %v1429
      %v1453 = vpack.c.b16 %v1432, %v1431
      %v1454 = vpack.c.b16 %v1434, %v1433
      %v1455 = vpack.c.b16 %v1436, %v1435
      %v1456 = vpack.c.b16 %v1438, %v1437
      %v1457 = vpack.c.b16 %v1440, %v1439
      %v1458 = vpack.c.b16 %v1442, %v1441
      %v1460 = vsel %vm772, %v1443, 0
      %v1463 = vsel %vm772, %v1444, 0
      %v1466 = vsel %vm772, %v1445, 0
      %v1469 = vsel %vm772, %v1446, 0
      %v1472 = vsel %vm772, %v1447, 0
      %v1475 = vsel %vm772, %v1448, 0
      %v1478 = vsel %vm772, %v1449, 0
      %v1481 = vsel %vm772, %v1450, 0
      %v1484 = vsel %vm772, %v1451, 0
      %v1487 = vsel %vm772, %v1452, 0
      %v1490 = vsel %vm772, %v1453, 0
      %v1493 = vsel %vm772, %v1454, 0
      %v1496 = vsel %vm772, %v1455, 0
      %v1499 = vsel %vm772, %v1456, 0
      %v1502 = vsel %vm772, %v1457, 0
      %v1505 = vsel %vm772, %v1458, 0
      %v1508 = vsel %vm821, %v1410, 0
      %1510 = vmatprep.subr.bf16.mxu0 0
      %1511 = vmatpush1.bf16.msra.mxu0 %v1508
      %1512 = vmatprep.subr.bf16.mxu0 0
      %1513 = vmatpush1.bf16.msra.mxu0 0
      %1514 = vmatprep.subr.bf16.mxu0 0
      %1515 = vmatpush1.bf16.msra.mxu0 0
      %1516 = vmatprep.subr.bf16.mxu0 0
      %1517 = vmatpush1.bf16.msra.mxu0 0
      %1518 = vmatprep.subr.bf16.mxu0 0
      %1519 = vmatpush1.bf16.msra.mxu0 0
      %1520 = vmatprep.subr.bf16.mxu0 0
      %1521 = vmatpush1.bf16.msra.mxu0 0
      %1522 = vmatprep.subr.bf16.mxu0 0
      %1523 = vmatpush1.bf16.msra.mxu0 0
      %1524 = vmatprep.subr.bf16.mxu0 0
      %1525 = vmatpush1.bf16.msra.mxu0 0
      %1526 = vmatprep.subr.bf16.mxu0 0
      %1527 = vmatpush1.bf16.msra.mxu0 0
      %1528 = vmatprep.subr.bf16.mxu0 0
      %1529 = vmatpush1.bf16.msra.mxu0 0
      %1530 = vmatprep.subr.bf16.mxu0 0
      %1531 = vmatpush1.bf16.msra.mxu0 0
      %1532 = vmatprep.subr.bf16.mxu0 0
      %1533 = vmatpush1.bf16.msra.mxu0 0
      %1534 = vmatprep.subr.bf16.mxu0 0
      %1535 = vmatpush1.bf16.msra.mxu0 0
      %1536 = vmatprep.subr.bf16.mxu0 0
      %1537 = vmatpush1.bf16.msra.mxu0 0
      %1538 = vmatprep.subr.bf16.mxu0 0
      %1539 = vmatpush1.bf16.msra.mxu0 0
      %1540 = vmatprep.subr.bf16.mxu0 0
      %1541 = vmatpush1.bf16.msra.mxu0 0
      %1542 = vmatprep.mubr.bf16.mxu0 0
      %1543 = vmatmul.mubr.bf16.gmra.mrb[0].mxu0 %v1460
      %v1544 = vpop.f32.mrb[0].mxu0
      %v1545 = vadd.f32 0.0, %v1544
      %v1546 = vpop.f32.mrb[0].mxu0
      %v1547 = vpop.f32.mrb[0].mxu0
      %v1548 = vadd.f32 0.0, %v1547
      %v1549 = vpop.f32.mrb[0].mxu0
      %1550 = vmatprep.mubr.bf16.mxu0 0
      %1551 = vmatmul.mubr.bf16.gmra.mrb[0].mxu0 %v1463
      %v1552 = vpop.f32.mrb[0].mxu0
      %v1553 = vadd.f32 0.0, %v1552
      %v1554 = vpop.f32.mrb[0].mxu0
      %v1555 = vpop.f32.mrb[0].mxu0
      %v1556 = vadd.f32 0.0, %v1555
      %v1557 = vpop.f32.mrb[0].mxu0
      %1558 = vmatprep.mubr.bf16.mxu0 0
      %1559 = vmatmul.mubr.bf16.gmra.mrb[0].mxu0 %v1466
      %v1560 = vpop.f32.mrb[0].mxu0
      %v1561 = vadd.f32 0.0, %v1560
      %v1562 = vpop.f32.mrb[0].mxu0
      %v1563 = vpop.f32.mrb[0].mxu0
      %v1564 = vadd.f32 0.0, %v1563
      %v1565 = vpop.f32.mrb[0].mxu0
      %1566 = vmatprep.mubr.bf16.mxu0 0
      %1567 = vmatmul.mubr.bf16.gmra.mrb[0].mxu0 %v1469
      %v1568 = vpop.f32.mrb[0].mxu0
      %v1569 = vadd.f32 0.0, %v1568
      %v1570 = vpop.f32.mrb[0].mxu0
      %v1571 = vpop.f32.mrb[0].mxu0
      %v1572 = vadd.f32 0.0, %v1571
      %v1573 = vpop.f32.mrb[0].mxu0
      %1574 = vmatprep.mubr.bf16.mxu0 0
      %1575 = vmatmul.mubr.bf16.gmra.mrb[0].mxu0 %v1472
      %v1576 = vpop.f32.mrb[0].mxu0
      %v1577 = vadd.f32 0.0, %v1576
      %v1578 = vpop.f32.mrb[0].mxu0
      %v1579 = vpop.f32.mrb[0].mxu0
      %v1580 = vadd.f32 0.0, %v1579
      %v1581 = vpop.f32.mrb[0].mxu0
      %1582 = vmatprep.mubr.bf16.mxu0 0
      %1583 = vmatmul.mubr.bf16.gmra.mrb[0].mxu0 %v1475
      %v1584 = vpop.f32.mrb[0].mxu0
      %v1585 = vadd.f32 0.0, %v1584
      %v1586 = vpop.f32.mrb[0].mxu0
      %v1587 = vpop.f32.mrb[0].mxu0
      %v1588 = vadd.f32 0.0, %v1587
      %v1589 = vpop.f32.mrb[0].mxu0
      %1590 = vmatprep.mubr.bf16.mxu0 0
      %1591 = vmatmul.mubr.bf16.gmra.mrb[0].mxu0 %v1478
      %v1592 = vpop.f32.mrb[0].mxu0
      %v1593 = vadd.f32 0.0, %v1592
      %v1594 = vpop.f32.mrb[0].mxu0
      %v1595 = vpop.f32.mrb[0].mxu0
      %v1596 = vadd.f32 0.0, %v1595
      %v1597 = vpop.f32.mrb[0].mxu0
      %1598 = vmatprep.mubr.bf16.mxu0 0
      %1599 = vmatmul.mubr.bf16.gmra.mrb[0].mxu0 %v1481
      %v1600 = vpop.f32.mrb[0].mxu0
      %v1601 = vadd.f32 0.0, %v1600
      %v1602 = vpop.f32.mrb[0].mxu0
      %v1603 = vpop.f32.mrb[0].mxu0
      %v1604 = vadd.f32 0.0, %v1603
      %v1605 = vpop.f32.mrb[0].mxu0
      %1606 = vmatprep.mubr.bf16.mxu0 0
      %1607 = vmatmul.mubr.bf16.gmra.mrb[0].mxu0 %v1484
      %v1608 = vpop.f32.mrb[0].mxu0
      %v1609 = vadd.f32 0.0, %v1608
      %v1610 = vpop.f32.mrb[0].mxu0
      %v1611 = vpop.f32.mrb[0].mxu0
      %v1612 = vadd.f32 0.0, %v1611
      %v1613 = vpop.f32.mrb[0].mxu0
      %1614 = vmatprep.mubr.bf16.mxu0 0
      %1615 = vmatmul.mubr.bf16.gmra.mrb[0].mxu0 %v1487
      %v1616 = vpop.f32.mrb[0].mxu0
      %v1617 = vadd.f32 0.0, %v1616
      %v1618 = vpop.f32.mrb[0].mxu0
      %v1619 = vpop.f32.mrb[0].mxu0
      %v1620 = vadd.f32 0.0, %v1619
      %v1621 = vpop.f32.mrb[0].mxu0
      %1622 = vmatprep.mubr.bf16.mxu0 0
      %1623 = vmatmul.mubr.bf16.gmra.mrb[0].mxu0 %v1490
      %v1624 = vpop.f32.mrb[0].mxu0
      %v1625 = vadd.f32 0.0, %v1624
      %v1626 = vpop.f32.mrb[0].mxu0
      %v1627 = vpop.f32.mrb[0].mxu0
      %v1628 = vadd.f32 0.0, %v1627
      %v1629 = vpop.f32.mrb[0].mxu0
      %1630 = vmatprep.mubr.bf16.mxu0 0
      %1631 = vmatmul.mubr.bf16.gmra.mrb[0].mxu0 %v1493
      %v1632 = vpop.f32.mrb[0].mxu0
      %v1633 = vadd.f32 0.0, %v1632
      %v1634 = vpop.f32.mrb[0].mxu0
      %v1635 = vpop.f32.mrb[0].mxu0
      %v1636 = vadd.f32 0.0, %v1635
      %v1637 = vpop.f32.mrb[0].mxu0
      %1638 = vmatprep.mubr.bf16.mxu0 0
      %1639 = vmatmul.mubr.bf16.gmra.mrb[0].mxu0 %v1496
      %v1640 = vpop.f32.mrb[0].mxu0
      %v1641 = vadd.f32 0.0, %v1640
      %v1642 = vpop.f32.mrb[0].mxu0
      %v1643 = vpop.f32.mrb[0].mxu0
      %v1644 = vadd.f32 0.0, %v1643
      %v1645 = vpop.f32.mrb[0].mxu0
      %1646 = vmatprep.mubr.bf16.mxu0 0
      %1647 = vmatmul.mubr.bf16.gmra.mrb[0].mxu0 %v1499
      %v1648 = vpop.f32.mrb[0].mxu0
      %v1649 = vadd.f32 0.0, %v1648
      %v1650 = vpop.f32.mrb[0].mxu0
      %v1651 = vpop.f32.mrb[0].mxu0
      %v1652 = vadd.f32 0.0, %v1651
      %v1653 = vpop.f32.mrb[0].mxu0
      %1654 = vmatprep.mubr.bf16.mxu0 0
      %1655 = vmatmul.mubr.bf16.gmra.mrb[0].mxu0 %v1502
      %v1656 = vpop.f32.mrb[0].mxu0
      %v1657 = vadd.f32 0.0, %v1656
      %v1658 = vpop.f32.mrb[0].mxu0
      %v1659 = vpop.f32.mrb[0].mxu0
      %v1660 = vadd.f32 0.0, %v1659
      %v1661 = vpop.f32.mrb[0].mxu0
      %1662 = vmatprep.mubr.bf16.mxu0 0
      %1663 = vmatmul.mubr.bf16.gmra.mrb[0].mxu0 %v1505
      %v1664 = vpop.f32.mrb[0].mxu0
      %v1665 = vadd.f32 0.0, %v1664
      %v1666 = vpop.f32.mrb[0].mxu0
      %v1667 = vpop.f32.mrb[0].mxu0
      %v1668 = vadd.f32 0.0, %v1667
      %v1669 = vpop.f32.mrb[0].mxu0
      %1670 = vdwg.mxu0
      %v1671 = vadd.f32 %v1152, %v1545
      %v1672 = vadd.f32 %v1155, %v1548
      %v1673 = vadd.f32 %v1160, %v1553
      %v1674 = vadd.f32 %v1163, %v1556
      %v1675 = vadd.f32 %v1168, %v1561
      %v1676 = vadd.f32 %v1171, %v1564
      %v1677 = vadd.f32 %v1176, %v1569
      %v1678 = vadd.f32 %v1179, %v1572
      %v1679 = vadd.f32 %v1184, %v1577
      %v1680 = vadd.f32 %v1187, %v1580
      %v1681 = vadd.f32 %v1192, %v1585
      %v1682 = vadd.f32 %v1195, %v1588
      %v1683 = vadd.f32 %v1200, %v1593
      %v1684 = vadd.f32 %v1203, %v1596
      %v1685 = vadd.f32 %v1208, %v1601
      %v1686 = vadd.f32 %v1211, %v1604
      %v1687 = vadd.f32 %v1216, %v1609
      %v1688 = vadd.f32 %v1219, %v1612
      %v1689 = vadd.f32 %v1224, %v1617
      %v1690 = vadd.f32 %v1227, %v1620
      %v1691 = vadd.f32 %v1232, %v1625
      %v1692 = vadd.f32 %v1235, %v1628
      %v1693 = vadd.f32 %v1240, %v1633
      %v1694 = vadd.f32 %v1243, %v1636
      %v1695 = vadd.f32 %v1248, %v1641
      %v1696 = vadd.f32 %v1251, %v1644
      %v1697 = vadd.f32 %v1256, %v1649
      %v1698 = vadd.f32 %v1259, %v1652
      %v1699 = vadd.f32 %v1264, %v1657
      %v1700 = vadd.f32 %v1267, %v1660
      %v1701 = vadd.f32 %v1272, %v1665
      %v1702 = vadd.f32 %v1275, %v1668
      %s1703 = scalar_lea.vmem %s1, 12
      %v1704 = vld [vmem:[%s1703] sm:$0xf]
      %v1707 = vunpack.c.l.b16 %v328
      %v1708 = vunpack.c.l.b16 %v329
      %v1709 = vpack.c.b16 %v1708, %v1707
      %v1711 = vsel %vm772, %v1709, 0
      %v1714 = vsel %vm821, %v1704, 0
      %1716 = vmatprep.subr.bf16.mxu0 0
      %1717 = vmatpush1.bf16.msra.mxu0 %v1714
      %1718 = vmatprep.subr.bf16.mxu0 0
      %1719 = vmatpush1.bf16.msra.mxu0 0
      %1720 = vmatprep.subr.bf16.mxu0 0
      %1721 = vmatpush1.bf16.msra.mxu0 0
      %1722 = vmatprep.subr.bf16.mxu0 0
      %1723 = vmatpush1.bf16.msra.mxu0 0
      %1724 = vmatprep.subr.bf16.mxu0 0
      %1725 = vmatpush1.bf16.msra.mxu0 0
      %1726 = vmatprep.subr.bf16.mxu0 0
      %1727 = vmatpush1.bf16.msra.mxu0 0
      %1728 = vmatprep.subr.bf16.mxu0 0
      %1729 = vmatpush1.bf16.msra.mxu0 0
      %1730 = vmatprep.subr.bf16.mxu0 0
      %1731 = vmatpush1.bf16.msra.mxu0 0
      %1732 = vmatprep.subr.bf16.mxu0 0
      %1733 = vmatpush1.bf16.msra.mxu0 0
      %1734 = vmatprep.subr.bf16.mxu0 0
      %1735 = vmatpush1.bf16.msra.mxu0 0
      %1736 = vmatprep.subr.bf16.mxu0 0
      %1737 = vmatpush1.bf16.msra.mxu0 0
      %1738 = vmatprep.subr.bf16.mxu0 0
      %1739 = vmatpush1.bf16.msra.mxu0 0
      %1740 = vmatprep.subr.bf16.mxu0 0
      %1741 = vmatpush1.bf16.msra.mxu0 0
      %1742 = vmatprep.subr.bf16.mxu0 0
      %1743 = vmatpush1.bf16.msra.mxu0 0
      %1744 = vmatprep.subr.bf16.mxu0 0
      %1745 = vmatpush1.bf16.msra.mxu0 0
      %1746 = vmatprep.subr.bf16.mxu0 0
      %1747 = vmatpush1.bf16.msra.mxu0 0
      %1748 = vmatprep.mubr.bf16.mxu0 0
      %1749 = vmatmul.mubr.bf16.gmra.mrb[0].mxu0 %v1070
      %v1750 = vpop.f32.mrb[0].mxu0
      %v1751 = vadd.f32 0.0, %v1750
      %v1752 = vpop.f32.mrb[0].mxu0
      %v1753 = vpop.f32.mrb[0].mxu0
      %v1754 = vadd.f32 0.0, %v1753
      %v1755 = vpop.f32.mrb[0].mxu0
      %1756 = vmatprep.mubr.bf16.mxu0 0
      %1757 = vmatmul.mubr.bf16.gmra.mrb[0].mxu0 %v1073
      %v1758 = vpop.f32.mrb[0].mxu0
      %v1759 = vadd.f32 0.0, %v1758
      %v1760 = vpop.f32.mrb[0].mxu0
      %v1761 = vpop.f32.mrb[0].mxu0
      %v1762 = vadd.f32 0.0, %v1761
      %v1763 = vpop.f32.mrb[0].mxu0
      %1764 = vmatprep.mubr.bf16.mxu0 0
      %1765 = vmatmul.mubr.bf16.gmra.mrb[0].mxu0 %v1076
      %v1766 = vpop.f32.mrb[0].mxu0
      %v1767 = vadd.f32 0.0, %v1766
      %v1768 = vpop.f32.mrb[0].mxu0
      %v1769 = vpop.f32.mrb[0].mxu0
      %v1770 = vadd.f32 0.0, %v1769
      %v1771 = vpop.f32.mrb[0].mxu0
      %1772 = vmatprep.mubr.bf16.mxu0 0
      %1773 = vmatmul.mubr.bf16.gmra.mrb[0].mxu0 %v1079
      %v1774 = vpop.f32.mrb[0].mxu0
      %v1775 = vadd.f32 0.0, %v1774
      %v1776 = vpop.f32.mrb[0].mxu0
      %v1777 = vpop.f32.mrb[0].mxu0
      %v1778 = vadd.f32 0.0, %v1777
      %v1779 = vpop.f32.mrb[0].mxu0
      %1780 = vmatprep.mubr.bf16.mxu0 0
      %1781 = vmatmul.mubr.bf16.gmra.mrb[0].mxu0 %v1082
      %v1782 = vpop.f32.mrb[0].mxu0
      %v1783 = vadd.f32 0.0, %v1782
      %v1784 = vpop.f32.mrb[0].mxu0
      %v1785 = vpop.f32.mrb[0].mxu0
      %v1786 = vadd.f32 0.0, %v1785
      %v1787 = vpop.f32.mrb[0].mxu0
      %1788 = vmatprep.mubr.bf16.mxu0 0
      %1789 = vmatmul.mubr.bf16.gmra.mrb[0].mxu0 %v1085
      %v1790 = vpop.f32.mrb[0].mxu0
      %v1791 = vadd.f32 0.0, %v1790
      %v1792 = vpop.f32.mrb[0].mxu0
      %v1793 = vpop.f32.mrb[0].mxu0
      %v1794 = vadd.f32 0.0, %v1793
      %v1795 = vpop.f32.mrb[0].mxu0
      %1796 = vmatprep.mubr.bf16.mxu0 0
      %1797 = vmatmul.mubr.bf16.gmra.mrb[0].mxu0 %v1088
      %v1798 = vpop.f32.mrb[0].mxu0
      %v1799 = vadd.f32 0.0, %v1798
      %v1800 = vpop.f32.mrb[0].mxu0
      %v1801 = vpop.f32.mrb[0].mxu0
      %v1802 = vadd.f32 0.0, %v1801
      %v1803 = vpop.f32.mrb[0].mxu0
      %1804 = vmatprep.mubr.bf16.mxu0 0
      %1805 = vmatmul.mubr.bf16.gmra.mrb[0].mxu0 %v1091
      %v1806 = vpop.f32.mrb[0].mxu0
      %v1807 = vadd.f32 0.0, %v1806
      %v1808 = vpop.f32.mrb[0].mxu0
      %v1809 = vpop.f32.mrb[0].mxu0
      %v1810 = vadd.f32 0.0, %v1809
      %v1811 = vpop.f32.mrb[0].mxu0
      %1812 = vmatprep.mubr.bf16.mxu0 0
      %1813 = vmatmul.mubr.bf16.gmra.mrb[0].mxu0 %v1094
      %v1814 = vpop.f32.mrb[0].mxu0
      %v1815 = vadd.f32 0.0, %v1814
      %v1816 = vpop.f32.mrb[0].mxu0
      %v1817 = vpop.f32.mrb[0].mxu0
      %v1818 = vadd.f32 0.0, %v1817
      %v1819 = vpop.f32.mrb[0].mxu0
      %1820 = vmatprep.mubr.bf16.mxu0 0
      %1821 = vmatmul.mubr.bf16.gmra.mrb[0].mxu0 %v1097
      %v1822 = vpop.f32.mrb[0].mxu0
      %v1823 = vadd.f32 0.0, %v1822
      %v1824 = vpop.f32.mrb[0].mxu0
      %v1825 = vpop.f32.mrb[0].mxu0
      %v1826 = vadd.f32 0.0, %v1825
      %v1827 = vpop.f32.mrb[0].mxu0
      %1828 = vmatprep.mubr.bf16.mxu0 0
      %1829 = vmatmul.mubr.bf16.gmra.mrb[0].mxu0 %v1100
      %v1830 = vpop.f32.mrb[0].mxu0
      %v1831 = vadd.f32 0.0, %v1830
      %v1832 = vpop.f32.mrb[0].mxu0
      %v1833 = vpop.f32.mrb[0].mxu0
      %v1834 = vadd.f32 0.0, %v1833
      %v1835 = vpop.f32.mrb[0].mxu0
      %1836 = vmatprep.mubr.bf16.mxu0 0
      %1837 = vmatmul.mubr.bf16.gmra.mrb[0].mxu0 %v1103
      %v1838 = vpop.f32.mrb[0].mxu0
      %v1839 = vadd.f32 0.0, %v1838
      %v1840 = vpop.f32.mrb[0].mxu0
      %v1841 = vpop.f32.mrb[0].mxu0
      %v1842 = vadd.f32 0.0, %v1841
      %v1843 = vpop.f32.mrb[0].mxu0
      %1844 = vmatprep.mubr.bf16.mxu0 0
      %1845 = vmatmul.mubr.bf16.gmra.mrb[0].mxu0 %v1106
      %v1846 = vpop.f32.mrb[0].mxu0
      %v1847 = vadd.f32 0.0, %v1846
      %v1848 = vpop.f32.mrb[0].mxu0
      %v1849 = vpop.f32.mrb[0].mxu0
      %v1850 = vadd.f32 0.0, %v1849
      %v1851 = vpop.f32.mrb[0].mxu0
      %1852 = vmatprep.mubr.bf16.mxu0 0
      %1853 = vmatmul.mubr.bf16.gmra.mrb[0].mxu0 %v1109
      %v1854 = vpop.f32.mrb[0].mxu0
      %v1855 = vadd.f32 0.0, %v1854
      %v1856 = vpop.f32.mrb[0].mxu0
      %v1857 = vpop.f32.mrb[0].mxu0
      %v1858 = vadd.f32 0.0, %v1857
      %v1859 = vpop.f32.mrb[0].mxu0
      %1860 = vmatprep.mubr.bf16.mxu0 0
      %1861 = vmatmul.mubr.bf16.gmra.mrb[0].mxu0 %v1112
      %v1862 = vpop.f32.mrb[0].mxu0
      %v1863 = vadd.f32 0.0, %v1862
      %v1864 = vpop.f32.mrb[0].mxu0
      %v1865 = vpop.f32.mrb[0].mxu0
      %v1866 = vadd.f32 0.0, %v1865
      %v1867 = vpop.f32.mrb[0].mxu0
      %1868 = vmatprep.mubr.bf16.mxu0 0
      %1869 = vmatmul.mubr.bf16.gmra.mrb[0].mxu0 %v1711
      %v1870 = vpop.f32.mrb[0].mxu0
      %v1871 = vadd.f32 0.0, %v1870
      %v1872 = vpop.f32.mrb[0].mxu0
      %v1873 = vpop.f32.mrb[0].mxu0
      %v1874 = vadd.f32 0.0, %v1873
      %v1875 = vpop.f32.mrb[0].mxu0
      %1876 = vdwg.mxu0
      %v1877 = vadd.f32 %v1671, %v1751
      %v1878 = vadd.f32 %v1672, %v1754
      %v1879 = vadd.f32 %v1673, %v1759
      %v1880 = vadd.f32 %v1674, %v1762
      %v1881 = vadd.f32 %v1675, %v1767
      %v1882 = vadd.f32 %v1676, %v1770
      %v1883 = vadd.f32 %v1677, %v1775
      %v1884 = vadd.f32 %v1678, %v1778
      %v1885 = vadd.f32 %v1679, %v1783
      %v1886 = vadd.f32 %v1680, %v1786
      %v1887 = vadd.f32 %v1681, %v1791
      %v1888 = vadd.f32 %v1682, %v1794
      %v1889 = vadd.f32 %v1683, %v1799
      %v1890 = vadd.f32 %v1684, %v1802
      %v1891 = vadd.f32 %v1685, %v1807
      %v1892 = vadd.f32 %v1686, %v1810
      %v1893 = vadd.f32 %v1687, %v1815
      %v1894 = vadd.f32 %v1688, %v1818
      %v1895 = vadd.f32 %v1689, %v1823
      %v1896 = vadd.f32 %v1690, %v1826
      %v1897 = vadd.f32 %v1691, %v1831
      %v1898 = vadd.f32 %v1692, %v1834
      %v1899 = vadd.f32 %v1693, %v1839
      %v1900 = vadd.f32 %v1694, %v1842
      %v1901 = vadd.f32 %v1695, %v1847
      %v1902 = vadd.f32 %v1696, %v1850
      %v1903 = vadd.f32 %v1697, %v1855
      %v1904 = vadd.f32 %v1698, %v1858
      %v1905 = vadd.f32 %v1699, %v1863
      %v1906 = vadd.f32 %v1700, %v1866
      %v1907 = vadd.f32 %v1701, %v1871
      %v1908 = vadd.f32 %v1702, %v1874
      %v1910 = vshrl.u32 %v328, 16
      %v1912 = vrot.slane %v1910, 4
      %v1913 = vshll.u32 %v328, 16
      %v1915 = vrot.slane %v1913, 5
      %v1916 = vor.u32 %v1912, %v1915
      %v1917 = vrot.slane %v1916, 4
      %v1919 = vshll.u32 %v329, 16
      %v1921 = vrot.slane %v1919, 5
      %v1922 = vsel %vm337, %v1917, %v1921
      %v1923 = vshrl.u32 %v329, 16
      %v1925 = vrot.slane %v1923, 4
      %v1926 = vor.u32 %v1925, %v1921
      %v1927 = vrot.slane %v1926, 4
      %v1929 = vshll.u32 %v330, 16
      %v1931 = vrot.slane %v1929, 5
      %v1932 = vsel %vm337, %v1927, %v1931
      %s1933 = scalar_lea.vmem %s1, 16
      %v1934 = vld [vmem:[%s1933] sm:$0xf]
      %v1935 = vunpack.c.l.b16 %v1922
      %v1936 = vunpack.c.l.b16 %v1932
      %v1937 = vpack.c.b16 %v1936, %v1935
      %v1939 = vsel %vm772, %v1937, 0
      %v1942 = vsel %vm821, %v1934, 0
      %1944 = vmatprep.subr.bf16.mxu0 0
      %1945 = vmatpush1.bf16.msra.mxu0 %v1942
      %1946 = vmatprep.subr.bf16.mxu0 0
      %1947 = vmatpush1.bf16.msra.mxu0 0
      %1948 = vmatprep.subr.bf16.mxu0 0
      %1949 = vmatpush1.bf16.msra.mxu0 0
      %1950 = vmatprep.subr.bf16.mxu0 0
      %1951 = vmatpush1.bf16.msra.mxu0 0
      %1952 = vmatprep.subr.bf16.mxu0 0
      %1953 = vmatpush1.bf16.msra.mxu0 0
      %1954 = vmatprep.subr.bf16.mxu0 0
      %1955 = vmatpush1.bf16.msra.mxu0 0
      %1956 = vmatprep.subr.bf16.mxu0 0
      %1957 = vmatpush1.bf16.msra.mxu0 0
      %1958 = vmatprep.subr.bf16.mxu0 0
      %1959 = vmatpush1.bf16.msra.mxu0 0
      %1960 = vmatprep.subr.bf16.mxu0 0
      %1961 = vmatpush1.bf16.msra.mxu0 0
      %1962 = vmatprep.subr.bf16.mxu0 0
      %1963 = vmatpush1.bf16.msra.mxu0 0
      %1964 = vmatprep.subr.bf16.mxu0 0
      %1965 = vmatpush1.bf16.msra.mxu0 0
      %1966 = vmatprep.subr.bf16.mxu0 0
      %1967 = vmatpush1.bf16.msra.mxu0 0
      %1968 = vmatprep.subr.bf16.mxu0 0
      %1969 = vmatpush1.bf16.msra.mxu0 0
      %1970 = vmatprep.subr.bf16.mxu0 0
      %1971 = vmatpush1.bf16.msra.mxu0 0
      %1972 = vmatprep.subr.bf16.mxu0 0
      %1973 = vmatpush1.bf16.msra.mxu0 0
      %1974 = vmatprep.subr.bf16.mxu0 0
      %1975 = vmatpush1.bf16.msra.mxu0 0
      %1976 = vmatprep.mubr.bf16.mxu0 0
      %1977 = vmatmul.mubr.bf16.gmra.mrb[0].mxu0 %v777
      %v1978 = vpop.f32.mrb[0].mxu0
      %v1979 = vadd.f32 0.0, %v1978
      %v1980 = vpop.f32.mrb[0].mxu0
      %v1981 = vpop.f32.mrb[0].mxu0
      %v1982 = vadd.f32 0.0, %v1981
      %v1983 = vpop.f32.mrb[0].mxu0
      %1984 = vmatprep.mubr.bf16.mxu0 0
      %1985 = vmatmul.mubr.bf16.gmra.mrb[0].mxu0 %v780
      %v1986 = vpop.f32.mrb[0].mxu0
      %v1987 = vadd.f32 0.0, %v1986
      %v1988 = vpop.f32.mrb[0].mxu0
      %v1989 = vpop.f32.mrb[0].mxu0
      %v1990 = vadd.f32 0.0, %v1989
      %v1991 = vpop.f32.mrb[0].mxu0
      %1992 = vmatprep.mubr.bf16.mxu0 0
      %1993 = vmatmul.mubr.bf16.gmra.mrb[0].mxu0 %v783
      %v1994 = vpop.f32.mrb[0].mxu0
      %v1995 = vadd.f32 0.0, %v1994
      %v1996 = vpop.f32.mrb[0].mxu0
      %v1997 = vpop.f32.mrb[0].mxu0
      %v1998 = vadd.f32 0.0, %v1997
      %v1999 = vpop.f32.mrb[0].mxu0
      %2000 = vmatprep.mubr.bf16.mxu0 0
      %2001 = vmatmul.mubr.bf16.gmra.mrb[0].mxu0 %v786
      %v2002 = vpop.f32.mrb[0].mxu0
      %v2003 = vadd.f32 0.0, %v2002
      %v2004 = vpop.f32.mrb[0].mxu0
      %v2005 = vpop.f32.mrb[0].mxu0
      %v2006 = vadd.f32 0.0, %v2005
      %v2007 = vpop.f32.mrb[0].mxu0
      %2008 = vmatprep.mubr.bf16.mxu0 0
      %2009 = vmatmul.mubr.bf16.gmra.mrb[0].mxu0 %v789
      %v2010 = vpop.f32.mrb[0].mxu0
      %v2011 = vadd.f32 0.0, %v2010
      %v2012 = vpop.f32.mrb[0].mxu0
      %v2013 = vpop.f32.mrb[0].mxu0
      %v2014 = vadd.f32 0.0, %v2013
      %v2015 = vpop.f32.mrb[0].mxu0
      %2016 = vmatprep.mubr.bf16.mxu0 0
      %2017 = vmatmul.mubr.bf16.gmra.mrb[0].mxu0 %v792
      %v2018 = vpop.f32.mrb[0].mxu0
      %v2019 = vadd.f32 0.0, %v2018
      %v2020 = vpop.f32.mrb[0].mxu0
      %v2021 = vpop.f32.mrb[0].mxu0
      %v2022 = vadd.f32 0.0, %v2021
      %v2023 = vpop.f32.mrb[0].mxu0
      %2024 = vmatprep.mubr.bf16.mxu0 0
      %2025 = vmatmul.mubr.bf16.gmra.mrb[0].mxu0 %v795
      %v2026 = vpop.f32.mrb[0].mxu0
      %v2027 = vadd.f32 0.0, %v2026
      %v2028 = vpop.f32.mrb[0].mxu0
      %v2029 = vpop.f32.mrb[0].mxu0
      %v2030 = vadd.f32 0.0, %v2029
      %v2031 = vpop.f32.mrb[0].mxu0
      %2032 = vmatprep.mubr.bf16.mxu0 0
      %2033 = vmatmul.mubr.bf16.gmra.mrb[0].mxu0 %v798
      %v2034 = vpop.f32.mrb[0].mxu0
      %v2035 = vadd.f32 0.0, %v2034
      %v2036 = vpop.f32.mrb[0].mxu0
      %v2037 = vpop.f32.mrb[0].mxu0
      %v2038 = vadd.f32 0.0, %v2037
      %v2039 = vpop.f32.mrb[0].mxu0
      %2040 = vmatprep.mubr.bf16.mxu0 0
      %2041 = vmatmul.mubr.bf16.gmra.mrb[0].mxu0 %v801
      %v2042 = vpop.f32.mrb[0].mxu0
      %v2043 = vadd.f32 0.0, %v2042
      %v2044 = vpop.f32.mrb[0].mxu0
      %v2045 = vpop.f32.mrb[0].mxu0
      %v2046 = vadd.f32 0.0, %v2045
      %v2047 = vpop.f32.mrb[0].mxu0
      %2048 = vmatprep.mubr.bf16.mxu0 0
      %2049 = vmatmul.mubr.bf16.gmra.mrb[0].mxu0 %v804
      %v2050 = vpop.f32.mrb[0].mxu0
      %v2051 = vadd.f32 0.0, %v2050
      %v2052 = vpop.f32.mrb[0].mxu0
      %v2053 = vpop.f32.mrb[0].mxu0
      %v2054 = vadd.f32 0.0, %v2053
      %v2055 = vpop.f32.mrb[0].mxu0
      %2056 = vmatprep.mubr.bf16.mxu0 0
      %2057 = vmatmul.mubr.bf16.gmra.mrb[0].mxu0 %v807
      %v2058 = vpop.f32.mrb[0].mxu0
      %v2059 = vadd.f32 0.0, %v2058
      %v2060 = vpop.f32.mrb[0].mxu0
      %v2061 = vpop.f32.mrb[0].mxu0
      %v2062 = vadd.f32 0.0, %v2061
      %v2063 = vpop.f32.mrb[0].mxu0
      %2064 = vmatprep.mubr.bf16.mxu0 0
      %2065 = vmatmul.mubr.bf16.gmra.mrb[0].mxu0 %v810
      %v2066 = vpop.f32.mrb[0].mxu0
      %v2067 = vadd.f32 0.0, %v2066
      %v2068 = vpop.f32.mrb[0].mxu0
      %v2069 = vpop.f32.mrb[0].mxu0
      %v2070 = vadd.f32 0.0, %v2069
      %v2071 = vpop.f32.mrb[0].mxu0
      %2072 = vmatprep.mubr.bf16.mxu0 0
      %2073 = vmatmul.mubr.bf16.gmra.mrb[0].mxu0 %v813
      %v2074 = vpop.f32.mrb[0].mxu0
      %v2075 = vadd.f32 0.0, %v2074
      %v2076 = vpop.f32.mrb[0].mxu0
      %v2077 = vpop.f32.mrb[0].mxu0
      %v2078 = vadd.f32 0.0, %v2077
      %v2079 = vpop.f32.mrb[0].mxu0
      %2080 = vmatprep.mubr.bf16.mxu0 0
      %2081 = vmatmul.mubr.bf16.gmra.mrb[0].mxu0 %v816
      %v2082 = vpop.f32.mrb[0].mxu0
      %v2083 = vadd.f32 0.0, %v2082
      %v2084 = vpop.f32.mrb[0].mxu0
      %v2085 = vpop.f32.mrb[0].mxu0
      %v2086 = vadd.f32 0.0, %v2085
      %v2087 = vpop.f32.mrb[0].mxu0
      %2088 = vmatprep.mubr.bf16.mxu0 0
      %2089 = vmatmul.mubr.bf16.gmra.mrb[0].mxu0 %v819
      %v2090 = vpop.f32.mrb[0].mxu0
      %v2091 = vadd.f32 0.0, %v2090
      %v2092 = vpop.f32.mrb[0].mxu0
      %v2093 = vpop.f32.mrb[0].mxu0
      %v2094 = vadd.f32 0.0, %v2093
      %v2095 = vpop.f32.mrb[0].mxu0
      %2096 = vmatprep.mubr.bf16.mxu0 0
      %2097 = vmatmul.mubr.bf16.gmra.mrb[0].mxu0 %v1939
      %v2098 = vpop.f32.mrb[0].mxu0
      %v2099 = vadd.f32 0.0, %v2098
      %v2100 = vpop.f32.mrb[0].mxu0
      %v2101 = vpop.f32.mrb[0].mxu0
      %v2102 = vadd.f32 0.0, %v2101
      %v2103 = vpop.f32.mrb[0].mxu0
      %2104 = vdwg.mxu0
      %v2105 = vadd.f32 %v1877, %v1979
      %v2106 = vadd.f32 %v1878, %v1982
      %v2107 = vadd.f32 %v1879, %v1987
      %v2108 = vadd.f32 %v1880, %v1990
      %v2109 = vadd.f32 %v1881, %v1995
      %v2110 = vadd.f32 %v1882, %v1998
      %v2111 = vadd.f32 %v1883, %v2003
      %v2112 = vadd.f32 %v1884, %v2006
      %v2113 = vadd.f32 %v1885, %v2011
      %v2114 = vadd.f32 %v1886, %v2014
      %v2115 = vadd.f32 %v1887, %v2019
      %v2116 = vadd.f32 %v1888, %v2022
      %v2117 = vadd.f32 %v1889, %v2027
      %v2118 = vadd.f32 %v1890, %v2030
      %v2119 = vadd.f32 %v1891, %v2035
      %v2120 = vadd.f32 %v1892, %v2038
      %v2121 = vadd.f32 %v1893, %v2043
      %v2122 = vadd.f32 %v1894, %v2046
      %v2123 = vadd.f32 %v1895, %v2051
      %v2124 = vadd.f32 %v1896, %v2054
      %v2125 = vadd.f32 %v1897, %v2059
      %v2126 = vadd.f32 %v1898, %v2062
      %v2127 = vadd.f32 %v1899, %v2067
      %v2128 = vadd.f32 %v1900, %v2070
      %v2129 = vadd.f32 %v1901, %v2075
      %v2130 = vadd.f32 %v1902, %v2078
      %v2131 = vadd.f32 %v1903, %v2083
      %v2132 = vadd.f32 %v1904, %v2086
      %v2133 = vadd.f32 %v1905, %v2091
      %v2134 = vadd.f32 %v1906, %v2094
      %v2135 = vadd.f32 %v1907, %v2099
      %v2136 = vadd.f32 %v1908, %v2102
      %v2138 = vrot.slane %v328, 5
      %v2139 = vrot.slane %v2138, 4
      %v2140 = vrot.slane %v329, 5
      %v2141 = vsel %vm1296, %v2139, %v2140
      %v2142 = vrot.slane %v2140, 4
      %v2143 = vrot.slane %v330, 5
      %v2144 = vsel %vm1296, %v2142, %v2143
      %s2145 = scalar_lea.vmem %s1, 20
      %v2146 = vld [vmem:[%s2145] sm:$0xf]
      %v2147 = vunpack.c.l.b16 %v2141
      %v2148 = vunpack.c.l.b16 %v2144
      %v2149 = vpack.c.b16 %v2148, %v2147
      %v2151 = vsel %vm772, %v2149, 0
      %v2154 = vsel %vm821, %v2146, 0
      %2156 = vmatprep.subr.bf16.mxu0 0
      %2157 = vmatpush1.bf16.msra.mxu0 %v2154
      %2158 = vmatprep.subr.bf16.mxu0 0
      %2159 = vmatpush1.bf16.msra.mxu0 0
      %2160 = vmatprep.subr.bf16.mxu0 0
      %2161 = vmatpush1.bf16.msra.mxu0 0
      %2162 = vmatprep.subr.bf16.mxu0 0
      %2163 = vmatpush1.bf16.msra.mxu0 0
      %2164 = vmatprep.subr.bf16.mxu0 0
      %2165 = vmatpush1.bf16.msra.mxu0 0
      %2166 = vmatprep.subr.bf16.mxu0 0
      %2167 = vmatpush1.bf16.msra.mxu0 0
      %2168 = vmatprep.subr.bf16.mxu0 0
      %2169 = vmatpush1.bf16.msra.mxu0 0
      %2170 = vmatprep.subr.bf16.mxu0 0
      %2171 = vmatpush1.bf16.msra.mxu0 0
      %2172 = vmatprep.subr.bf16.mxu0 0
      %2173 = vmatpush1.bf16.msra.mxu0 0
      %2174 = vmatprep.subr.bf16.mxu0 0
      %2175 = vmatpush1.bf16.msra.mxu0 0
      %2176 = vmatprep.subr.bf16.mxu0 0
      %2177 = vmatpush1.bf16.msra.mxu0 0
      %2178 = vmatprep.subr.bf16.mxu0 0
      %2179 = vmatpush1.bf16.msra.mxu0 0
      %2180 = vmatprep.subr.bf16.mxu0 0
      %2181 = vmatpush1.bf16.msra.mxu0 0
      %2182 = vmatprep.subr.bf16.mxu0 0
      %2183 = vmatpush1.bf16.msra.mxu0 0
      %2184 = vmatprep.subr.bf16.mxu0 0
      %2185 = vmatpush1.bf16.msra.mxu0 0
      %2186 = vmatprep.subr.bf16.mxu0 0
      %2187 = vmatpush1.bf16.msra.mxu0 0
      %2188 = vmatprep.mubr.bf16.mxu0 0
      %2189 = vmatmul.mubr.bf16.gmra.mrb[0].mxu0 %v1463
      %v2190 = vpop.f32.mrb[0].mxu0
      %v2191 = vadd.f32 0.0, %v2190
      %v2192 = vpop.f32.mrb[0].mxu0
      %v2193 = vpop.f32.mrb[0].mxu0
      %v2194 = vadd.f32 0.0, %v2193
      %v2195 = vpop.f32.mrb[0].mxu0
      %2196 = vmatprep.mubr.bf16.mxu0 0
      %2197 = vmatmul.mubr.bf16.gmra.mrb[0].mxu0 %v1466
      %v2198 = vpop.f32.mrb[0].mxu0
      %v2199 = vadd.f32 0.0, %v2198
      %v2200 = vpop.f32.mrb[0].mxu0
      %v2201 = vpop.f32.mrb[0].mxu0
      %v2202 = vadd.f32 0.0, %v2201
      %v2203 = vpop.f32.mrb[0].mxu0
      %2204 = vmatprep.mubr.bf16.mxu0 0
      %2205 = vmatmul.mubr.bf16.gmra.mrb[0].mxu0 %v1469
      %v2206 = vpop.f32.mrb[0].mxu0
      %v2207 = vadd.f32 0.0, %v2206
      %v2208 = vpop.f32.mrb[0].mxu0
      %v2209 = vpop.f32.mrb[0].mxu0
      %v2210 = vadd.f32 0.0, %v2209
      %v2211 = vpop.f32.mrb[0].mxu0
      %2212 = vmatprep.mubr.bf16.mxu0 0
      %2213 = vmatmul.mubr.bf16.gmra.mrb[0].mxu0 %v1472
      %v2214 = vpop.f32.mrb[0].mxu0
      %v2215 = vadd.f32 0.0, %v2214
      %v2216 = vpop.f32.mrb[0].mxu0
      %v2217 = vpop.f32.mrb[0].mxu0
      %v2218 = vadd.f32 0.0, %v2217
      %v2219 = vpop.f32.mrb[0].mxu0
      %2220 = vmatprep.mubr.bf16.mxu0 0
      %2221 = vmatmul.mubr.bf16.gmra.mrb[0].mxu0 %v1475
      %v2222 = vpop.f32.mrb[0].mxu0
      %v2223 = vadd.f32 0.0, %v2222
      %v2224 = vpop.f32.mrb[0].mxu0
      %v2225 = vpop.f32.mrb[0].mxu0
      %v2226 = vadd.f32 0.0, %v2225
      %v2227 = vpop.f32.mrb[0].mxu0
      %2228 = vmatprep.mubr.bf16.mxu0 0
      %2229 = vmatmul.mubr.bf16.gmra.mrb[0].mxu0 %v1478
      %v2230 = vpop.f32.mrb[0].mxu0
      %v2231 = vadd.f32 0.0, %v2230
      %v2232 = vpop.f32.mrb[0].mxu0
      %v2233 = vpop.f32.mrb[0].mxu0
      %v2234 = vadd.f32 0.0, %v2233
      %v2235 = vpop.f32.mrb[0].mxu0
      %2236 = vmatprep.mubr.bf16.mxu0 0
      %2237 = vmatmul.mubr.bf16.gmra.mrb[0].mxu0 %v1481
      %v2238 = vpop.f32.mrb[0].mxu0
      %v2239 = vadd.f32 0.0, %v2238
      %v2240 = vpop.f32.mrb[0].mxu0
      %v2241 = vpop.f32.mrb[0].mxu0
      %v2242 = vadd.f32 0.0, %v2241
      %v2243 = vpop.f32.mrb[0].mxu0
      %2244 = vmatprep.mubr.bf16.mxu0 0
      %2245 = vmatmul.mubr.bf16.gmra.mrb[0].mxu0 %v1484
      %v2246 = vpop.f32.mrb[0].mxu0
      %v2247 = vadd.f32 0.0, %v2246
      %v2248 = vpop.f32.mrb[0].mxu0
      %v2249 = vpop.f32.mrb[0].mxu0
      %v2250 = vadd.f32 0.0, %v2249
      %v2251 = vpop.f32.mrb[0].mxu0
      %2252 = vmatprep.mubr.bf16.mxu0 0
      %2253 = vmatmul.mubr.bf16.gmra.mrb[0].mxu0 %v1487
      %v2254 = vpop.f32.mrb[0].mxu0
      %v2255 = vadd.f32 0.0, %v2254
      %v2256 = vpop.f32.mrb[0].mxu0
      %v2257 = vpop.f32.mrb[0].mxu0
      %v2258 = vadd.f32 0.0, %v2257
      %v2259 = vpop.f32.mrb[0].mxu0
      %2260 = vmatprep.mubr.bf16.mxu0 0
      %2261 = vmatmul.mubr.bf16.gmra.mrb[0].mxu0 %v1490
      %v2262 = vpop.f32.mrb[0].mxu0
      %v2263 = vadd.f32 0.0, %v2262
      %v2264 = vpop.f32.mrb[0].mxu0
      %v2265 = vpop.f32.mrb[0].mxu0
      %v2266 = vadd.f32 0.0, %v2265
      %v2267 = vpop.f32.mrb[0].mxu0
      %2268 = vmatprep.mubr.bf16.mxu0 0
      %2269 = vmatmul.mubr.bf16.gmra.mrb[0].mxu0 %v1493
      %v2270 = vpop.f32.mrb[0].mxu0
      %v2271 = vadd.f32 0.0, %v2270
      %v2272 = vpop.f32.mrb[0].mxu0
      %v2273 = vpop.f32.mrb[0].mxu0
      %v2274 = vadd.f32 0.0, %v2273
      %v2275 = vpop.f32.mrb[0].mxu0
      %2276 = vmatprep.mubr.bf16.mxu0 0
      %2277 = vmatmul.mubr.bf16.gmra.mrb[0].mxu0 %v1496
      %v2278 = vpop.f32.mrb[0].mxu0
      %v2279 = vadd.f32 0.0, %v2278
      %v2280 = vpop.f32.mrb[0].mxu0
      %v2281 = vpop.f32.mrb[0].mxu0
      %v2282 = vadd.f32 0.0, %v2281
      %v2283 = vpop.f32.mrb[0].mxu0
      %2284 = vmatprep.mubr.bf16.mxu0 0
      %2285 = vmatmul.mubr.bf16.gmra.mrb[0].mxu0 %v1499
      %v2286 = vpop.f32.mrb[0].mxu0
      %v2287 = vadd.f32 0.0, %v2286
      %v2288 = vpop.f32.mrb[0].mxu0
      %v2289 = vpop.f32.mrb[0].mxu0
      %v2290 = vadd.f32 0.0, %v2289
      %v2291 = vpop.f32.mrb[0].mxu0
      %2292 = vmatprep.mubr.bf16.mxu0 0
      %2293 = vmatmul.mubr.bf16.gmra.mrb[0].mxu0 %v1502
      %v2294 = vpop.f32.mrb[0].mxu0
      %v2295 = vadd.f32 0.0, %v2294
      %v2296 = vpop.f32.mrb[0].mxu0
      %v2297 = vpop.f32.mrb[0].mxu0
      %v2298 = vadd.f32 0.0, %v2297
      %v2299 = vpop.f32.mrb[0].mxu0
      %2300 = vmatprep.mubr.bf16.mxu0 0
      %2301 = vmatmul.mubr.bf16.gmra.mrb[0].mxu0 %v1505
      %v2302 = vpop.f32.mrb[0].mxu0
      %v2303 = vadd.f32 0.0, %v2302
      %v2304 = vpop.f32.mrb[0].mxu0
      %v2305 = vpop.f32.mrb[0].mxu0
      %v2306 = vadd.f32 0.0, %v2305
      %v2307 = vpop.f32.mrb[0].mxu0
      %2308 = vmatprep.mubr.bf16.mxu0 0
      %2309 = vmatmul.mubr.bf16.gmra.mrb[0].mxu0 %v2151
      %v2310 = vpop.f32.mrb[0].mxu0
      %v2311 = vadd.f32 0.0, %v2310
      %v2312 = vpop.f32.mrb[0].mxu0
      %v2313 = vpop.f32.mrb[0].mxu0
      %v2314 = vadd.f32 0.0, %v2313
      %v2315 = vpop.f32.mrb[0].mxu0
      %2316 = vdwg.mxu0
      %v2317 = vadd.f32 %v2105, %v2191
      %v2318 = vadd.f32 %v2106, %v2194
      %v2319 = vadd.f32 %v2107, %v2199
      %v2320 = vadd.f32 %v2108, %v2202
      %v2321 = vadd.f32 %v2109, %v2207
      %v2322 = vadd.f32 %v2110, %v2210
      %v2323 = vadd.f32 %v2111, %v2215
      %v2324 = vadd.f32 %v2112, %v2218
      %v2325 = vadd.f32 %v2113, %v2223
      %v2326 = vadd.f32 %v2114, %v2226
      %v2327 = vadd.f32 %v2115, %v2231
      %v2328 = vadd.f32 %v2116, %v2234
      %v2329 = vadd.f32 %v2117, %v2239
      %v2330 = vadd.f32 %v2118, %v2242
      %v2331 = vadd.f32 %v2119, %v2247
      %v2332 = vadd.f32 %v2120, %v2250
      %v2333 = vadd.f32 %v2121, %v2255
      %v2334 = vadd.f32 %v2122, %v2258
      %v2335 = vadd.f32 %v2123, %v2263
      %v2336 = vadd.f32 %v2124, %v2266
      %v2337 = vadd.f32 %v2125, %v2271
      %v2338 = vadd.f32 %v2126, %v2274
      %v2339 = vadd.f32 %v2127, %v2279
      %v2340 = vadd.f32 %v2128, %v2282
      %v2341 = vadd.f32 %v2129, %v2287
      %v2342 = vadd.f32 %v2130, %v2290
      %v2343 = vadd.f32 %v2131, %v2295
      %v2344 = vadd.f32 %v2132, %v2298
      %v2345 = vadd.f32 %v2133, %v2303
      %v2346 = vadd.f32 %v2134, %v2306
      %v2347 = vadd.f32 %v2135, %v2311
      %v2348 = vadd.f32 %v2136, %v2314
      %s2349 = scalar_lea.vmem %s1, 24
      %v2350 = vld [vmem:[%s2349] sm:$0xf]
      %v2353 = vunpack.c.l.b16 %v331
      %v2354 = vunpack.c.l.b16 %v332
      %v2355 = vpack.c.b16 %v2354, %v2353
      %v2357 = vsel %vm772, %v2355, 0
      %v2360 = vsel %vm821, %v2350, 0
      %2362 = vmatprep.subr.bf16.mxu0 0
      %2363 = vmatpush1.bf16.msra.mxu0 %v2360
      %2364 = vmatprep.subr.bf16.mxu0 0
      %2365 = vmatpush1.bf16.msra.mxu0 0
      %2366 = vmatprep.subr.bf16.mxu0 0
      %2367 = vmatpush1.bf16.msra.mxu0 0
      %2368 = vmatprep.subr.bf16.mxu0 0
      %2369 = vmatpush1.bf16.msra.mxu0 0
      %2370 = vmatprep.subr.bf16.mxu0 0
      %2371 = vmatpush1.bf16.msra.mxu0 0
      %2372 = vmatprep.subr.bf16.mxu0 0
      %2373 = vmatpush1.bf16.msra.mxu0 0
      %2374 = vmatprep.subr.bf16.mxu0 0
      %2375 = vmatpush1.bf16.msra.mxu0 0
      %2376 = vmatprep.subr.bf16.mxu0 0
      %2377 = vmatpush1.bf16.msra.mxu0 0
      %2378 = vmatprep.subr.bf16.mxu0 0
      %2379 = vmatpush1.bf16.msra.mxu0 0
      %2380 = vmatprep.subr.bf16.mxu0 0
      %2381 = vmatpush1.bf16.msra.mxu0 0
      %2382 = vmatprep.subr.bf16.mxu0 0
      %2383 = vmatpush1.bf16.msra.mxu0 0
      %2384 = vmatprep.subr.bf16.mxu0 0
      %2385 = vmatpush1.bf16.msra.mxu0 0
      %2386 = vmatprep.subr.bf16.mxu0 0
      %2387 = vmatpush1.bf16.msra.mxu0 0
      %2388 = vmatprep.subr.bf16.mxu0 0
      %2389 = vmatpush1.bf16.msra.mxu0 0
      %2390 = vmatprep.subr.bf16.mxu0 0
      %2391 = vmatpush1.bf16.msra.mxu0 0
      %2392 = vmatprep.subr.bf16.mxu0 0
      %2393 = vmatpush1.bf16.msra.mxu0 0
      %2394 = vmatprep.mubr.bf16.mxu0 0
      %2395 = vmatmul.mubr.bf16.gmra.mrb[0].mxu0 %v1073
      %v2396 = vpop.f32.mrb[0].mxu0
      %v2397 = vadd.f32 0.0, %v2396
      %v2398 = vpop.f32.mrb[0].mxu0
      %v2399 = vpop.f32.mrb[0].mxu0
      %v2400 = vadd.f32 0.0, %v2399
      %v2401 = vpop.f32.mrb[0].mxu0
      %2402 = vmatprep.mubr.bf16.mxu0 0
      %2403 = vmatmul.mubr.bf16.gmra.mrb[0].mxu0 %v1076
      %v2404 = vpop.f32.mrb[0].mxu0
      %v2405 = vadd.f32 0.0, %v2404
      %v2406 = vpop.f32.mrb[0].mxu0
      %v2407 = vpop.f32.mrb[0].mxu0
      %v2408 = vadd.f32 0.0, %v2407
      %v2409 = vpop.f32.mrb[0].mxu0
      %2410 = vmatprep.mubr.bf16.mxu0 0
      %2411 = vmatmul.mubr.bf16.gmra.mrb[0].mxu0 %v1079
      %v2412 = vpop.f32.mrb[0].mxu0
      %v2413 = vadd.f32 0.0, %v2412
      %v2414 = vpop.f32.mrb[0].mxu0
      %v2415 = vpop.f32.mrb[0].mxu0
      %v2416 = vadd.f32 0.0, %v2415
      %v2417 = vpop.f32.mrb[0].mxu0
      %2418 = vmatprep.mubr.bf16.mxu0 0
      %2419 = vmatmul.mubr.bf16.gmra.mrb[0].mxu0 %v1082
      %v2420 = vpop.f32.mrb[0].mxu0
      %v2421 = vadd.f32 0.0, %v2420
      %v2422 = vpop.f32.mrb[0].mxu0
      %v2423 = vpop.f32.mrb[0].mxu0
      %v2424 = vadd.f32 0.0, %v2423
      %v2425 = vpop.f32.mrb[0].mxu0
      %2426 = vmatprep.mubr.bf16.mxu0 0
      %2427 = vmatmul.mubr.bf16.gmra.mrb[0].mxu0 %v1085
      %v2428 = vpop.f32.mrb[0].mxu0
      %v2429 = vadd.f32 0.0, %v2428
      %v2430 = vpop.f32.mrb[0].mxu0
      %v2431 = vpop.f32.mrb[0].mxu0
      %v2432 = vadd.f32 0.0, %v2431
      %v2433 = vpop.f32.mrb[0].mxu0
      %2434 = vmatprep.mubr.bf16.mxu0 0
      %2435 = vmatmul.mubr.bf16.gmra.mrb[0].mxu0 %v1088
      %v2436 = vpop.f32.mrb[0].mxu0
      %v2437 = vadd.f32 0.0, %v2436
      %v2438 = vpop.f32.mrb[0].mxu0
      %v2439 = vpop.f32.mrb[0].mxu0
      %v2440 = vadd.f32 0.0, %v2439
      %v2441 = vpop.f32.mrb[0].mxu0
      %2442 = vmatprep.mubr.bf16.mxu0 0
      %2443 = vmatmul.mubr.bf16.gmra.mrb[0].mxu0 %v1091
      %v2444 = vpop.f32.mrb[0].mxu0
      %v2445 = vadd.f32 0.0, %v2444
      %v2446 = vpop.f32.mrb[0].mxu0
      %v2447 = vpop.f32.mrb[0].mxu0
      %v2448 = vadd.f32 0.0, %v2447
      %v2449 = vpop.f32.mrb[0].mxu0
      %2450 = vmatprep.mubr.bf16.mxu0 0
      %2451 = vmatmul.mubr.bf16.gmra.mrb[0].mxu0 %v1094
      %v2452 = vpop.f32.mrb[0].mxu0
      %v2453 = vadd.f32 0.0, %v2452
      %v2454 = vpop.f32.mrb[0].mxu0
      %v2455 = vpop.f32.mrb[0].mxu0
      %v2456 = vadd.f32 0.0, %v2455
      %v2457 = vpop.f32.mrb[0].mxu0
      %2458 = vmatprep.mubr.bf16.mxu0 0
      %2459 = vmatmul.mubr.bf16.gmra.mrb[0].mxu0 %v1097
      %v2460 = vpop.f32.mrb[0].mxu0
      %v2461 = vadd.f32 0.0, %v2460
      %v2462 = vpop.f32.mrb[0].mxu0
      %v2463 = vpop.f32.mrb[0].mxu0
      %v2464 = vadd.f32 0.0, %v2463
      %v2465 = vpop.f32.mrb[0].mxu0
      %2466 = vmatprep.mubr.bf16.mxu0 0
      %2467 = vmatmul.mubr.bf16.gmra.mrb[0].mxu0 %v1100
      %v2468 = vpop.f32.mrb[0].mxu0
      %v2469 = vadd.f32 0.0, %v2468
      %v2470 = vpop.f32.mrb[0].mxu0
      %v2471 = vpop.f32.mrb[0].mxu0
      %v2472 = vadd.f32 0.0, %v2471
      %v2473 = vpop.f32.mrb[0].mxu0
      %2474 = vmatprep.mubr.bf16.mxu0 0
      %2475 = vmatmul.mubr.bf16.gmra.mrb[0].mxu0 %v1103
      %v2476 = vpop.f32.mrb[0].mxu0
      %v2477 = vadd.f32 0.0, %v2476
      %v2478 = vpop.f32.mrb[0].mxu0
      %v2479 = vpop.f32.mrb[0].mxu0
      %v2480 = vadd.f32 0.0, %v2479
      %v2481 = vpop.f32.mrb[0].mxu0
      %2482 = vmatprep.mubr.bf16.mxu0 0
      %2483 = vmatmul.mubr.bf16.gmra.mrb[0].mxu0 %v1106
      %v2484 = vpop.f32.mrb[0].mxu0
      %v2485 = vadd.f32 0.0, %v2484
      %v2486 = vpop.f32.mrb[0].mxu0
      %v2487 = vpop.f32.mrb[0].mxu0
      %v2488 = vadd.f32 0.0, %v2487
      %v2489 = vpop.f32.mrb[0].mxu0
      %2490 = vmatprep.mubr.bf16.mxu0 0
      %2491 = vmatmul.mubr.bf16.gmra.mrb[0].mxu0 %v1109
      %v2492 = vpop.f32.mrb[0].mxu0
      %v2493 = vadd.f32 0.0, %v2492
      %v2494 = vpop.f32.mrb[0].mxu0
      %v2495 = vpop.f32.mrb[0].mxu0
      %v2496 = vadd.f32 0.0, %v2495
      %v2497 = vpop.f32.mrb[0].mxu0
      %2498 = vmatprep.mubr.bf16.mxu0 0
      %2499 = vmatmul.mubr.bf16.gmra.mrb[0].mxu0 %v1112
      %v2500 = vpop.f32.mrb[0].mxu0
      %v2501 = vadd.f32 0.0, %v2500
      %v2502 = vpop.f32.mrb[0].mxu0
      %v2503 = vpop.f32.mrb[0].mxu0
      %v2504 = vadd.f32 0.0, %v2503
      %v2505 = vpop.f32.mrb[0].mxu0
      %2506 = vmatprep.mubr.bf16.mxu0 0
      %2507 = vmatmul.mubr.bf16.gmra.mrb[0].mxu0 %v1711
      %v2508 = vpop.f32.mrb[0].mxu0
      %v2509 = vadd.f32 0.0, %v2508
      %v2510 = vpop.f32.mrb[0].mxu0
      %v2511 = vpop.f32.mrb[0].mxu0
      %v2512 = vadd.f32 0.0, %v2511
      %v2513 = vpop.f32.mrb[0].mxu0
      %2514 = vmatprep.mubr.bf16.mxu0 0
      %2515 = vmatmul.mubr.bf16.gmra.mrb[0].mxu0 %v2357
      %v2516 = vpop.f32.mrb[0].mxu0
      %v2517 = vadd.f32 0.0, %v2516
      %v2518 = vpop.f32.mrb[0].mxu0
      %v2519 = vpop.f32.mrb[0].mxu0
      %v2520 = vadd.f32 0.0, %v2519
      %v2521 = vpop.f32.mrb[0].mxu0
      %2522 = vdwg.mxu0
      %v2523 = vadd.f32 %v2317, %v2397
      %v2524 = vadd.f32 %v2318, %v2400
      %v2525 = vadd.f32 %v2319, %v2405
      %v2526 = vadd.f32 %v2320, %v2408
      %v2527 = vadd.f32 %v2321, %v2413
      %v2528 = vadd.f32 %v2322, %v2416
      %v2529 = vadd.f32 %v2323, %v2421
      %v2530 = vadd.f32 %v2324, %v2424
      %v2531 = vadd.f32 %v2325, %v2429
      %v2532 = vadd.f32 %v2326, %v2432
      %v2533 = vadd.f32 %v2327, %v2437
      %v2534 = vadd.f32 %v2328, %v2440
      %v2535 = vadd.f32 %v2329, %v2445
      %v2536 = vadd.f32 %v2330, %v2448
      %v2537 = vadd.f32 %v2331, %v2453
      %v2538 = vadd.f32 %v2332, %v2456
      %v2539 = vadd.f32 %v2333, %v2461
      %v2540 = vadd.f32 %v2334, %v2464
      %v2541 = vadd.f32 %v2335, %v2469
      %v2542 = vadd.f32 %v2336, %v2472
      %v2543 = vadd.f32 %v2337, %v2477
      %v2544 = vadd.f32 %v2338, %v2480
      %v2545 = vadd.f32 %v2339, %v2485
      %v2546 = vadd.f32 %v2340, %v2488
      %v2547 = vadd.f32 %v2341, %v2493
      %v2548 = vadd.f32 %v2342, %v2496
      %v2549 = vadd.f32 %v2343, %v2501
      %v2550 = vadd.f32 %v2344, %v2504
      %v2551 = vadd.f32 %v2345, %v2509
      %v2552 = vadd.f32 %v2346, %v2512
      %v2553 = vadd.f32 %v2347, %v2517
      %v2554 = vadd.f32 %v2348, %v2520
      %v2556 = vshrl.u32 %v331, 16
      %v2558 = vrot.slane %v2556, 4
      %v2559 = vshll.u32 %v331, 16
      %v2561 = vrot.slane %v2559, 5
      %v2562 = vor.u32 %v2558, %v2561
      %v2563 = vrot.slane %v2562, 4
      %v2565 = vshll.u32 %v332, 16
      %v2567 = vrot.slane %v2565, 5
      %v2568 = vsel %vm337, %v2563, %v2567
      %v2569 = vshrl.u32 %v332, 16
      %v2571 = vrot.slane %v2569, 4
      %v2572 = vor.u32 %v2571, %v2567
      %v2573 = vrot.slane %v2572, 4
      %v2575 = vshll.u32 %v333, 16
      %v2577 = vrot.slane %v2575, 5
      %v2578 = vsel %vm337, %v2573, %v2577
      %s2579 = scalar_lea.vmem %s1, 28
      %v2580 = vld [vmem:[%s2579] sm:$0xf]
      %v2581 = vunpack.c.l.b16 %v2568
      %v2582 = vunpack.c.l.b16 %v2578
      %v2583 = vpack.c.b16 %v2582, %v2581
      %v2585 = vsel %vm772, %v2583, 0
      %v2588 = vsel %vm821, %v2580, 0
      %2590 = vmatprep.subr.bf16.mxu0 0
      %2591 = vmatpush1.bf16.msra.mxu0 %v2588
      %2592 = vmatprep.subr.bf16.mxu0 0
      %2593 = vmatpush1.bf16.msra.mxu0 0
      %2594 = vmatprep.subr.bf16.mxu0 0
      %2595 = vmatpush1.bf16.msra.mxu0 0
      %2596 = vmatprep.subr.bf16.mxu0 0
      %2597 = vmatpush1.bf16.msra.mxu0 0
      %2598 = vmatprep.subr.bf16.mxu0 0
      %2599 = vmatpush1.bf16.msra.mxu0 0
      %2600 = vmatprep.subr.bf16.mxu0 0
      %2601 = vmatpush1.bf16.msra.mxu0 0
      %2602 = vmatprep.subr.bf16.mxu0 0
      %2603 = vmatpush1.bf16.msra.mxu0 0
      %2604 = vmatprep.subr.bf16.mxu0 0
      %2605 = vmatpush1.bf16.msra.mxu0 0
      %2606 = vmatprep.subr.bf16.mxu0 0
      %2607 = vmatpush1.bf16.msra.mxu0 0
      %2608 = vmatprep.subr.bf16.mxu0 0
      %2609 = vmatpush1.bf16.msra.mxu0 0
      %2610 = vmatprep.subr.bf16.mxu0 0
      %2611 = vmatpush1.bf16.msra.mxu0 0
      %2612 = vmatprep.subr.bf16.mxu0 0
      %2613 = vmatpush1.bf16.msra.mxu0 0
      %2614 = vmatprep.subr.bf16.mxu0 0
      %2615 = vmatpush1.bf16.msra.mxu0 0
      %2616 = vmatprep.subr.bf16.mxu0 0
      %2617 = vmatpush1.bf16.msra.mxu0 0
      %2618 = vmatprep.subr.bf16.mxu0 0
      %2619 = vmatpush1.bf16.msra.mxu0 0
      %2620 = vmatprep.subr.bf16.mxu0 0
      %2621 = vmatpush1.bf16.msra.mxu0 0
      %2622 = vmatprep.mubr.bf16.mxu0 0
      %2623 = vmatmul.mubr.bf16.gmra.mrb[0].mxu0 %v780
      %v2624 = vpop.f32.mrb[0].mxu0
      %v2625 = vadd.f32 0.0, %v2624
      %v2626 = vpop.f32.mrb[0].mxu0
      %v2627 = vpop.f32.mrb[0].mxu0
      %v2628 = vadd.f32 0.0, %v2627
      %v2629 = vpop.f32.mrb[0].mxu0
      %2630 = vmatprep.mubr.bf16.mxu0 0
      %2631 = vmatmul.mubr.bf16.gmra.mrb[0].mxu0 %v783
      %v2632 = vpop.f32.mrb[0].mxu0
      %v2633 = vadd.f32 0.0, %v2632
      %v2634 = vpop.f32.mrb[0].mxu0
      %v2635 = vpop.f32.mrb[0].mxu0
      %v2636 = vadd.f32 0.0, %v2635
      %v2637 = vpop.f32.mrb[0].mxu0
      %2638 = vmatprep.mubr.bf16.mxu0 0
      %2639 = vmatmul.mubr.bf16.gmra.mrb[0].mxu0 %v786
      %v2640 = vpop.f32.mrb[0].mxu0
      %v2641 = vadd.f32 0.0, %v2640
      %v2642 = vpop.f32.mrb[0].mxu0
      %v2643 = vpop.f32.mrb[0].mxu0
      %v2644 = vadd.f32 0.0, %v2643
      %v2645 = vpop.f32.mrb[0].mxu0
      %2646 = vmatprep.mubr.bf16.mxu0 0
      %2647 = vmatmul.mubr.bf16.gmra.mrb[0].mxu0 %v789
      %v2648 = vpop.f32.mrb[0].mxu0
      %v2649 = vadd.f32 0.0, %v2648
      %v2650 = vpop.f32.mrb[0].mxu0
      %v2651 = vpop.f32.mrb[0].mxu0
      %v2652 = vadd.f32 0.0, %v2651
      %v2653 = vpop.f32.mrb[0].mxu0
      %2654 = vmatprep.mubr.bf16.mxu0 0
      %2655 = vmatmul.mubr.bf16.gmra.mrb[0].mxu0 %v792
      %v2656 = vpop.f32.mrb[0].mxu0
      %v2657 = vadd.f32 0.0, %v2656
      %v2658 = vpop.f32.mrb[0].mxu0
      %v2659 = vpop.f32.mrb[0].mxu0
      %v2660 = vadd.f32 0.0, %v2659
      %v2661 = vpop.f32.mrb[0].mxu0
      %2662 = vmatprep.mubr.bf16.mxu0 0
      %2663 = vmatmul.mubr.bf16.gmra.mrb[0].mxu0 %v795
      %v2664 = vpop.f32.mrb[0].mxu0
      %v2665 = vadd.f32 0.0, %v2664
      %v2666 = vpop.f32.mrb[0].mxu0
      %v2667 = vpop.f32.mrb[0].mxu0
      %v2668 = vadd.f32 0.0, %v2667
      %v2669 = vpop.f32.mrb[0].mxu0
      %2670 = vmatprep.mubr.bf16.mxu0 0
      %2671 = vmatmul.mubr.bf16.gmra.mrb[0].mxu0 %v798
      %v2672 = vpop.f32.mrb[0].mxu0
      %v2673 = vadd.f32 0.0, %v2672
      %v2674 = vpop.f32.mrb[0].mxu0
      %v2675 = vpop.f32.mrb[0].mxu0
      %v2676 = vadd.f32 0.0, %v2675
      %v2677 = vpop.f32.mrb[0].mxu0
      %2678 = vmatprep.mubr.bf16.mxu0 0
      %2679 = vmatmul.mubr.bf16.gmra.mrb[0].mxu0 %v801
      %v2680 = vpop.f32.mrb[0].mxu0
      %v2681 = vadd.f32 0.0, %v2680
      %v2682 = vpop.f32.mrb[0].mxu0
      %v2683 = vpop.f32.mrb[0].mxu0
      %v2684 = vadd.f32 0.0, %v2683
      %v2685 = vpop.f32.mrb[0].mxu0
      %2686 = vmatprep.mubr.bf16.mxu0 0
      %2687 = vmatmul.mubr.bf16.gmra.mrb[0].mxu0 %v804
      %v2688 = vpop.f32.mrb[0].mxu0
      %v2689 = vadd.f32 0.0, %v2688
      %v2690 = vpop.f32.mrb[0].mxu0
      %v2691 = vpop.f32.mrb[0].mxu0
      %v2692 = vadd.f32 0.0, %v2691
      %v2693 = vpop.f32.mrb[0].mxu0
      %2694 = vmatprep.mubr.bf16.mxu0 0
      %2695 = vmatmul.mubr.bf16.gmra.mrb[0].mxu0 %v807
      %v2696 = vpop.f32.mrb[0].mxu0
      %v2697 = vadd.f32 0.0, %v2696
      %v2698 = vpop.f32.mrb[0].mxu0
      %v2699 = vpop.f32.mrb[0].mxu0
      %v2700 = vadd.f32 0.0, %v2699
      %v2701 = vpop.f32.mrb[0].mxu0
      %2702 = vmatprep.mubr.bf16.mxu0 0
      %2703 = vmatmul.mubr.bf16.gmra.mrb[0].mxu0 %v810
      %v2704 = vpop.f32.mrb[0].mxu0
      %v2705 = vadd.f32 0.0, %v2704
      %v2706 = vpop.f32.mrb[0].mxu0
      %v2707 = vpop.f32.mrb[0].mxu0
      %v2708 = vadd.f32 0.0, %v2707
      %v2709 = vpop.f32.mrb[0].mxu0
      %2710 = vmatprep.mubr.bf16.mxu0 0
      %2711 = vmatmul.mubr.bf16.gmra.mrb[0].mxu0 %v813
      %v2712 = vpop.f32.mrb[0].mxu0
      %v2713 = vadd.f32 0.0, %v2712
      %v2714 = vpop.f32.mrb[0].mxu0
      %v2715 = vpop.f32.mrb[0].mxu0
      %v2716 = vadd.f32 0.0, %v2715
      %v2717 = vpop.f32.mrb[0].mxu0
      %2718 = vmatprep.mubr.bf16.mxu0 0
      %2719 = vmatmul.mubr.bf16.gmra.mrb[0].mxu0 %v816
      %v2720 = vpop.f32.mrb[0].mxu0
      %v2721 = vadd.f32 0.0, %v2720
      %v2722 = vpop.f32.mrb[0].mxu0
      %v2723 = vpop.f32.mrb[0].mxu0
      %v2724 = vadd.f32 0.0, %v2723
      %v2725 = vpop.f32.mrb[0].mxu0
      %2726 = vmatprep.mubr.bf16.mxu0 0
      %2727 = vmatmul.mubr.bf16.gmra.mrb[0].mxu0 %v819
      %v2728 = vpop.f32.mrb[0].mxu0
      %v2729 = vadd.f32 0.0, %v2728
      %v2730 = vpop.f32.mrb[0].mxu0
      %v2731 = vpop.f32.mrb[0].mxu0
      %v2732 = vadd.f32 0.0, %v2731
      %v2733 = vpop.f32.mrb[0].mxu0
      %2734 = vmatprep.mubr.bf16.mxu0 0
      %2735 = vmatmul.mubr.bf16.gmra.mrb[0].mxu0 %v1939
      %v2736 = vpop.f32.mrb[0].mxu0
      %v2737 = vadd.f32 0.0, %v2736
      %v2738 = vpop.f32.mrb[0].mxu0
      %v2739 = vpop.f32.mrb[0].mxu0
      %v2740 = vadd.f32 0.0, %v2739
      %v2741 = vpop.f32.mrb[0].mxu0
      %2742 = vmatprep.mubr.bf16.mxu0 0
      %2743 = vmatmul.mubr.bf16.gmra.mrb[0].mxu0 %v2585
      %v2744 = vpop.f32.mrb[0].mxu0
      %v2745 = vadd.f32 0.0, %v2744
      %v2746 = vpop.f32.mrb[0].mxu0
      %v2747 = vpop.f32.mrb[0].mxu0
      %v2748 = vadd.f32 0.0, %v2747
      %v2749 = vpop.f32.mrb[0].mxu0
      %2750 = vdwg.mxu0
      %v2751 = vadd.f32 %v2523, %v2625
      %v2752 = vadd.f32 %v2524, %v2628
      %v2753 = vadd.f32 %v2525, %v2633
      %v2754 = vadd.f32 %v2526, %v2636
      %v2755 = vadd.f32 %v2527, %v2641
      %v2756 = vadd.f32 %v2528, %v2644
      %v2757 = vadd.f32 %v2529, %v2649
      %v2758 = vadd.f32 %v2530, %v2652
      %v2759 = vadd.f32 %v2531, %v2657
      %v2760 = vadd.f32 %v2532, %v2660
      %v2761 = vadd.f32 %v2533, %v2665
      %v2762 = vadd.f32 %v2534, %v2668
      %v2763 = vadd.f32 %v2535, %v2673
      %v2764 = vadd.f32 %v2536, %v2676
      %v2765 = vadd.f32 %v2537, %v2681
      %v2766 = vadd.f32 %v2538, %v2684
      %v2767 = vadd.f32 %v2539, %v2689
      %v2768 = vadd.f32 %v2540, %v2692
      %v2769 = vadd.f32 %v2541, %v2697
      %v2770 = vadd.f32 %v2542, %v2700
      %v2771 = vadd.f32 %v2543, %v2705
      %v2772 = vadd.f32 %v2544, %v2708
      %v2773 = vadd.f32 %v2545, %v2713
      %v2774 = vadd.f32 %v2546, %v2716
      %v2775 = vadd.f32 %v2547, %v2721
      %v2776 = vadd.f32 %v2548, %v2724
      %v2777 = vadd.f32 %v2549, %v2729
      %v2778 = vadd.f32 %v2550, %v2732
      %v2779 = vadd.f32 %v2551, %v2737
      %v2780 = vadd.f32 %v2552, %v2740
      %v2781 = vadd.f32 %v2553, %v2745
      %v2782 = vadd.f32 %v2554, %v2748
      %v2784 = vrot.slane %v331, 5
      %v2785 = vrot.slane %v2784, 4
      %v2786 = vrot.slane %v332, 5
      %v2787 = vsel %vm1296, %v2785, %v2786
      %v2788 = vrot.slane %v2786, 4
      %v2789 = vrot.slane %v333, 5
      %v2790 = vsel %vm1296, %v2788, %v2789
      %s2791 = scalar_lea.vmem %s1, 32
      %v2792 = vld [vmem:[%s2791] sm:$0xf]
      %v2793 = vunpack.c.l.b16 %v2787
      %v2794 = vunpack.c.l.b16 %v2790
      %v2795 = vpack.c.b16 %v2794, %v2793
      %v2797 = vsel %vm772, %v2795, 0
      %v2800 = vsel %vm821, %v2792, 0
      %2802 = vmatprep.subr.bf16.mxu0 0
      %2803 = vmatpush1.bf16.msra.mxu0 %v2800
      %2804 = vmatprep.subr.bf16.mxu0 0
      %2805 = vmatpush1.bf16.msra.mxu0 0
      %2806 = vmatprep.subr.bf16.mxu0 0
      %2807 = vmatpush1.bf16.msra.mxu0 0
      %2808 = vmatprep.subr.bf16.mxu0 0
      %2809 = vmatpush1.bf16.msra.mxu0 0
      %2810 = vmatprep.subr.bf16.mxu0 0
      %2811 = vmatpush1.bf16.msra.mxu0 0
      %2812 = vmatprep.subr.bf16.mxu0 0
      %2813 = vmatpush1.bf16.msra.mxu0 0
      %2814 = vmatprep.subr.bf16.mxu0 0
      %2815 = vmatpush1.bf16.msra.mxu0 0
      %2816 = vmatprep.subr.bf16.mxu0 0
      %2817 = vmatpush1.bf16.msra.mxu0 0
      %2818 = vmatprep.subr.bf16.mxu0 0
      %2819 = vmatpush1.bf16.msra.mxu0 0
      %2820 = vmatprep.subr.bf16.mxu0 0
      %2821 = vmatpush1.bf16.msra.mxu0 0
      %2822 = vmatprep.subr.bf16.mxu0 0
      %2823 = vmatpush1.bf16.msra.mxu0 0
      %2824 = vmatprep.subr.bf16.mxu0 0
      %2825 = vmatpush1.bf16.msra.mxu0 0
      %2826 = vmatprep.subr.bf16.mxu0 0
      %2827 = vmatpush1.bf16.msra.mxu0 0
      %2828 = vmatprep.subr.bf16.mxu0 0
      %2829 = vmatpush1.bf16.msra.mxu0 0
      %2830 = vmatprep.subr.bf16.mxu0 0
      %2831 = vmatpush1.bf16.msra.mxu0 0
      %2832 = vmatprep.subr.bf16.mxu0 0
      %2833 = vmatpush1.bf16.msra.mxu0 0
      %2834 = vmatprep.mubr.bf16.mxu0 0
      %2835 = vmatmul.mubr.bf16.gmra.mrb[0].mxu0 %v1466
      %v2836 = vpop.f32.mrb[0].mxu0
      %v2837 = vadd.f32 0.0, %v2836
      %v2838 = vpop.f32.mrb[0].mxu0
      %v2839 = vpop.f32.mrb[0].mxu0
      %v2840 = vadd.f32 0.0, %v2839
      %v2841 = vpop.f32.mrb[0].mxu0
      %2842 = vmatprep.mubr.bf16.mxu0 0
      %2843 = vmatmul.mubr.bf16.gmra.mrb[0].mxu0 %v1469
      %v2844 = vpop.f32.mrb[0].mxu0
      %v2845 = vadd.f32 0.0, %v2844
      %v2846 = vpop.f32.mrb[0].mxu0
      %v2847 = vpop.f32.mrb[0].mxu0
      %v2848 = vadd.f32 0.0, %v2847
      %v2849 = vpop.f32.mrb[0].mxu0
      %2850 = vmatprep.mubr.bf16.mxu0 0
      %2851 = vmatmul.mubr.bf16.gmra.mrb[0].mxu0 %v1472
      %v2852 = vpop.f32.mrb[0].mxu0
      %v2853 = vadd.f32 0.0, %v2852
      %v2854 = vpop.f32.mrb[0].mxu0
      %v2855 = vpop.f32.mrb[0].mxu0
      %v2856 = vadd.f32 0.0, %v2855
      %v2857 = vpop.f32.mrb[0].mxu0
      %2858 = vmatprep.mubr.bf16.mxu0 0
      %2859 = vmatmul.mubr.bf16.gmra.mrb[0].mxu0 %v1475
      %v2860 = vpop.f32.mrb[0].mxu0
      %v2861 = vadd.f32 0.0, %v2860
      %v2862 = vpop.f32.mrb[0].mxu0
      %v2863 = vpop.f32.mrb[0].mxu0
      %v2864 = vadd.f32 0.0, %v2863
      %v2865 = vpop.f32.mrb[0].mxu0
      %2866 = vmatprep.mubr.bf16.mxu0 0
      %2867 = vmatmul.mubr.bf16.gmra.mrb[0].mxu0 %v1478
      %v2868 = vpop.f32.mrb[0].mxu0
      %v2869 = vadd.f32 0.0, %v2868
      %v2870 = vpop.f32.mrb[0].mxu0
      %v2871 = vpop.f32.mrb[0].mxu0
      %v2872 = vadd.f32 0.0, %v2871
      %v2873 = vpop.f32.mrb[0].mxu0
      %2874 = vmatprep.mubr.bf16.mxu0 0
      %2875 = vmatmul.mubr.bf16.gmra.mrb[0].mxu0 %v1481
      %v2876 = vpop.f32.mrb[0].mxu0
      %v2877 = vadd.f32 0.0, %v2876
      %v2878 = vpop.f32.mrb[0].mxu0
      %v2879 = vpop.f32.mrb[0].mxu0
      %v2880 = vadd.f32 0.0, %v2879
      %v2881 = vpop.f32.mrb[0].mxu0
      %2882 = vmatprep.mubr.bf16.mxu0 0
      %2883 = vmatmul.mubr.bf16.gmra.mrb[0].mxu0 %v1484
      %v2884 = vpop.f32.mrb[0].mxu0
      %v2885 = vadd.f32 0.0, %v2884
      %v2886 = vpop.f32.mrb[0].mxu0
      %v2887 = vpop.f32.mrb[0].mxu0
      %v2888 = vadd.f32 0.0, %v2887
      %v2889 = vpop.f32.mrb[0].mxu0
      %2890 = vmatprep.mubr.bf16.mxu0 0
      %2891 = vmatmul.mubr.bf16.gmra.mrb[0].mxu0 %v1487
      %v2892 = vpop.f32.mrb[0].mxu0
      %v2893 = vadd.f32 0.0, %v2892
      %v2894 = vpop.f32.mrb[0].mxu0
      %v2895 = vpop.f32.mrb[0].mxu0
      %v2896 = vadd.f32 0.0, %v2895
      %v2897 = vpop.f32.mrb[0].mxu0
      %2898 = vmatprep.mubr.bf16.mxu0 0
      %2899 = vmatmul.mubr.bf16.gmra.mrb[0].mxu0 %v1490
      %v2900 = vpop.f32.mrb[0].mxu0
      %v2901 = vadd.f32 0.0, %v2900
      %v2902 = vpop.f32.mrb[0].mxu0
      %v2903 = vpop.f32.mrb[0].mxu0
      %v2904 = vadd.f32 0.0, %v2903
      %v2905 = vpop.f32.mrb[0].mxu0
      %2906 = vmatprep.mubr.bf16.mxu0 0
      %2907 = vmatmul.mubr.bf16.gmra.mrb[0].mxu0 %v1493
      %v2908 = vpop.f32.mrb[0].mxu0
      %v2909 = vadd.f32 0.0, %v2908
      %v2910 = vpop.f32.mrb[0].mxu0
      %v2911 = vpop.f32.mrb[0].mxu0
      %v2912 = vadd.f32 0.0, %v2911
      %v2913 = vpop.f32.mrb[0].mxu0
      %2914 = vmatprep.mubr.bf16.mxu0 0
      %2915 = vmatmul.mubr.bf16.gmra.mrb[0].mxu0 %v1496
      %v2916 = vpop.f32.mrb[0].mxu0
      %v2917 = vadd.f32 0.0, %v2916
      %v2918 = vpop.f32.mrb[0].mxu0
      %v2919 = vpop.f32.mrb[0].mxu0
      %v2920 = vadd.f32 0.0, %v2919
      %v2921 = vpop.f32.mrb[0].mxu0
      %2922 = vmatprep.mubr.bf16.mxu0 0
      %2923 = vmatmul.mubr.bf16.gmra.mrb[0].mxu0 %v1499
      %v2924 = vpop.f32.mrb[0].mxu0
      %v2925 = vadd.f32 0.0, %v2924
      %v2926 = vpop.f32.mrb[0].mxu0
      %v2927 = vpop.f32.mrb[0].mxu0
      %v2928 = vadd.f32 0.0, %v2927
      %v2929 = vpop.f32.mrb[0].mxu0
      %2930 = vmatprep.mubr.bf16.mxu0 0
      %2931 = vmatmul.mubr.bf16.gmra.mrb[0].mxu0 %v1502
      %v2932 = vpop.f32.mrb[0].mxu0
      %v2933 = vadd.f32 0.0, %v2932
      %v2934 = vpop.f32.mrb[0].mxu0
      %v2935 = vpop.f32.mrb[0].mxu0
      %v2936 = vadd.f32 0.0, %v2935
      %v2937 = vpop.f32.mrb[0].mxu0
      %2938 = vmatprep.mubr.bf16.mxu0 0
      %2939 = vmatmul.mubr.bf16.gmra.mrb[0].mxu0 %v1505
      %v2940 = vpop.f32.mrb[0].mxu0
      %v2941 = vadd.f32 0.0, %v2940
      %v2942 = vpop.f32.mrb[0].mxu0
      %v2943 = vpop.f32.mrb[0].mxu0
      %v2944 = vadd.f32 0.0, %v2943
      %v2945 = vpop.f32.mrb[0].mxu0
      %2946 = vmatprep.mubr.bf16.mxu0 0
      %2947 = vmatmul.mubr.bf16.gmra.mrb[0].mxu0 %v2151
      %v2948 = vpop.f32.mrb[0].mxu0
      %v2949 = vadd.f32 0.0, %v2948
      %v2950 = vpop.f32.mrb[0].mxu0
      %v2951 = vpop.f32.mrb[0].mxu0
      %v2952 = vadd.f32 0.0, %v2951
      %v2953 = vpop.f32.mrb[0].mxu0
      %2954 = vmatprep.mubr.bf16.mxu0 0
      %2955 = vmatmul.mubr.bf16.gmra.mrb[0].mxu0 %v2797
      %v2956 = vpop.f32.mrb[0].mxu0
      %v2957 = vadd.f32 0.0, %v2956
      %v2958 = vpop.f32.mrb[0].mxu0
      %v2959 = vpop.f32.mrb[0].mxu0
      %v2960 = vadd.f32 0.0, %v2959
      %v2961 = vpop.f32.mrb[0].mxu0
      %2962 = vdwg.mxu0
      %v2963 = vadd.f32 %v2751, %v2837
      %v2964 = vadd.f32 %v2752, %v2840
      %v2965 = vadd.f32 %v2753, %v2845
      %v2966 = vadd.f32 %v2754, %v2848
      %v2967 = vadd.f32 %v2755, %v2853
      %v2968 = vadd.f32 %v2756, %v2856
      %v2969 = vadd.f32 %v2757, %v2861
      %v2970 = vadd.f32 %v2758, %v2864
      %v2971 = vadd.f32 %v2759, %v2869
      %v2972 = vadd.f32 %v2760, %v2872
      %v2973 = vadd.f32 %v2761, %v2877
      %v2974 = vadd.f32 %v2762, %v2880
      %v2975 = vadd.f32 %v2763, %v2885
      %v2976 = vadd.f32 %v2764, %v2888
      %v2977 = vadd.f32 %v2765, %v2893
      %v2978 = vadd.f32 %v2766, %v2896
      %v2979 = vadd.f32 %v2767, %v2901
      %v2980 = vadd.f32 %v2768, %v2904
      %v2981 = vadd.f32 %v2769, %v2909
      %v2982 = vadd.f32 %v2770, %v2912
      %v2983 = vadd.f32 %v2771, %v2917
      %v2984 = vadd.f32 %v2772, %v2920
      %v2985 = vadd.f32 %v2773, %v2925
      %v2986 = vadd.f32 %v2774, %v2928
      %v2987 = vadd.f32 %v2775, %v2933
      %v2988 = vadd.f32 %v2776, %v2936
      %v2989 = vadd.f32 %v2777, %v2941
      %v2990 = vadd.f32 %v2778, %v2944
      %v2991 = vadd.f32 %v2779, %v2949
      %v2992 = vadd.f32 %v2780, %v2952
      %v2993 = vadd.f32 %v2781, %v2957
      %v2994 = vadd.f32 %v2782, %v2960
      %v2995 = vpack.c.bf16 %v2964, %v2963
      %v2996 = vpack.c.bf16 %v2966, %v2965
      %v2997 = vpack.c.bf16 %v2968, %v2967
      %v2998 = vpack.c.bf16 %v2970, %v2969
      %v2999 = vpack.c.bf16 %v2972, %v2971
      %v3000 = vpack.c.bf16 %v2974, %v2973
      %v3001 = vpack.c.bf16 %v2976, %v2975
      %v3002 = vpack.c.bf16 %v2978, %v2977
      %v3003 = vpack.c.bf16 %v2980, %v2979
      %v3004 = vpack.c.bf16 %v2982, %v2981
      %v3005 = vpack.c.bf16 %v2984, %v2983
      %v3006 = vpack.c.bf16 %v2986, %v2985
      %v3007 = vpack.c.bf16 %v2988, %v2987
      %v3008 = vpack.c.bf16 %v2990, %v2989
      %v3009 = vpack.c.bf16 %v2992, %v2991
      %v3010 = vpack.c.bf16 %v2994, %v2993
      %v3011 = vld [vmem:[%s2] sm:$0x1]
      %v3012 = vpack.c.bf16 %v3011, %v3011
      %v3014 = vpack.i.b16 %v3012, %v3012
      %v3016 = vlaneseq
      %v3017 = vshrl.u32 %v3016, 7
      %v3018 = vsub.s32 0, %v3017
      %v3019 = vrot.slane %v3014, %v3018
      %v3020 = vadd.bf16 %v2995, %v3019
      %v3021 = vadd.bf16 %v2996, %v3019
      %v3022 = vadd.bf16 %v2997, %v3019
      %v3023 = vadd.bf16 %v2998, %v3019
      %v3024 = vadd.bf16 %v2999, %v3019
      %v3025 = vadd.bf16 %v3000, %v3019
      %v3026 = vadd.bf16 %v3001, %v3019
      %v3027 = vadd.bf16 %v3002, %v3019
      %v3028 = vadd.bf16 %v3003, %v3019
      %v3029 = vadd.bf16 %v3004, %v3019
      %v3030 = vadd.bf16 %v3005, %v3019
      %v3031 = vadd.bf16 %v3006, %v3019
      %v3032 = vadd.bf16 %v3007, %v3019
      %v3033 = vadd.bf16 %v3008, %v3019
      %v3034 = vadd.bf16 %v3009, %v3019
      %v3035 = vadd.bf16 %v3010, %v3019
      %v3036 = vmax.bf16 %v3020, 0
      %v3037 = vmax.bf16 %v3021, 0
      %v3038 = vmax.bf16 %v3022, 0
      %v3039 = vmax.bf16 %v3023, 0
      %v3040 = vmax.bf16 %v3024, 0
      %v3041 = vmax.bf16 %v3025, 0
      %v3042 = vmax.bf16 %v3026, 0
      %v3043 = vmax.bf16 %v3027, 0
      %v3044 = vmax.bf16 %v3028, 0
      %v3045 = vmax.bf16 %v3029, 0
      %v3046 = vmax.bf16 %v3030, 0
      %v3047 = vmax.bf16 %v3031, 0
      %v3048 = vmax.bf16 %v3032, 0
      %v3049 = vmax.bf16 %v3033, 0
      %v3050 = vmax.bf16 %v3034, 0
      %v3051 = vmax.bf16 %v3035, 0
      %v3052 = vunpack.c.l.bf16 %v3036
      %v3053 = vunpack.c.h.bf16 %v3036
      %v3054 = vunpack.c.l.bf16 %v3037
      %v3055 = vunpack.c.h.bf16 %v3037
      %v3056 = vunpack.c.l.bf16 %v3038
      %v3057 = vunpack.c.h.bf16 %v3038
      %v3058 = vunpack.c.l.bf16 %v3039
      %v3059 = vunpack.c.h.bf16 %v3039
      %v3060 = vunpack.c.l.bf16 %v3040
      %v3061 = vunpack.c.h.bf16 %v3040
      %v3062 = vunpack.c.l.bf16 %v3041
      %v3063 = vunpack.c.h.bf16 %v3041
      %v3064 = vunpack.c.l.bf16 %v3042
      %v3065 = vunpack.c.h.bf16 %v3042
      %v3066 = vunpack.c.l.bf16 %v3043
      %v3067 = vunpack.c.h.bf16 %v3043
      %v3068 = vunpack.c.l.bf16 %v3044
      %v3069 = vunpack.c.h.bf16 %v3044
      %v3070 = vunpack.c.l.bf16 %v3045
      %v3071 = vunpack.c.h.bf16 %v3045
      %v3072 = vunpack.c.l.bf16 %v3046
      %v3073 = vunpack.c.h.bf16 %v3046
      %v3074 = vunpack.c.l.bf16 %v3047
      %v3075 = vunpack.c.h.bf16 %v3047
      %v3076 = vunpack.c.l.bf16 %v3048
      %v3077 = vunpack.c.h.bf16 %v3048
      %v3078 = vunpack.c.l.bf16 %v3049
      %v3079 = vunpack.c.h.bf16 %v3049
      %v3080 = vunpack.c.l.bf16 %v3050
      %v3081 = vunpack.c.h.bf16 %v3050
      %v3082 = vunpack.c.l.bf16 %v3051
      %v3083 = vunpack.c.h.bf16 %v3051
      %v3084 = vsel %vm772, %v3052, 0.0
      %v3085 = vsel %vm772, %v3053, 0.0
      %v3086 = vadd.f32 %v3084, %v3085
      %v3087 = vsel %vm772, %v3054, 0.0
      %v3088 = vadd.f32 %v3086, %v3087
      %v3089 = vsel %vm772, %v3055, 0.0
      %v3090 = vadd.f32 %v3088, %v3089
      %v3091 = vsel %vm772, %v3056, 0.0
      %v3092 = vadd.f32 %v3090, %v3091
      %v3093 = vsel %vm772, %v3057, 0.0
      %v3094 = vadd.f32 %v3092, %v3093
      %v3095 = vsel %vm772, %v3058, 0.0
      %v3096 = vadd.f32 %v3094, %v3095
      %v3097 = vsel %vm772, %v3059, 0.0
      %v3098 = vadd.f32 %v3096, %v3097
      %v3099 = vsel %vm772, %v3060, 0.0
      %v3100 = vadd.f32 %v3098, %v3099
      %v3101 = vsel %vm772, %v3061, 0.0
      %v3102 = vadd.f32 %v3100, %v3101
      %v3103 = vsel %vm772, %v3062, 0.0
      %v3104 = vadd.f32 %v3102, %v3103
      %v3105 = vsel %vm772, %v3063, 0.0
      %v3106 = vadd.f32 %v3104, %v3105
      %v3107 = vsel %vm772, %v3064, 0.0
      %v3108 = vadd.f32 %v3106, %v3107
      %v3109 = vsel %vm772, %v3065, 0.0
      %v3110 = vadd.f32 %v3108, %v3109
      %v3111 = vsel %vm772, %v3066, 0.0
      %v3112 = vadd.f32 %v3110, %v3111
      %v3113 = vsel %vm772, %v3067, 0.0
      %v3114 = vadd.f32 %v3112, %v3113
      %v3115 = vsel %vm772, %v3068, 0.0
      %v3116 = vadd.f32 %v3114, %v3115
      %v3117 = vsel %vm772, %v3069, 0.0
      %v3118 = vadd.f32 %v3116, %v3117
      %v3119 = vsel %vm772, %v3070, 0.0
      %v3120 = vadd.f32 %v3118, %v3119
      %v3121 = vsel %vm772, %v3071, 0.0
      %v3122 = vadd.f32 %v3120, %v3121
      %v3123 = vsel %vm772, %v3072, 0.0
      %v3124 = vadd.f32 %v3122, %v3123
      %v3125 = vsel %vm772, %v3073, 0.0
      %v3126 = vadd.f32 %v3124, %v3125
      %v3127 = vsel %vm772, %v3074, 0.0
      %v3128 = vadd.f32 %v3126, %v3127
      %v3129 = vsel %vm772, %v3075, 0.0
      %v3130 = vadd.f32 %v3128, %v3129
      %v3131 = vsel %vm772, %v3076, 0.0
      %v3132 = vadd.f32 %v3130, %v3131
      %v3133 = vsel %vm772, %v3077, 0.0
      %v3134 = vadd.f32 %v3132, %v3133
      %v3135 = vsel %vm772, %v3078, 0.0
      %v3136 = vadd.f32 %v3134, %v3135
      %v3137 = vsel %vm772, %v3079, 0.0
      %v3138 = vadd.f32 %v3136, %v3137
      %v3139 = vsel %vm772, %v3080, 0.0
      %v3140 = vadd.f32 %v3138, %v3139
      %v3141 = vsel %vm772, %v3081, 0.0
      %v3142 = vadd.f32 %v3140, %v3141
      %v3143 = vsel %vm772, %v3082, 0.0
      %v3144 = vadd.f32 %v3142, %v3143
      %v3145 = vsel %vm772, %v3083, 0.0
      %v3146 = vadd.f32 %v3144, %v3145
      %v3147 = vrot.slane %v3146, 4
      %v3148 = vadd.f32 %v3146, %v3147
      %v3149 = vrot.slane %v3148, 2
      %v3150 = vadd.f32 %v3148, %v3149
      %v3151 = vrot.slane %v3150, 1
      %v3152 = vadd.f32 %v3150, %v3151
      %v3153 = vrcp.pop 256.0
      %v3154 = vmul.f32 %v3152, %v3153
      %v3155 = vld [vmem:[%s3] sm:$0xff]
      %v3156 = vld [vmem:[%s4] sm:$0x1]
      %v3158 = vsel %vm772, %v3154, 0
      %3160 = vmatprep.subr.mxu0 0.0
      %3161 = vmatpush1.msra.mxu0 %v3155
      %3162 = vmatprep.subr.mxu0 0.0
      %3163 = vmatpush1.msra.mxu0 0.0
      %3164 = vmatprep.subr.mxu0 0.0
      %3165 = vmatpush1.msra.mxu0 0.0
      %3166 = vmatprep.subr.mxu0 0.0
      %3167 = vmatpush1.msra.mxu0 0.0
      %3168 = vmatprep.subr.mxu0 0.0
      %3169 = vmatpush1.msra.mxu0 0.0
      %3170 = vmatprep.subr.mxu0 0.0
      %3171 = vmatpush1.msra.mxu0 0.0
      %3172 = vmatprep.subr.mxu0 0.0
      %3173 = vmatpush1.msra.mxu0 0.0
      %3174 = vmatprep.subr.mxu0 0.0
      %3175 = vmatpush1.msra.mxu0 0.0
      %3176 = vmatprep.subr.mxu0 0.0
      %3177 = vmatpush1.msra.mxu0 0.0
      %3178 = vmatprep.subr.mxu0 0.0
      %3179 = vmatpush1.msra.mxu0 0.0
      %3180 = vmatprep.subr.mxu0 0.0
      %3181 = vmatpush1.msra.mxu0 0.0
      %3182 = vmatprep.subr.mxu0 0.0
      %3183 = vmatpush1.msra.mxu0 0.0
      %3184 = vmatprep.subr.mxu0 0.0
      %3185 = vmatpush1.msra.mxu0 0.0
      %3186 = vmatprep.subr.mxu0 0.0
      %3187 = vmatpush1.msra.mxu0 0.0
      %3188 = vmatprep.subr.mxu0 0.0
      %3189 = vmatpush1.msra.mxu0 0.0
      %3190 = vmatprep.subr.mxu0 0.0
      %3191 = vmatpush1.msra.mxu0 0.0
      %3192 = vmatprep.subr.mxu0 0.0
      %3193 = vmatpush1.msra.mxu0 0.0
      %3194 = vmatprep.subr.mxu0 0.0
      %3195 = vmatpush1.msra.mxu0 0.0
      %3196 = vmatprep.subr.mxu0 0.0
      %3197 = vmatpush1.msra.mxu0 0.0
      %3198 = vmatprep.subr.mxu0 0.0
      %3199 = vmatpush1.msra.mxu0 0.0
      %3200 = vmatprep.subr.mxu0 0.0
      %3201 = vmatpush1.msra.mxu0 0.0
      %3202 = vmatprep.subr.mxu0 0.0
      %3203 = vmatpush1.msra.mxu0 0.0
      %3204 = vmatprep.subr.mxu0 0.0
      %3205 = vmatpush1.msra.mxu0 0.0
      %3206 = vmatprep.subr.mxu0 0.0
      %3207 = vmatpush1.msra.mxu0 0.0
      %3208 = vmatprep.subr.mxu0 0.0
      %3209 = vmatpush1.msra.mxu0 0.0
      %3210 = vmatprep.subr.mxu0 0.0
      %3211 = vmatpush1.msra.mxu0 0.0
      %3212 = vmatprep.subr.mxu0 0.0
      %3213 = vmatpush1.msra.mxu0 0.0
      %3214 = vmatprep.subr.mxu0 0.0
      %3215 = vmatpush1.msra.mxu0 0.0
      %3216 = vmatprep.subr.mxu0 0.0
      %3217 = vmatpush1.msra.mxu0 0.0
      %3218 = vmatprep.subr.mxu0 0.0
      %3219 = vmatpush1.msra.mxu0 0.0
      %3220 = vmatprep.subr.mxu0 0.0
      %3221 = vmatpush1.msra.mxu0 0.0
      %3222 = vmatprep.subr.mxu0 0.0
      %3223 = vmatpush1.msra.mxu0 0.0
      %3224 = vmatprep.mubr.f32.mxu0 0.0
      %3225 = vmatmul.mubr.f32.gmra.mrb[0].mxu0 %v3158
      %v3226 = vpop.f32.mrb[0].mxu0
      %v3227 = vadd.f32 %v3156, %v3226
      %v3228 = vpop.f32.mrb[0].mxu0
      %3229 = vdwg.mxu0
      %v3230 = vmax.f32 %v3227, 0.0
      %v3231 = vld [vmem:[%s5] sm:$0x3]
      %v3232 = vld [vmem:[%s6] sm:$0x1]
      %vm3233 = vcmask 15360
      %v3235 = vsel %vm3233, %v3230, 0
      %vm3237 = vcmask 1041408
      %v3239 = vsel %vm3237, %v3231, 0
      %3241 = vmatprep.subr.mxu0 0.0
      %3242 = vmatpush1.msra.mxu0 %v3239
      %3243 = vmatprep.subr.mxu0 0.0
      %3244 = vmatpush1.msra.mxu0 0.0
      %3245 = vmatprep.subr.mxu0 0.0
      %3246 = vmatpush1.msra.mxu0 0.0
      %3247 = vmatprep.subr.mxu0 0.0
      %3248 = vmatpush1.msra.mxu0 0.0
      %3249 = vmatprep.subr.mxu0 0.0
      %3250 = vmatpush1.msra.mxu0 0.0
      %3251 = vmatprep.subr.mxu0 0.0
      %3252 = vmatpush1.msra.mxu0 0.0
      %3253 = vmatprep.subr.mxu0 0.0
      %3254 = vmatpush1.msra.mxu0 0.0
      %3255 = vmatprep.subr.mxu0 0.0
      %3256 = vmatpush1.msra.mxu0 0.0
      %3257 = vmatprep.subr.mxu0 0.0
      %3258 = vmatpush1.msra.mxu0 0.0
      %3259 = vmatprep.subr.mxu0 0.0
      %3260 = vmatpush1.msra.mxu0 0.0
      %3261 = vmatprep.subr.mxu0 0.0
      %3262 = vmatpush1.msra.mxu0 0.0
      %3263 = vmatprep.subr.mxu0 0.0
      %3264 = vmatpush1.msra.mxu0 0.0
      %3265 = vmatprep.subr.mxu0 0.0
      %3266 = vmatpush1.msra.mxu0 0.0
      %3267 = vmatprep.subr.mxu0 0.0
      %3268 = vmatpush1.msra.mxu0 0.0
      %3269 = vmatprep.subr.mxu0 0.0
      %3270 = vmatpush1.msra.mxu0 0.0
      %3271 = vmatprep.subr.mxu0 0.0
      %3272 = vmatpush1.msra.mxu0 0.0
      %3273 = vmatprep.subr.mxu0 0.0
      %3274 = vmatpush1.msra.mxu0 0.0
      %3275 = vmatprep.subr.mxu0 0.0
      %3276 = vmatpush1.msra.mxu0 0.0
      %3277 = vmatprep.subr.mxu0 0.0
      %3278 = vmatpush1.msra.mxu0 0.0
      %3279 = vmatprep.subr.mxu0 0.0
      %3280 = vmatpush1.msra.mxu0 0.0
      %3281 = vmatprep.subr.mxu0 0.0
      %3282 = vmatpush1.msra.mxu0 0.0
      %3283 = vmatprep.subr.mxu0 0.0
      %3284 = vmatpush1.msra.mxu0 0.0
      %3285 = vmatprep.subr.mxu0 0.0
      %3286 = vmatpush1.msra.mxu0 0.0
      %3287 = vmatprep.subr.mxu0 0.0
      %3288 = vmatpush1.msra.mxu0 0.0
      %3289 = vmatprep.subr.mxu0 0.0
      %3290 = vmatpush1.msra.mxu0 0.0
      %3291 = vmatprep.subr.mxu0 0.0
      %3292 = vmatpush1.msra.mxu0 0.0
      %3293 = vmatprep.subr.mxu0 0.0
      %3294 = vmatpush1.msra.mxu0 0.0
      %3295 = vmatprep.subr.mxu0 0.0
      %3296 = vmatpush1.msra.mxu0 0.0
      %3297 = vmatprep.subr.mxu0 0.0
      %3298 = vmatpush1.msra.mxu0 0.0
      %3299 = vmatprep.subr.mxu0 0.0
      %3300 = vmatpush1.msra.mxu0 0.0
      %3301 = vmatprep.subr.mxu0 0.0
      %3302 = vmatpush1.msra.mxu0 0.0
      %3303 = vmatprep.subr.mxu0 0.0
      %3304 = vmatpush1.msra.mxu0 0.0
      %3305 = vmatprep.mubr.f32.mxu0 0.0
      %3306 = vmatmul.mubr.f32.gmra.mrb[0].mxu0 %v3235
      %v3307 = vpop.f32.mrb[0].mxu0
      %v3308 = vadd.f32 %v3232, %v3307
      %v3309 = vpop.f32.mrb[0].mxu0
      %3310 = vdwg.mxu0
      %v3311 = vxor.u32 %v3308, 2147483648
      %v3312 = vmul.f32 %v3311, 1.442695
      %v3313 = vpow.pop %v3312
      %v3314 = vadd.f32 %v3313, 1.0
      %v3315 = vrcp.pop %v3314
      %v3316 = vmul.f32 1.0, %v3315
      %v3317 = vpack.c.bf16 %v3316, %v3316
      %v3319 = vpack.i.b16 %v3317, %v3317
      %v3321 = vlaneseq
      %v3322 = vshrl.u32 %v3321, 7
      %v3323 = vsub.s32 0, %v3322
      %v3324 = vrot.slane %v3319, %v3323
      %v3325 = vmul.bf16 %v3036, %v3324
      %v3326 = vmul.bf16 %v3037, %v3324
      %v3327 = vmul.bf16 %v3038, %v3324
      %v3328 = vmul.bf16 %v3039, %v3324
      %v3329 = vmul.bf16 %v3040, %v3324
      %v3330 = vmul.bf16 %v3041, %v3324
      %v3331 = vmul.bf16 %v3042, %v3324
      %v3332 = vmul.bf16 %v3043, %v3324
      %v3333 = vmul.bf16 %v3044, %v3324
      %v3334 = vmul.bf16 %v3045, %v3324
      %v3335 = vmul.bf16 %v3046, %v3324
      %v3336 = vmul.bf16 %v3047, %v3324
      %v3337 = vmul.bf16 %v3048, %v3324
      %v3338 = vmul.bf16 %v3049, %v3324
      %v3339 = vmul.bf16 %v3050, %v3324
      %v3340 = vmul.bf16 %v3051, %v3324
      %v3357 = vadd.bf16 %v3325, %v757
      %v3358 = vadd.bf16 %v3326, %v758
      %v3359 = vadd.bf16 %v3327, %v759
      %v3360 = vadd.bf16 %v3328, %v760
      %v3361 = vadd.bf16 %v3329, %v761
      %v3362 = vadd.bf16 %v3330, %v762
      %v3363 = vadd.bf16 %v3331, %v763
      %v3364 = vadd.bf16 %v3332, %v764
      %v3365 = vadd.bf16 %v3333, %v765
      %v3366 = vadd.bf16 %v3334, %v766
      %v3367 = vadd.bf16 %v3335, %v767
      %v3368 = vadd.bf16 %v3336, %v768
      %v3369 = vadd.bf16 %v3337, %v769
      %v3370 = vadd.bf16 %v3338, %v770
      %v3371 = vadd.bf16 %v3339, %v771
      %v3372 = vadd.bf16 %v3340, %v1937
      %v3389 = vunpack.c.l.b16 %v3357
      %v3390 = vunpack.c.h.b16 %v3357
      %v3391 = vunpack.c.l.b16 %v3358
      %v3392 = vunpack.c.h.b16 %v3358
      %v3393 = vunpack.c.l.b16 %v3359
      %v3394 = vunpack.c.h.b16 %v3359
      %v3395 = vunpack.c.l.b16 %v3360
      %v3396 = vunpack.c.h.b16 %v3360
      %v3397 = vunpack.c.l.b16 %v3361
      %v3398 = vunpack.c.h.b16 %v3361
      %v3399 = vunpack.c.l.b16 %v3362
      %v3400 = vunpack.c.h.b16 %v3362
      %v3401 = vunpack.c.l.b16 %v3363
      %v3402 = vunpack.c.h.b16 %v3363
      %v3403 = vunpack.c.l.b16 %v3364
      %v3404 = vunpack.c.h.b16 %v3364
      %v3405 = vunpack.c.l.b16 %v3365
      %v3406 = vunpack.c.h.b16 %v3365
      %v3407 = vunpack.c.l.b16 %v3366
      %v3408 = vunpack.c.h.b16 %v3366
      %v3409 = vunpack.c.l.b16 %v3367
      %v3410 = vunpack.c.h.b16 %v3367
      %v3411 = vunpack.c.l.b16 %v3368
      %v3412 = vunpack.c.h.b16 %v3368
      %v3413 = vunpack.c.l.b16 %v3369
      %v3414 = vunpack.c.h.b16 %v3369
      %v3415 = vunpack.c.l.b16 %v3370
      %v3416 = vunpack.c.h.b16 %v3370
      %v3417 = vunpack.c.l.b16 %v3371
      %v3418 = vunpack.c.h.b16 %v3371
      %v3419 = vunpack.c.l.b16 %v3372
      %v3420 = vunpack.c.h.b16 %v3372
      %v3421 = vpack.c.b16 %v3389, %v3389
      %v3422 = vpack.c.b16 %v3390, %v3390
      %v3423 = vpack.c.b16 %v3391, %v3391
      %v3424 = vpack.c.b16 %v3392, %v3392
      %v3425 = vpack.c.b16 %v3393, %v3393
      %v3426 = vpack.c.b16 %v3394, %v3394
      %v3427 = vpack.c.b16 %v3395, %v3395
      %v3428 = vpack.c.b16 %v3396, %v3396
      %v3429 = vpack.c.b16 %v3397, %v3397
      %v3430 = vpack.c.b16 %v3398, %v3398
      %v3431 = vpack.c.b16 %v3399, %v3399
      %v3432 = vpack.c.b16 %v3400, %v3400
      %v3433 = vpack.c.b16 %v3401, %v3401
      %v3434 = vpack.c.b16 %v3402, %v3402
      %v3435 = vpack.c.b16 %v3403, %v3403
      %v3436 = vpack.c.b16 %v3404, %v3404
      %v3437 = vpack.c.b16 %v3405, %v3405
      %v3438 = vpack.c.b16 %v3406, %v3406
      %v3439 = vpack.c.b16 %v3407, %v3407
      %v3440 = vpack.c.b16 %v3408, %v3408
      %v3441 = vpack.c.b16 %v3409, %v3409
      %v3442 = vpack.c.b16 %v3410, %v3410
      %v3443 = vpack.c.b16 %v3411, %v3411
      %v3444 = vpack.c.b16 %v3412, %v3412
      %v3445 = vpack.c.b16 %v3413, %v3413
      %v3446 = vpack.c.b16 %v3414, %v3414
      %v3447 = vpack.c.b16 %v3415, %v3415
      %v3448 = vpack.c.b16 %v3416, %v3416
      %v3449 = vpack.c.b16 %v3417, %v3417
      %v3450 = vpack.c.b16 %v3418, %v3418
      %v3451 = vpack.c.b16 %v3419, %v3419
      %v3452 = vpack.c.b16 %v3420, %v3420
      %vm3485 = vcmask 60416
      %3486 = vst.msk [vmem:[%s278] sm:$0xf] %vm3485, %v3421
      %3487 = vst.msk [vmem:[%s278 + $0x4] sm:$0xf] %vm3485, %v3422
      %3488 = vst.msk [vmem:[%s278 + $0x8] sm:$0xf] %vm3485, %v3423
      %3489 = vst.msk [vmem:[%s278 + $0xc] sm:$0xf] %vm3485, %v3424
      %3490 = vst.msk [vmem:[%s278 + $0x10] sm:$0xf] %vm3485, %v3425
      %3491 = vst.msk [vmem:[%s278 + $0x14] sm:$0xf] %vm3485, %v3426
      %3492 = vst.msk [vmem:[%s278 + $0x18] sm:$0xf] %vm3485, %v3427
      %3493 = vst.msk [vmem:[%s278 + $0x1c] sm:$0xf] %vm3485, %v3428
      %3494 = vst.msk [vmem:[%s278 + $0x20] sm:$0xf] %vm3485, %v3429
      %3495 = vst.msk [vmem:[%s278 + $0x24] sm:$0xf] %vm3485, %v3430
      %3496 = vst.msk [vmem:[%s278 + $0x28] sm:$0xf] %vm3485, %v3431
      %3497 = vst.msk [vmem:[%s278 + $0x2c] sm:$0xf] %vm3485, %v3432
      %3498 = vst.msk [vmem:[%s278 + $0x30] sm:$0xf] %vm3485, %v3433
      %3499 = vst.msk [vmem:[%s278 + $0x34] sm:$0xf] %vm3485, %v3434
      %3500 = vst.msk [vmem:[%s278 + $0x38] sm:$0xf] %vm3485, %v3435
      %3501 = vst.msk [vmem:[%s278 + $0x3c] sm:$0xf] %vm3485, %v3436
      %3502 = vst.msk [vmem:[%s278 + $0x40] sm:$0xf] %vm3485, %v3437
      %3503 = vst.msk [vmem:[%s278 + $0x44] sm:$0xf] %vm3485, %v3438
      %3504 = vst.msk [vmem:[%s278 + $0x48] sm:$0xf] %vm3485, %v3439
      %3505 = vst.msk [vmem:[%s278 + $0x4c] sm:$0xf] %vm3485, %v3440
      %3506 = vst.msk [vmem:[%s278 + $0x50] sm:$0xf] %vm3485, %v3441
      %3507 = vst.msk [vmem:[%s278 + $0x54] sm:$0xf] %vm3485, %v3442
      %3508 = vst.msk [vmem:[%s278 + $0x58] sm:$0xf] %vm3485, %v3443
      %3509 = vst.msk [vmem:[%s278 + $0x5c] sm:$0xf] %vm3485, %v3444
      %3510 = vst.msk [vmem:[%s278 + $0x60] sm:$0xf] %vm3485, %v3445
      %3511 = vst.msk [vmem:[%s278 + $0x64] sm:$0xf] %vm3485, %v3446
      %3512 = vst.msk [vmem:[%s278 + $0x68] sm:$0xf] %vm3485, %v3447
      %3513 = vst.msk [vmem:[%s278 + $0x6c] sm:$0xf] %vm3485, %v3448
      %3514 = vst.msk [vmem:[%s278 + $0x70] sm:$0xf] %vm3485, %v3449
      %3515 = vst.msk [vmem:[%s278 + $0x74] sm:$0xf] %vm3485, %v3450
      %3516 = vst.msk [vmem:[%s278 + $0x78] sm:$0xf] %vm3485, %v3451
      %3517 = vst.msk [vmem:[%s278 + $0x7c] sm:$0xf] %vm3485, %v3452
      %p3518 = scmp.lt.s32.totalorder %s18, 1
      %s3519 = scalar_select %p3518, %s18, 1
      %s3520 = smul.addr %s3519, 32
      %s3521 = smul.addr %s3520, 4
      %s3522 = scalar_lea.vmem %s7, %s3521
      // Predicated region
      $region49: #{repvgg_plux_block.1} parent=47 // pred_check
        %p3523 = pneg %p188
      $region50: #{repvgg_plux_block.1} parent=47 // pred_check_branch
        %3525 = sbr.rel (%p3523) target = $region52
      $region51: #{repvgg_plux_block.1} parent=47 // pred_region
        _
      $region52: #{repvgg_plux_block.1} parent=47 // pred_fallthru
        _
    $region48: #{repvgg_plux_block.1} parent=5 // pred_fallthru
      _
    %p3526 = scmp.le.s32.totalorder 2, %s13
    // Predicated region
    $region53: #{repvgg_plux_block.1} parent=5 // pred_check
      %p3527 = pneg %p3526
    $region54: #{repvgg_plux_block.1} parent=5 // pred_check_branch
      %3529 = sbr.rel (%p3527) target = $region56
    $region55: #{repvgg_plux_block.1} parent=5 // pred_region
      %s3530 = ssub.s32 %s13, 2
      // Predicated region
      $region57: #{repvgg_plux_block.1} parent=55 // pred_check
        %p3531 = pneg %p194
      $region58: #{repvgg_plux_block.1} parent=55 // pred_check_branch
        %3533 = sbr.rel (%p3531) target = $region60
      $region59: #{repvgg_plux_block.1} parent=55 // pred_region
        %p3534 = scmp.lt.s32.totalorder %s19, 1
        %s3535 = scalar_select %p3534, %s19, 1
        %s3536 = smul.addr %s3535, 32
        %s3537 = smul.addr %s3536, 4
        %s3538 = scalar_lea.vmem %s7, %s3537
      $region60: #{repvgg_plux_block.1} parent=55 // pred_fallthru
        _
    $region56: #{repvgg_plux_block.1} parent=5 // pred_fallthru
      _
  $region6: #{repvgg_plux_block.1} parent=0 // loop_footer
    %s17 = sadd.s32 1, %s13
  $region7: #{repvgg_plux_block.1} parent=0 // loop_footer_branch
    %12 = sbr.rel target = $region3
  $region8: #{repvgg_plux_block.1} parent=0 // loop_exit
    _

</llo_original>
